<compile_context>
chip_gen: v7x
topology: tpu7x:2x2x1
jax: 0.10.0
libtpu: 0.0.40
codegen_flags: <defaults>
</compile_context>

<pallas_src>
import jax
import jax.numpy as jnp
from jax import lax
from jax.experimental import pallas as pl
from jax.experimental.pallas import tpu as pltpu


def _make_kernel(N, H, W, Cin, Cout, stride, has_downsample):
    Hout = (H + 2 - 3) // stride + 1
    Wout = (W + 2 - 3) // stride + 1
    P = N * Hout * Wout
    inv_p = 1.0 / P

    def _pad_hw(v, C):
        # Zero halo (pad=1) built as a value; H (outer axis) pad is free-ish,
        # W (sublane axis) pad is an in-VMEM concat (no store/reload).
        zr = jnp.zeros((N, 1, v.shape[2], C), v.dtype)
        v = jnp.concatenate([zr, v, zr], axis=1)
        zc = jnp.zeros((N, v.shape[1], 1, C), v.dtype)
        return jnp.concatenate([zc, v, zc], axis=2)

    def _im2col(vpad, C, s, Ho, Wo):
        # Stack the 9 taps along the contraction axis -> (P, 9*C).
        # Reshape only collapses leading dims (minor/lane dim untouched).
        taps = []
        for dy in range(3):
            for dx in range(3):
                taps.append(vpad[:, dy:dy + (Ho - 1) * s + 1:s,
                                    dx:dx + (Wo - 1) * s + 1:s, :])
        return jnp.concatenate(taps, axis=-1).reshape(N * Ho * Wo, 9 * C)

    def _bn_train(y, gamma, beta, eps=1e-5):
        # Single pass over the (P, C) accumulator: sum + sum-of-squares.
        mean = jnp.sum(y, axis=0, keepdims=True) * inv_p
        ex2 = jnp.sum(y * y, axis=0, keepdims=True) * inv_p
        var = ex2 - mean * mean
        scale = gamma * lax.rsqrt(var + eps)          # EUP rsqrt on (1, C)
        return y * scale + (beta - mean * scale)

    def kernel(*refs):
        if has_downsample:
            (x_ref, w1_ref, g1_ref, b1_ref, w2_ref, g2_ref, b2_ref,
             wd_ref, gd_ref, bd_ref, out_ref) = refs
        else:
            (x_ref, w1_ref, g1_ref, b1_ref, w2_ref, g2_ref, b2_ref,
             out_ref) = refs

        x = x_ref[...]                                # (N, H, W, Cin) f32
        xb = x.astype(jnp.bfloat16)                   # bf16 copy for MXU paths

        # ---- conv1: 3x3, pad=1, stride -> one matmul, K = 9*Cin ----
        p1 = _im2col(_pad_hw(xb, Cin), Cin, stride, Hout, Wout)   # bf16
        y1 = jnp.dot(p1, w1_ref[...],
                     preferred_element_type=jnp.float32)          # (P, Cout) f32
        h1 = jnp.maximum(_bn_train(y1, g1_ref[...], b1_ref[...]), 0.0)

        # ---- conv2: 3x3, pad=1, stride 1 -> one matmul, K = 9*Cout ----
        h1b = h1.astype(jnp.bfloat16).reshape(N, Hout, Wout, Cout)
        p2 = _im2col(_pad_hw(h1b, Cout), Cout, 1, Hout, Wout)     # bf16
        y2 = jnp.dot(p2, w2_ref[...],
                     preferred_element_type=jnp.float32)          # (P, Cout) f32
        h2 = _bn_train(y2, g2_ref[...], b2_ref[...])

        # ---- identity / downsample path ----
        if has_downsample:
            xs = xb[:, 0:(Hout - 1) * stride + 1:stride,
                       0:(Wout - 1) * stride + 1:stride, :].reshape(P, Cin)
            idn = jnp.dot(xs, wd_ref[...],
                          preferred_element_type=jnp.float32)
            idn = _bn_train(idn, gd_ref[...], bd_ref[...])
        else:
            idn = x.reshape(P, Cout)                  # exact f32 pass-through

        out_ref[...] = jnp.maximum(h2 + idn, 0.0)     # (P, Cout)

    return kernel, (Hout, Wout)


def residual_block(x_nchw, w1, g1, b1, w2, g2, b2, wd=None, gd=None, bd=None,
                   *, stride=1):
    """x_nchw: (N, Cin, H, W); conv weights in PyTorch OIHW; BN params (C,)."""
    N, Cin, H, W = x_nchw.shape
    Cout = w1.shape[0]
    has_downsample = (stride != 1) or (Cin != Cout)

    # Layout glue only: NCHW -> NHWC (channels on lanes).  The spec is NCHW so
    # one transpose each way is unavoidable; halo padding is handled in-kernel.
    xn = jnp.transpose(x_nchw, (0, 2, 3, 1)).astype(jnp.float32)
    # Weights reshaped for im2col K-order (dy, dx, cin); bf16 MXU operands.
    w1k = jnp.transpose(w1, (2, 3, 1, 0)).reshape(9 * Cin, Cout).astype(jnp.bfloat16)
    w2k = jnp.transpose(w2, (2, 3, 1, 0)).reshape(9 * Cout, Cout).astype(jnp.bfloat16)
    g1k, b1k = g1.reshape(1, Cout).astype(jnp.float32), b1.reshape(1, Cout).astype(jnp.float32)
    g2k, b2k = g2.reshape(1, Cout).astype(jnp.float32), b2.reshape(1, Cout).astype(jnp.float32)

    args = [xn, w1k, g1k, b1k, w2k, g2k, b2k]
    if has_downsample:
        wdk = jnp.transpose(wd, (2, 3, 1, 0)).reshape(Cin, Cout).astype(jnp.bfloat16)
        gdk = gd.reshape(1, Cout).astype(jnp.float32)
        bdk = bd.reshape(1, Cout).astype(jnp.float32)
        args += [wdk, gdk, bdk]
    # else: downsample weights/params are not passed at all (no dead DMA).

    kernel, (Hout, Wout) = _make_kernel(N, H, W, Cin, Cout, stride,
                                        has_downsample)
    P = N * Hout * Wout

    vmem = pl.BlockSpec(memory_space=pltpu.MemorySpace.VMEM)
    out2d = pl.pallas_call(
        kernel,
        out_shape=jax.ShapeDtypeStruct((P, Cout), jnp.float32),
        in_specs=[vmem] * len(args),
        out_specs=vmem,
        compiler_params=pltpu.CompilerParams(
            vmem_limit_bytes=32 * 1024 * 1024),
    )(*args)

    # 2-D kernel output -> NCHW in the wrapper.
    return jnp.transpose(out2d.reshape(N, Hout, Wout, Cout), (0, 3, 1, 2))


# ------------------------- pure-JAX reference -------------------------------
def _ref_block(x, w1, g1, b1, w2, g2, b2, wd, gd, bd, stride):
    def conv(x, w, s, pad):
        return lax.conv_general_dilated(
            x, w, (s, s), [(pad, pad), (pad, pad)],
            dimension_numbers=('NCHW', 'OIHW', 'NCHW'),
            precision=lax.Precision.HIGHEST)

    def bn(x, g, b):
        mean = jnp.mean(x, axis=(0, 2, 3), keepdims=True)
        var = jnp.mean((x - mean) ** 2, axis=(0, 2, 3), keepdims=True)
        return ((x - mean) / jnp.sqrt(var + 1e-5)) * g.reshape(1, -1, 1, 1) \
            + b.reshape(1, -1, 1, 1)

    Cin, Cout = x.shape[1], w1.shape[0]
    out = jnp.maximum(bn(conv(x, w1, stride, 1), g1, b1), 0.0)
    out = bn(conv(out, w2, 1, 1), g2, b2)
    if stride != 1 or Cin != Cout:
        idn = bn(conv(x, wd, stride, 0), gd, bd)
    else:
        idn = x
    return jnp.maximum(out + idn, 0.0)


if __name__ == "__main__":
    N, Cin, Cout, H, W, stride = 2, 4, 8, 16, 16, 1

    key = jax.random.PRNGKey(0)
    kx, k1, k2, kd = jax.random.split(key, 4)

    def bf16_rep(a):
        # Round to bf16-representable f32 so the kernel (bf16 MXU operands) and
        # the f32 reference see identical inputs; the only lossy in-kernel step
        # is then the h1 -> bf16 recast before conv2 (~0.2% rel).
        return a.astype(jnp.bfloat16).astype(jnp.float32)

    x = bf16_rep(jax.random.normal(kx, (N, Cin, H, W), jnp.float32))
    w1 = bf16_rep(0.1 * jax.random.normal(k1, (Cout, Cin, 3, 3), jnp.float32))
    w2 = bf16_rep(0.1 * jax.random.normal(k2, (Cout, Cout, 3, 3), jnp.float32))
    wd = bf16_rep(0.1 * jax.random.normal(kd, (Cout, Cin, 1, 1), jnp.float32))

    ar = jnp.arange(Cout, dtype=jnp.float32)
    g1, b1 = 1.0 + 0.10 * ar, 0.01 * ar
    g2, b2 = 1.0 - 0.05 * ar, -0.02 * ar
    gd, bd = 1.0 + 0.03 * ar, 0.05 * ar

    out = residual_block(x, w1, g1, b1, w2, g2, b2, wd, gd, bd, stride=stride)
    out = jax.block_until_ready(out)

    ref = _ref_block(x, w1, g1, b1, w2, g2, b2, wd, gd, bd, stride)
    assert out.shape == ref.shape, (out.shape, ref.shape)
    # Tolerance accounts for bf16 MXU operands (f32 accumulation) vs f32 ref.
    max_err = float(jnp.max(jnp.abs(out - ref)))
    assert jnp.allclose(out, ref, atol=2e-2, rtol=2e-2), max_err

    print("KERNEL_OK")
</pallas_src>

<mosaic_0001>
module attributes {stable_mosaic.version = 11 : i64} {
  func.func @kernel(%arg0: memref<2x16x16x4xf32, #tpu.memory_space<vmem>>, %arg1: memref<36x8xbf16, #tpu.memory_space<vmem>>, %arg2: memref<1x8xf32, #tpu.memory_space<vmem>>, %arg3: memref<1x8xf32, #tpu.memory_space<vmem>>, %arg4: memref<72x8xbf16, #tpu.memory_space<vmem>>, %arg5: memref<1x8xf32, #tpu.memory_space<vmem>>, %arg6: memref<1x8xf32, #tpu.memory_space<vmem>>, %arg7: memref<4x8xbf16, #tpu.memory_space<vmem>>, %arg8: memref<1x8xf32, #tpu.memory_space<vmem>>, %arg9: memref<1x8xf32, #tpu.memory_space<vmem>>, %arg10: memref<512x8xf32, #tpu.memory_space<vmem>>) attributes {dimension_semantics = [], scalar_prefetch = 0 : i64, scratch_operands = 0 : i64, tpu.core_type = #tpu.core_type<tc>} {
    %c0 = arith.constant 0 : index
    %c0_0 = arith.constant 0 : index
    %c0_1 = arith.constant 0 : index
    %c0_2 = arith.constant 0 : index
    %0 = vector.load %arg0[%c0, %c0_0, %c0_1, %c0_2] : memref<2x16x16x4xf32, #tpu.memory_space<vmem>>, vector<2x16x16x4xf32>
    %1 = arith.truncf %0 : vector<2x16x16x4xf32> to vector<2x16x16x4xbf16>
    %cst = arith.constant 0.000000e+00 : bf16
    %2 = vector.broadcast %cst : bf16 to vector<2x1x16x4xbf16>
    %3 = tpu.concatenate %2, %1, %2 in 1 : vector<2x1x16x4xbf16>, vector<2x16x16x4xbf16>, vector<2x1x16x4xbf16> -> vector<2x18x16x4xbf16>
    %cst_3 = arith.constant 0.000000e+00 : bf16
    %4 = vector.broadcast %cst_3 : bf16 to vector<2x18x1x4xbf16>
    %5 = tpu.concatenate %4, %3, %4 in 2 : vector<2x18x1x4xbf16>, vector<2x18x16x4xbf16>, vector<2x18x1x4xbf16> -> vector<2x18x18x4xbf16>
    %6 = vector.extract_strided_slice %5 {offsets = [0, 0, 0, 0], sizes = [2, 16, 16, 4], strides = [1, 1, 1, 1]} : vector<2x18x18x4xbf16> to vector<2x16x16x4xbf16>
    %7 = vector.extract_strided_slice %5 {offsets = [0, 0, 1, 0], sizes = [2, 16, 16, 4], strides = [1, 1, 1, 1]} : vector<2x18x18x4xbf16> to vector<2x16x16x4xbf16>
    %8 = vector.extract_strided_slice %5 {offsets = [0, 0, 2, 0], sizes = [2, 16, 16, 4], strides = [1, 1, 1, 1]} : vector<2x18x18x4xbf16> to vector<2x16x16x4xbf16>
    %9 = vector.extract_strided_slice %5 {offsets = [0, 1, 0, 0], sizes = [2, 16, 16, 4], strides = [1, 1, 1, 1]} : vector<2x18x18x4xbf16> to vector<2x16x16x4xbf16>
    %10 = vector.extract_strided_slice %5 {offsets = [0, 1, 1, 0], sizes = [2, 16, 16, 4], strides = [1, 1, 1, 1]} : vector<2x18x18x4xbf16> to vector<2x16x16x4xbf16>
    %11 = vector.extract_strided_slice %5 {offsets = [0, 1, 2, 0], sizes = [2, 16, 16, 4], strides = [1, 1, 1, 1]} : vector<2x18x18x4xbf16> to vector<2x16x16x4xbf16>
    %12 = vector.extract_strided_slice %5 {offsets = [0, 2, 0, 0], sizes = [2, 16, 16, 4], strides = [1, 1, 1, 1]} : vector<2x18x18x4xbf16> to vector<2x16x16x4xbf16>
    %13 = vector.extract_strided_slice %5 {offsets = [0, 2, 1, 0], sizes = [2, 16, 16, 4], strides = [1, 1, 1, 1]} : vector<2x18x18x4xbf16> to vector<2x16x16x4xbf16>
    %14 = vector.extract_strided_slice %5 {offsets = [0, 2, 2, 0], sizes = [2, 16, 16, 4], strides = [1, 1, 1, 1]} : vector<2x18x18x4xbf16> to vector<2x16x16x4xbf16>
    %15 = tpu.concatenate %6, %7, %8, %9, %10, %11, %12, %13, %14 in 3 : vector<2x16x16x4xbf16>, vector<2x16x16x4xbf16>, vector<2x16x16x4xbf16>, vector<2x16x16x4xbf16>, vector<2x16x16x4xbf16>, vector<2x16x16x4xbf16>, vector<2x16x16x4xbf16>, vector<2x16x16x4xbf16>, vector<2x16x16x4xbf16> -> vector<2x16x16x36xbf16>
    %16 = vector.shape_cast %15 : vector<2x16x16x36xbf16> to vector<512x36xbf16>
    %c0_4 = arith.constant 0 : index
    %c0_5 = arith.constant 0 : index
    %17 = vector.load %arg1[%c0_4, %c0_5] : memref<36x8xbf16, #tpu.memory_space<vmem>>, vector<36x8xbf16>
    %cst_6 = arith.constant dense<0.000000e+00> : vector<512x8xf32>
    %18 = tpu.matmul %16, %17, %cst_6 {dimension_numbers = #tpu.dot_dimension_numbers<[1], [0], [0], [1], [0, 0, 1, 1], [], []>} : vector<512x36xbf16>, vector<36x8xbf16>, vector<512x8xf32> -> vector<512x8xf32>
    %c0_7 = arith.constant 0 : index
    %c0_8 = arith.constant 0 : index
    %19 = vector.load %arg2[%c0_7, %c0_8] : memref<1x8xf32, #tpu.memory_space<vmem>>, vector<1x8xf32>
    %c0_9 = arith.constant 0 : index
    %c0_10 = arith.constant 0 : index
    %20 = vector.load %arg3[%c0_9, %c0_10] : memref<1x8xf32, #tpu.memory_space<vmem>>, vector<1x8xf32>
    %cst_11 = arith.constant dense<0.000000e+00> : vector<8xf32>
    %21 = vector.multi_reduction <add>, %18, %cst_11 [0] : vector<512x8xf32> to vector<8xf32>
    %22 = vector.shape_cast %21 : vector<8xf32> to vector<1x8xf32>
    %cst_12 = arith.constant 0.001953125 : f32
    %23 = vector.broadcast %cst_12 : f32 to vector<1x8xf32>
    %24 = arith.mulf %22, %23 : vector<1x8xf32>
    %25 = arith.mulf %18, %18 : vector<512x8xf32>
    %cst_13 = arith.constant dense<0.000000e+00> : vector<8xf32>
    %26 = vector.multi_reduction <add>, %25, %cst_13 [0] : vector<512x8xf32> to vector<8xf32>
    %27 = vector.shape_cast %26 : vector<8xf32> to vector<1x8xf32>
    %cst_14 = arith.constant 0.001953125 : f32
    %28 = vector.broadcast %cst_14 : f32 to vector<1x8xf32>
    %29 = arith.mulf %27, %28 : vector<1x8xf32>
    %30 = arith.mulf %24, %24 : vector<1x8xf32>
    %31 = arith.subf %29, %30 : vector<1x8xf32>
    %cst_15 = arith.constant 9.99999974E-6 : f32
    %32 = vector.broadcast %cst_15 : f32 to vector<1x8xf32>
    %33 = arith.addf %31, %32 : vector<1x8xf32>
    %34 = math.rsqrt %33 : vector<1x8xf32>
    %35 = arith.mulf %19, %34 : vector<1x8xf32>
    %36 = vector.broadcast %35 : vector<1x8xf32> to vector<512x8xf32>
    %37 = arith.mulf %18, %36 : vector<512x8xf32>
    %38 = arith.mulf %24, %35 : vector<1x8xf32>
    %39 = arith.subf %20, %38 : vector<1x8xf32>
    %40 = vector.broadcast %39 : vector<1x8xf32> to vector<512x8xf32>
    %41 = arith.addf %37, %40 : vector<512x8xf32>
    %cst_16 = arith.constant 0.000000e+00 : f32
    %42 = vector.broadcast %cst_16 : f32 to vector<512x8xf32>
    %43 = arith.maximumf %41, %42 : vector<512x8xf32>
    %44 = arith.truncf %43 : vector<512x8xf32> to vector<512x8xbf16>
    %45 = vector.shape_cast %44 : vector<512x8xbf16> to vector<2x16x16x8xbf16>
    %cst_17 = arith.constant 0.000000e+00 : bf16
    %46 = vector.broadcast %cst_17 : bf16 to vector<2x1x16x8xbf16>
    %47 = tpu.concatenate %46, %45, %46 in 1 : vector<2x1x16x8xbf16>, vector<2x16x16x8xbf16>, vector<2x1x16x8xbf16> -> vector<2x18x16x8xbf16>
    %cst_18 = arith.constant 0.000000e+00 : bf16
    %48 = vector.broadcast %cst_18 : bf16 to vector<2x18x1x8xbf16>
    %49 = tpu.concatenate %48, %47, %48 in 2 : vector<2x18x1x8xbf16>, vector<2x18x16x8xbf16>, vector<2x18x1x8xbf16> -> vector<2x18x18x8xbf16>
    %50 = vector.extract_strided_slice %49 {offsets = [0, 0, 0, 0], sizes = [2, 16, 16, 8], strides = [1, 1, 1, 1]} : vector<2x18x18x8xbf16> to vector<2x16x16x8xbf16>
    %51 = vector.extract_strided_slice %49 {offsets = [0, 0, 1, 0], sizes = [2, 16, 16, 8], strides = [1, 1, 1, 1]} : vector<2x18x18x8xbf16> to vector<2x16x16x8xbf16>
    %52 = vector.extract_strided_slice %49 {offsets = [0, 0, 2, 0], sizes = [2, 16, 16, 8], strides = [1, 1, 1, 1]} : vector<2x18x18x8xbf16> to vector<2x16x16x8xbf16>
    %53 = vector.extract_strided_slice %49 {offsets = [0, 1, 0, 0], sizes = [2, 16, 16, 8], strides = [1, 1, 1, 1]} : vector<2x18x18x8xbf16> to vector<2x16x16x8xbf16>
    %54 = vector.extract_strided_slice %49 {offsets = [0, 1, 1, 0], sizes = [2, 16, 16, 8], strides = [1, 1, 1, 1]} : vector<2x18x18x8xbf16> to vector<2x16x16x8xbf16>
    %55 = vector.extract_strided_slice %49 {offsets = [0, 1, 2, 0], sizes = [2, 16, 16, 8], strides = [1, 1, 1, 1]} : vector<2x18x18x8xbf16> to vector<2x16x16x8xbf16>
    %56 = vector.extract_strided_slice %49 {offsets = [0, 2, 0, 0], sizes = [2, 16, 16, 8], strides = [1, 1, 1, 1]} : vector<2x18x18x8xbf16> to vector<2x16x16x8xbf16>
    %57 = vector.extract_strided_slice %49 {offsets = [0, 2, 1, 0], sizes = [2, 16, 16, 8], strides = [1, 1, 1, 1]} : vector<2x18x18x8xbf16> to vector<2x16x16x8xbf16>
    %58 = vector.extract_strided_slice %49 {offsets = [0, 2, 2, 0], sizes = [2, 16, 16, 8], strides = [1, 1, 1, 1]} : vector<2x18x18x8xbf16> to vector<2x16x16x8xbf16>
    %59 = tpu.concatenate %50, %51, %52, %53, %54, %55, %56, %57, %58 in 3 : vector<2x16x16x8xbf16>, vector<2x16x16x8xbf16>, vector<2x16x16x8xbf16>, vector<2x16x16x8xbf16>, vector<2x16x16x8xbf16>, vector<2x16x16x8xbf16>, vector<2x16x16x8xbf16>, vector<2x16x16x8xbf16>, vector<2x16x16x8xbf16> -> vector<2x16x16x72xbf16>
    %60 = vector.shape_cast %59 : vector<2x16x16x72xbf16> to vector<512x72xbf16>
    %c0_19 = arith.constant 0 : index
    %c0_20 = arith.constant 0 : index
    %61 = vector.load %arg4[%c0_19, %c0_20] : memref<72x8xbf16, #tpu.memory_space<vmem>>, vector<72x8xbf16>
    %cst_21 = arith.constant dense<0.000000e+00> : vector<512x8xf32>
    %62 = tpu.matmul %60, %61, %cst_21 {dimension_numbers = #tpu.dot_dimension_numbers<[1], [0], [0], [1], [0, 0, 1, 1], [], []>} : vector<512x72xbf16>, vector<72x8xbf16>, vector<512x8xf32> -> vector<512x8xf32>
    %c0_22 = arith.constant 0 : index
    %c0_23 = arith.constant 0 : index
    %63 = vector.load %arg5[%c0_22, %c0_23] : memref<1x8xf32, #tpu.memory_space<vmem>>, vector<1x8xf32>
    %c0_24 = arith.constant 0 : index
    %c0_25 = arith.constant 0 : index
    %64 = vector.load %arg6[%c0_24, %c0_25] : memref<1x8xf32, #tpu.memory_space<vmem>>, vector<1x8xf32>
    %cst_26 = arith.constant dense<0.000000e+00> : vector<8xf32>
    %65 = vector.multi_reduction <add>, %62, %cst_26 [0] : vector<512x8xf32> to vector<8xf32>
    %66 = vector.shape_cast %65 : vector<8xf32> to vector<1x8xf32>
    %cst_27 = arith.constant 0.001953125 : f32
    %67 = vector.broadcast %cst_27 : f32 to vector<1x8xf32>
    %68 = arith.mulf %66, %67 : vector<1x8xf32>
    %69 = arith.mulf %62, %62 : vector<512x8xf32>
    %cst_28 = arith.constant dense<0.000000e+00> : vector<8xf32>
    %70 = vector.multi_reduction <add>, %69, %cst_28 [0] : vector<512x8xf32> to vector<8xf32>
    %71 = vector.shape_cast %70 : vector<8xf32> to vector<1x8xf32>
    %cst_29 = arith.constant 0.001953125 : f32
    %72 = vector.broadcast %cst_29 : f32 to vector<1x8xf32>
    %73 = arith.mulf %71, %72 : vector<1x8xf32>
    %74 = arith.mulf %68, %68 : vector<1x8xf32>
    %75 = arith.subf %73, %74 : vector<1x8xf32>
    %cst_30 = arith.constant 9.99999974E-6 : f32
    %76 = vector.broadcast %cst_30 : f32 to vector<1x8xf32>
    %77 = arith.addf %75, %76 : vector<1x8xf32>
    %78 = math.rsqrt %77 : vector<1x8xf32>
    %79 = arith.mulf %63, %78 : vector<1x8xf32>
    %80 = vector.broadcast %79 : vector<1x8xf32> to vector<512x8xf32>
    %81 = arith.mulf %62, %80 : vector<512x8xf32>
    %82 = arith.mulf %68, %79 : vector<1x8xf32>
    %83 = arith.subf %64, %82 : vector<1x8xf32>
    %84 = vector.broadcast %83 : vector<1x8xf32> to vector<512x8xf32>
    %85 = arith.addf %81, %84 : vector<512x8xf32>
    %86 = vector.shape_cast %1 : vector<2x16x16x4xbf16> to vector<512x4xbf16>
    %c0_31 = arith.constant 0 : index
    %c0_32 = arith.constant 0 : index
    %87 = vector.load %arg7[%c0_31, %c0_32] : memref<4x8xbf16, #tpu.memory_space<vmem>>, vector<4x8xbf16>
    %cst_33 = arith.constant dense<0.000000e+00> : vector<512x8xf32>
    %88 = tpu.matmul %86, %87, %cst_33 {dimension_numbers = #tpu.dot_dimension_numbers<[1], [0], [0], [1], [0, 0, 1, 1], [], []>} : vector<512x4xbf16>, vector<4x8xbf16>, vector<512x8xf32> -> vector<512x8xf32>
    %c0_34 = arith.constant 0 : index
    %c0_35 = arith.constant 0 : index
    %89 = vector.load %arg8[%c0_34, %c0_35] : memref<1x8xf32, #tpu.memory_space<vmem>>, vector<1x8xf32>
    %c0_36 = arith.constant 0 : index
    %c0_37 = arith.constant 0 : index
    %90 = vector.load %arg9[%c0_36, %c0_37] : memref<1x8xf32, #tpu.memory_space<vmem>>, vector<1x8xf32>
    %cst_38 = arith.constant dense<0.000000e+00> : vector<8xf32>
    %91 = vector.multi_reduction <add>, %88, %cst_38 [0] : vector<512x8xf32> to vector<8xf32>
    %92 = vector.shape_cast %91 : vector<8xf32> to vector<1x8xf32>
    %cst_39 = arith.constant 0.001953125 : f32
    %93 = vector.broadcast %cst_39 : f32 to vector<1x8xf32>
    %94 = arith.mulf %92, %93 : vector<1x8xf32>
    %95 = arith.mulf %88, %88 : vector<512x8xf32>
    %cst_40 = arith.constant dense<0.000000e+00> : vector<8xf32>
    %96 = vector.multi_reduction <add>, %95, %cst_40 [0] : vector<512x8xf32> to vector<8xf32>
    %97 = vector.shape_cast %96 : vector<8xf32> to vector<1x8xf32>
    %cst_41 = arith.constant 0.001953125 : f32
    %98 = vector.broadcast %cst_41 : f32 to vector<1x8xf32>
    %99 = arith.mulf %97, %98 : vector<1x8xf32>
    %100 = arith.mulf %94, %94 : vector<1x8xf32>
    %101 = arith.subf %99, %100 : vector<1x8xf32>
    %cst_42 = arith.constant 9.99999974E-6 : f32
    %102 = vector.broadcast %cst_42 : f32 to vector<1x8xf32>
    %103 = arith.addf %101, %102 : vector<1x8xf32>
    %104 = math.rsqrt %103 : vector<1x8xf32>
    %105 = arith.mulf %89, %104 : vector<1x8xf32>
    %106 = vector.broadcast %105 : vector<1x8xf32> to vector<512x8xf32>
    %107 = arith.mulf %88, %106 : vector<512x8xf32>
    %108 = arith.mulf %94, %105 : vector<1x8xf32>
    %109 = arith.subf %90, %108 : vector<1x8xf32>
    %110 = vector.broadcast %109 : vector<1x8xf32> to vector<512x8xf32>
    %111 = arith.addf %107, %110 : vector<512x8xf32>
    %112 = arith.addf %85, %111 : vector<512x8xf32>
    %cst_43 = arith.constant 0.000000e+00 : f32
    %113 = vector.broadcast %cst_43 : f32 to vector<512x8xf32>
    %114 = arith.maximumf %112, %113 : vector<512x8xf32>
    %c0_44 = arith.constant 0 : index
    %c0_45 = arith.constant 0 : index
    %115 = vector.load %arg10[%c0_44, %c0_45] : memref<512x8xf32, #tpu.memory_space<vmem>>, vector<512x8xf32>
    tpu.vector_store %arg10[%c0_44, %c0_45], %114 {strides = array<i32>} : memref<512x8xf32, #tpu.memory_space<vmem>>, vector<512x8xf32>,
    return
  }
}

</mosaic_0001>

<llo_original>
// kernel: tpu_custom_call.1
$region0: #{tpu_custom_call.1}
  #allocation0 [shape = 'u32[]', space=smem, size = 0x4, offset = 0x4, fixed_abs, tag = 'smem constant byte address 0x4 - core index']
  #allocation1 [shape = 'u32[144,128]{1,0:T(1,128)}', space=vmem, size = 0x12000, scoped, tag = 'internal scratch']
  %s0 = inlined_call_operand.vmem [shape: f32[2,16,16,4], index: 0, kind: input, shape index: {}]
  %s1 = inlined_call_operand.vmem [shape: bf16[36,8], index: 1, kind: input, shape index: {}]
  %s2 = inlined_call_operand.vmem [shape: f32[1,8], index: 2, kind: input, shape index: {}]
  %s3 = inlined_call_operand.vmem [shape: f32[1,8], index: 3, kind: input, shape index: {}]
  %s4 = inlined_call_operand.vmem [shape: bf16[72,8], index: 4, kind: input, shape index: {}]
  %s5 = inlined_call_operand.vmem [shape: f32[1,8], index: 5, kind: input, shape index: {}]
  %s6 = inlined_call_operand.vmem [shape: f32[1,8], index: 6, kind: input, shape index: {}]
  %s7 = inlined_call_operand.vmem [shape: bf16[4,8], index: 7, kind: input, shape index: {}]
  %s8 = inlined_call_operand.vmem [shape: f32[1,8], index: 8, kind: input, shape index: {}]
  %s9 = inlined_call_operand.vmem [shape: f32[1,8], index: 9, kind: input, shape index: {}]
  %s10 = inlined_call_operand.vmem [shape: f32[512,8], index: 10, kind: output, shape index: {}]
  %s11 = sld [smem:[#allocation0]]
  $region50: #{tpu_custom_call.1} parent=0
    _
  %s13 = ssub.s32 1, %s11
  %s14 = scalar_select 0, %s13, %s11
  // Predicated region
  $region2: #{tpu_custom_call.1} parent=0 // pred_check
    _
  $region3: #{tpu_custom_call.1} parent=0 // pred_check_branch
    %16 = sbr.rel (0) target = $region5
  $region4: #{tpu_custom_call.1} parent=0 // pred_region
    _
  $region5: #{tpu_custom_call.1} parent=0 // pred_fallthru
    _
  // Predicated region
  $region6: #{tpu_custom_call.1} parent=0 // pred_check
    _
  $region7: #{tpu_custom_call.1} parent=0 // pred_check_branch
    %18 = sbr.rel (0) target = $region9
  $region8: #{tpu_custom_call.1} parent=0 // pred_region
    _
  $region9: #{tpu_custom_call.1} parent=0 // pred_fallthru
    _
  // Predicated region
  $region10: #{tpu_custom_call.1} parent=0 // pred_check
    _
  $region11: #{tpu_custom_call.1} parent=0 // pred_check_branch
    %20 = sbr.rel (0) target = $region13
  $region12: #{tpu_custom_call.1} parent=0 // pred_region
    _
  $region13: #{tpu_custom_call.1} parent=0 // pred_fallthru
    _
  // Predicated region
  $region14: #{tpu_custom_call.1} parent=0 // pred_check
    _
  $region15: #{tpu_custom_call.1} parent=0 // pred_check_branch
    %22 = sbr.rel (0) target = $region17
  $region16: #{tpu_custom_call.1} parent=0 // pred_region
    _
  $region17: #{tpu_custom_call.1} parent=0 // pred_fallthru
    _
  // Predicated region
  $region18: #{tpu_custom_call.1} parent=0 // pred_check
    _
  $region19: #{tpu_custom_call.1} parent=0 // pred_check_branch
    %24 = sbr.rel (0) target = $region21
  $region20: #{tpu_custom_call.1} parent=0 // pred_region
    _
  $region21: #{tpu_custom_call.1} parent=0 // pred_fallthru
    _
  // Predicated region
  $region22: #{tpu_custom_call.1} parent=0 // pred_check
    _
  $region23: #{tpu_custom_call.1} parent=0 // pred_check_branch
    %26 = sbr.rel (0) target = $region25
  $region24: #{tpu_custom_call.1} parent=0 // pred_region
    _
  $region25: #{tpu_custom_call.1} parent=0 // pred_fallthru
    _
  // Predicated region
  $region26: #{tpu_custom_call.1} parent=0 // pred_check
    _
  $region27: #{tpu_custom_call.1} parent=0 // pred_check_branch
    %28 = sbr.rel (0) target = $region29
  $region28: #{tpu_custom_call.1} parent=0 // pred_region
    _
  $region29: #{tpu_custom_call.1} parent=0 // pred_fallthru
    _
  // Predicated region
  $region30: #{tpu_custom_call.1} parent=0 // pred_check
    _
  $region31: #{tpu_custom_call.1} parent=0 // pred_check_branch
    %30 = sbr.rel (0) target = $region33
  $region32: #{tpu_custom_call.1} parent=0 // pred_region
    _
  $region33: #{tpu_custom_call.1} parent=0 // pred_fallthru
    _
  // Predicated region
  $region34: #{tpu_custom_call.1} parent=0 // pred_check
    _
  $region35: #{tpu_custom_call.1} parent=0 // pred_check_branch
    %32 = sbr.rel (0) target = $region37
  $region36: #{tpu_custom_call.1} parent=0 // pred_region
    _
  $region37: #{tpu_custom_call.1} parent=0 // pred_fallthru
    _
  // Predicated region
  $region38: #{tpu_custom_call.1} parent=0 // pred_check
    _
  $region39: #{tpu_custom_call.1} parent=0 // pred_check_branch
    %34 = sbr.rel (0) target = $region41
  $region40: #{tpu_custom_call.1} parent=0 // pred_region
    _
  $region41: #{tpu_custom_call.1} parent=0 // pred_fallthru
    _
  %v36 = vld [vmem:[%s0] sm:$0xff]
  %v37 = vld [vmem:[%s0 + $0x8] sm:$0xff]
  %v38 = vld [vmem:[%s0 + $0x10] sm:$0xff]
  %v39 = vld [vmem:[%s0 + $0x18] sm:$0xff]
  %v40 = vld [vmem:[%s0 + $0x20] sm:$0xff]
  %v41 = vld [vmem:[%s0 + $0x28] sm:$0xff]
  %v42 = vld [vmem:[%s0 + $0x30] sm:$0xff]
  %v43 = vld [vmem:[%s0 + $0x38] sm:$0xff]
  %v44 = vld [vmem:[%s0 + $0x40] sm:$0xff]
  %v45 = vld [vmem:[%s0 + $0x48] sm:$0xff]
  %v46 = vld [vmem:[%s0 + $0x50] sm:$0xff]
  %v47 = vld [vmem:[%s0 + $0x58] sm:$0xff]
  %v48 = vld [vmem:[%s0 + $0x60] sm:$0xff]
  %v49 = vld [vmem:[%s0 + $0x68] sm:$0xff]
  %v50 = vld [vmem:[%s0 + $0x70] sm:$0xff]
  %v51 = vld [vmem:[%s0 + $0x78] sm:$0xff]
  %v52 = vld [vmem:[%s0 + $0x80] sm:$0xff]
  %v53 = vld [vmem:[%s0 + $0x88] sm:$0xff]
  %v54 = vld [vmem:[%s0 + $0x90] sm:$0xff]
  %v55 = vld [vmem:[%s0 + $0x98] sm:$0xff]
  %v56 = vld [vmem:[%s0 + $0xa0] sm:$0xff]
  %v57 = vld [vmem:[%s0 + $0xa8] sm:$0xff]
  %v58 = vld [vmem:[%s0 + $0xb0] sm:$0xff]
  %v59 = vld [vmem:[%s0 + $0xb8] sm:$0xff]
  %v60 = vld [vmem:[%s0 + $0xc0] sm:$0xff]
  %v61 = vld [vmem:[%s0 + $0xc8] sm:$0xff]
  %v62 = vld [vmem:[%s0 + $0xd0] sm:$0xff]
  %v63 = vld [vmem:[%s0 + $0xd8] sm:$0xff]
  %v64 = vld [vmem:[%s0 + $0xe0] sm:$0xff]
  %v65 = vld [vmem:[%s0 + $0xe8] sm:$0xff]
  %v66 = vld [vmem:[%s0 + $0xf0] sm:$0xff]
  %v67 = vld [vmem:[%s0 + $0xf8] sm:$0xff]
  %v68 = vld [vmem:[%s0 + $0x100] sm:$0xff]
  %v69 = vld [vmem:[%s0 + $0x108] sm:$0xff]
  %v70 = vld [vmem:[%s0 + $0x110] sm:$0xff]
  %v71 = vld [vmem:[%s0 + $0x118] sm:$0xff]
  %v72 = vld [vmem:[%s0 + $0x120] sm:$0xff]
  %v73 = vld [vmem:[%s0 + $0x128] sm:$0xff]
  %v74 = vld [vmem:[%s0 + $0x130] sm:$0xff]
  %v75 = vld [vmem:[%s0 + $0x138] sm:$0xff]
  %v76 = vld [vmem:[%s0 + $0x140] sm:$0xff]
  %v77 = vld [vmem:[%s0 + $0x148] sm:$0xff]
  %v78 = vld [vmem:[%s0 + $0x150] sm:$0xff]
  %v79 = vld [vmem:[%s0 + $0x158] sm:$0xff]
  %v80 = vld [vmem:[%s0 + $0x160] sm:$0xff]
  %v81 = vld [vmem:[%s0 + $0x168] sm:$0xff]
  %v82 = vld [vmem:[%s0 + $0x170] sm:$0xff]
  %v83 = vld [vmem:[%s0 + $0x178] sm:$0xff]
  %v84 = vld [vmem:[%s0 + $0x180] sm:$0xff]
  %v85 = vld [vmem:[%s0 + $0x188] sm:$0xff]
  %v86 = vld [vmem:[%s0 + $0x190] sm:$0xff]
  %v87 = vld [vmem:[%s0 + $0x198] sm:$0xff]
  %v88 = vld [vmem:[%s0 + $0x1a0] sm:$0xff]
  %v89 = vld [vmem:[%s0 + $0x1a8] sm:$0xff]
  %v90 = vld [vmem:[%s0 + $0x1b0] sm:$0xff]
  %v91 = vld [vmem:[%s0 + $0x1b8] sm:$0xff]
  %v92 = vld [vmem:[%s0 + $0x1c0] sm:$0xff]
  %v93 = vld [vmem:[%s0 + $0x1c8] sm:$0xff]
  %v94 = vld [vmem:[%s0 + $0x1d0] sm:$0xff]
  %v95 = vld [vmem:[%s0 + $0x1d8] sm:$0xff]
  %v96 = vld [vmem:[%s0 + $0x1e0] sm:$0xff]
  %v97 = vld [vmem:[%s0 + $0x1e8] sm:$0xff]
  %v98 = vld [vmem:[%s0 + $0x1f0] sm:$0xff]
  %v99 = vld [vmem:[%s0 + $0x1f8] sm:$0xff]
  %v100 = vpack.c.bf16 %v37, %v36
  %v101 = vpack.c.bf16 %v39, %v38
  %v102 = vpack.c.bf16 %v41, %v40
  %v103 = vpack.c.bf16 %v43, %v42
  %v104 = vpack.c.bf16 %v45, %v44
  %v105 = vpack.c.bf16 %v47, %v46
  %v106 = vpack.c.bf16 %v49, %v48
  %v107 = vpack.c.bf16 %v51, %v50
  %v108 = vpack.c.bf16 %v53, %v52
  %v109 = vpack.c.bf16 %v55, %v54
  %v110 = vpack.c.bf16 %v57, %v56
  %v111 = vpack.c.bf16 %v59, %v58
  %v112 = vpack.c.bf16 %v61, %v60
  %v113 = vpack.c.bf16 %v63, %v62
  %v114 = vpack.c.bf16 %v65, %v64
  %v115 = vpack.c.bf16 %v67, %v66
  %v116 = vpack.c.bf16 %v69, %v68
  %v117 = vpack.c.bf16 %v71, %v70
  %v118 = vpack.c.bf16 %v73, %v72
  %v119 = vpack.c.bf16 %v75, %v74
  %v120 = vpack.c.bf16 %v77, %v76
  %v121 = vpack.c.bf16 %v79, %v78
  %v122 = vpack.c.bf16 %v81, %v80
  %v123 = vpack.c.bf16 %v83, %v82
  %v124 = vpack.c.bf16 %v85, %v84
  %v125 = vpack.c.bf16 %v87, %v86
  %v126 = vpack.c.bf16 %v89, %v88
  %v127 = vpack.c.bf16 %v91, %v90
  %v128 = vpack.c.bf16 %v93, %v92
  %v129 = vpack.c.bf16 %v95, %v94
  %v130 = vpack.c.bf16 %v97, %v96
  %v131 = vpack.c.bf16 %v99, %v98
  %v133 = vshrl.u32 0, 16
  %v135 = vrot.slane %v133, 7
  %v136 = vshll.u32 0, 16
  %v138 = vor.u32 %v135, %v136
  %v140 = vshrl.u32 %v100, 16
  %v142 = vrot.slane %v140, 7
  %v143 = vshll.u32 %v100, 16
  %v145 = vor.u32 %v142, %v143
  %v147 = vshrl.u32 %v101, 16
  %v149 = vrot.slane %v147, 7
  %v150 = vshll.u32 %v101, 16
  %v152 = vor.u32 %v149, %v150
  %v154 = vshrl.u32 %v102, 16
  %v156 = vrot.slane %v154, 7
  %v157 = vshll.u32 %v102, 16
  %v159 = vor.u32 %v156, %v157
  %v161 = vshrl.u32 %v103, 16
  %v163 = vrot.slane %v161, 7
  %v164 = vshll.u32 %v103, 16
  %v166 = vor.u32 %v163, %v164
  %v168 = vshrl.u32 %v104, 16
  %v170 = vrot.slane %v168, 7
  %v171 = vshll.u32 %v104, 16
  %v173 = vor.u32 %v170, %v171
  %v175 = vshrl.u32 %v105, 16
  %v177 = vrot.slane %v175, 7
  %v178 = vshll.u32 %v105, 16
  %v180 = vor.u32 %v177, %v178
  %v182 = vshrl.u32 %v106, 16
  %v184 = vrot.slane %v182, 7
  %v185 = vshll.u32 %v106, 16
  %v187 = vor.u32 %v184, %v185
  %v189 = vshrl.u32 %v107, 16
  %v191 = vrot.slane %v189, 7
  %v192 = vshll.u32 %v107, 16
  %v194 = vor.u32 %v191, %v192
  %v196 = vshrl.u32 %v108, 16
  %v198 = vrot.slane %v196, 7
  %v199 = vshll.u32 %v108, 16
  %v201 = vor.u32 %v198, %v199
  %v203 = vshrl.u32 %v109, 16
  %v205 = vrot.slane %v203, 7
  %v206 = vshll.u32 %v109, 16
  %v208 = vor.u32 %v205, %v206
  %v210 = vshrl.u32 %v110, 16
  %v212 = vrot.slane %v210, 7
  %v213 = vshll.u32 %v110, 16
  %v215 = vor.u32 %v212, %v213
  %v217 = vshrl.u32 %v111, 16
  %v219 = vrot.slane %v217, 7
  %v220 = vshll.u32 %v111, 16
  %v222 = vor.u32 %v219, %v220
  %v224 = vshrl.u32 %v112, 16
  %v226 = vrot.slane %v224, 7
  %v227 = vshll.u32 %v112, 16
  %v229 = vor.u32 %v226, %v227
  %v231 = vshrl.u32 %v113, 16
  %v233 = vrot.slane %v231, 7
  %v234 = vshll.u32 %v113, 16
  %v236 = vor.u32 %v233, %v234
  %v238 = vshrl.u32 %v114, 16
  %v240 = vrot.slane %v238, 7
  %v241 = vshll.u32 %v114, 16
  %v243 = vor.u32 %v240, %v241
  %v245 = vshrl.u32 %v115, 16
  %v247 = vrot.slane %v245, 7
  %v248 = vshll.u32 %v115, 16
  %v250 = vor.u32 %v247, %v248
  %v252 = vshrl.u32 %v116, 16
  %v254 = vrot.slane %v252, 7
  %v255 = vshll.u32 %v116, 16
  %v257 = vor.u32 %v254, %v255
  %v259 = vshrl.u32 %v117, 16
  %v261 = vrot.slane %v259, 7
  %v262 = vshll.u32 %v117, 16
  %v264 = vor.u32 %v261, %v262
  %v266 = vshrl.u32 %v118, 16
  %v268 = vrot.slane %v266, 7
  %v269 = vshll.u32 %v118, 16
  %v271 = vor.u32 %v268, %v269
  %v273 = vshrl.u32 %v119, 16
  %v275 = vrot.slane %v273, 7
  %v276 = vshll.u32 %v119, 16
  %v278 = vor.u32 %v275, %v276
  %v280 = vshrl.u32 %v120, 16
  %v282 = vrot.slane %v280, 7
  %v283 = vshll.u32 %v120, 16
  %v285 = vor.u32 %v282, %v283
  %v287 = vshrl.u32 %v121, 16
  %v289 = vrot.slane %v287, 7
  %v290 = vshll.u32 %v121, 16
  %v292 = vor.u32 %v289, %v290
  %v294 = vshrl.u32 %v122, 16
  %v296 = vrot.slane %v294, 7
  %v297 = vshll.u32 %v122, 16
  %v299 = vor.u32 %v296, %v297
  %v301 = vshrl.u32 %v123, 16
  %v303 = vrot.slane %v301, 7
  %v304 = vshll.u32 %v123, 16
  %v306 = vor.u32 %v303, %v304
  %v308 = vshrl.u32 %v124, 16
  %v310 = vrot.slane %v308, 7
  %v311 = vshll.u32 %v124, 16
  %v313 = vor.u32 %v310, %v311
  %v315 = vshrl.u32 %v125, 16
  %v317 = vrot.slane %v315, 7
  %v318 = vshll.u32 %v125, 16
  %v320 = vor.u32 %v317, %v318
  %v322 = vshrl.u32 %v126, 16
  %v324 = vrot.slane %v322, 7
  %v325 = vshll.u32 %v126, 16
  %v327 = vor.u32 %v324, %v325
  %v329 = vshrl.u32 %v127, 16
  %v331 = vrot.slane %v329, 7
  %v332 = vshll.u32 %v127, 16
  %v334 = vor.u32 %v331, %v332
  %v336 = vshrl.u32 %v128, 16
  %v338 = vrot.slane %v336, 7
  %v339 = vshll.u32 %v128, 16
  %v341 = vor.u32 %v338, %v339
  %v343 = vshrl.u32 %v129, 16
  %v345 = vrot.slane %v343, 7
  %v346 = vshll.u32 %v129, 16
  %v348 = vor.u32 %v345, %v346
  %v350 = vshrl.u32 %v130, 16
  %v352 = vrot.slane %v350, 7
  %v353 = vshll.u32 %v130, 16
  %v355 = vor.u32 %v352, %v353
  %v357 = vshrl.u32 %v131, 16
  %v359 = vrot.slane %v357, 7
  %v360 = vshll.u32 %v131, 16
  %v362 = vor.u32 %v359, %v360
  %vm429 = vcmask 1040384
  %vm430 = vsmask.f32 256
  %vm431 = vmand %vm429, %vm430
  %v432 = vsel %vm431, 0, %v138
  %v433 = vsel %vm431, 0, %v145
  %v434 = vsel %vm431, 0, %v152
  %v435 = vsel %vm431, 0, %v159
  %v436 = vsel %vm431, 0, %v166
  %v437 = vsel %vm431, 0, %v173
  %v438 = vsel %vm431, 0, %v180
  %v439 = vsel %vm431, 0, %v187
  %v440 = vsel %vm431, 0, %v194
  %v441 = vsel %vm431, 0, %v201
  %v442 = vsel %vm431, 0, %v208
  %v443 = vsel %vm431, 0, %v215
  %v444 = vsel %vm431, 0, %v222
  %v445 = vsel %vm431, 0, %v229
  %v446 = vsel %vm431, 0, %v236
  %v447 = vsel %vm431, 0, %v243
  %v448 = vsel %vm431, 0, %v250
  %v449 = vsel %vm431, 0, %v257
  %v450 = vsel %vm431, 0, %v264
  %v451 = vsel %vm431, 0, %v271
  %v452 = vsel %vm431, 0, %v278
  %v453 = vsel %vm431, 0, %v285
  %v454 = vsel %vm431, 0, %v292
  %v455 = vsel %vm431, 0, %v299
  %v456 = vsel %vm431, 0, %v306
  %v457 = vsel %vm431, 0, %v313
  %v458 = vsel %vm431, 0, %v320
  %v459 = vsel %vm431, 0, %v327
  %v460 = vsel %vm431, 0, %v334
  %v461 = vsel %vm431, 0, %v341
  %v462 = vsel %vm431, 0, %v348
  %v463 = vsel %vm431, 0, %v355
  %v464 = vsel %vm431, 0, %v362
  %v465 = vsel %vm431, %v135, 0
  %v466 = vsel %vm431, %v142, 0
  %v467 = vsel %vm431, %v149, 0
  %v468 = vsel %vm431, %v156, 0
  %v469 = vsel %vm431, %v163, 0
  %v470 = vsel %vm431, %v170, 0
  %v471 = vsel %vm431, %v177, 0
  %v472 = vsel %vm431, %v184, 0
  %v473 = vsel %vm431, %v191, 0
  %v474 = vsel %vm431, %v198, 0
  %v475 = vsel %vm431, %v205, 0
  %v476 = vsel %vm431, %v212, 0
  %v477 = vsel %vm431, %v219, 0
  %v478 = vsel %vm431, %v226, 0
  %v479 = vsel %vm431, %v233, 0
  %v480 = vsel %vm431, %v240, 0
  %v481 = vsel %vm431, %v247, 0
  %v482 = vsel %vm431, %v254, 0
  %v483 = vsel %vm431, %v261, 0
  %v484 = vsel %vm431, %v268, 0
  %v485 = vsel %vm431, %v275, 0
  %v486 = vsel %vm431, %v282, 0
  %v487 = vsel %vm431, %v289, 0
  %v488 = vsel %vm431, %v296, 0
  %v489 = vsel %vm431, %v303, 0
  %v490 = vsel %vm431, %v310, 0
  %v491 = vsel %vm431, %v317, 0
  %v492 = vsel %vm431, %v324, 0
  %v493 = vsel %vm431, %v331, 0
  %v494 = vsel %vm431, %v338, 0
  %v495 = vsel %vm431, %v345, 0
  %v496 = vsel %vm431, %v352, 0
  %v497 = vsel %vm431, %v359, 0
  %vm498 = vsmask.f32 7424
  %v500 = vshrl.u32 %v432, 16
  %v502 = vshll.u32 %v432, 16
  %v504 = vrot.slane %v502, 1
  %v505 = vor.u32 %v500, %v504
  %v507 = vshll.u32 %v465, 16
  %v509 = vrot.slane %v507, 1
  %v510 = vsel %vm498, %v505, %v509
  %v512 = vshrl.u32 %v433, 16
  %v514 = vshll.u32 %v433, 16
  %v516 = vrot.slane %v514, 1
  %v517 = vor.u32 %v512, %v516
  %v519 = vshll.u32 %v466, 16
  %v521 = vrot.slane %v519, 1
  %v522 = vsel %vm498, %v517, %v521
  %v524 = vshrl.u32 %v434, 16
  %v526 = vshll.u32 %v434, 16
  %v528 = vrot.slane %v526, 1
  %v529 = vor.u32 %v524, %v528
  %v531 = vshll.u32 %v467, 16
  %v533 = vrot.slane %v531, 1
  %v534 = vsel %vm498, %v529, %v533
  %v536 = vshrl.u32 %v435, 16
  %v538 = vshll.u32 %v435, 16
  %v540 = vrot.slane %v538, 1
  %v541 = vor.u32 %v536, %v540
  %v543 = vshll.u32 %v468, 16
  %v545 = vrot.slane %v543, 1
  %v546 = vsel %vm498, %v541, %v545
  %v548 = vshrl.u32 %v436, 16
  %v550 = vshll.u32 %v436, 16
  %v552 = vrot.slane %v550, 1
  %v553 = vor.u32 %v548, %v552
  %v555 = vshll.u32 %v469, 16
  %v557 = vrot.slane %v555, 1
  %v558 = vsel %vm498, %v553, %v557
  %v560 = vshrl.u32 %v437, 16
  %v562 = vshll.u32 %v437, 16
  %v564 = vrot.slane %v562, 1
  %v565 = vor.u32 %v560, %v564
  %v567 = vshll.u32 %v470, 16
  %v569 = vrot.slane %v567, 1
  %v570 = vsel %vm498, %v565, %v569
  %v572 = vshrl.u32 %v438, 16
  %v574 = vshll.u32 %v438, 16
  %v576 = vrot.slane %v574, 1
  %v577 = vor.u32 %v572, %v576
  %v579 = vshll.u32 %v471, 16
  %v581 = vrot.slane %v579, 1
  %v582 = vsel %vm498, %v577, %v581
  %v584 = vshrl.u32 %v439, 16
  %v586 = vshll.u32 %v439, 16
  %v588 = vrot.slane %v586, 1
  %v589 = vor.u32 %v584, %v588
  %v591 = vshll.u32 %v472, 16
  %v593 = vrot.slane %v591, 1
  %v594 = vsel %vm498, %v589, %v593
  %v596 = vshrl.u32 %v440, 16
  %v598 = vshll.u32 %v440, 16
  %v600 = vrot.slane %v598, 1
  %v601 = vor.u32 %v596, %v600
  %v603 = vshll.u32 %v473, 16
  %v605 = vrot.slane %v603, 1
  %v606 = vsel %vm498, %v601, %v605
  %v608 = vshrl.u32 %v441, 16
  %v610 = vshll.u32 %v441, 16
  %v612 = vrot.slane %v610, 1
  %v613 = vor.u32 %v608, %v612
  %v615 = vshll.u32 %v474, 16
  %v617 = vrot.slane %v615, 1
  %v618 = vsel %vm498, %v613, %v617
  %v620 = vshrl.u32 %v442, 16
  %v622 = vshll.u32 %v442, 16
  %v624 = vrot.slane %v622, 1
  %v625 = vor.u32 %v620, %v624
  %v627 = vshll.u32 %v475, 16
  %v629 = vrot.slane %v627, 1
  %v630 = vsel %vm498, %v625, %v629
  %v632 = vshrl.u32 %v443, 16
  %v634 = vshll.u32 %v443, 16
  %v636 = vrot.slane %v634, 1
  %v637 = vor.u32 %v632, %v636
  %v639 = vshll.u32 %v476, 16
  %v641 = vrot.slane %v639, 1
  %v642 = vsel %vm498, %v637, %v641
  %v644 = vshrl.u32 %v444, 16
  %v646 = vshll.u32 %v444, 16
  %v648 = vrot.slane %v646, 1
  %v649 = vor.u32 %v644, %v648
  %v651 = vshll.u32 %v477, 16
  %v653 = vrot.slane %v651, 1
  %v654 = vsel %vm498, %v649, %v653
  %v656 = vshrl.u32 %v445, 16
  %v658 = vshll.u32 %v445, 16
  %v660 = vrot.slane %v658, 1
  %v661 = vor.u32 %v656, %v660
  %v663 = vshll.u32 %v478, 16
  %v665 = vrot.slane %v663, 1
  %v666 = vsel %vm498, %v661, %v665
  %v668 = vshrl.u32 %v446, 16
  %v670 = vshll.u32 %v446, 16
  %v672 = vrot.slane %v670, 1
  %v673 = vor.u32 %v668, %v672
  %v675 = vshll.u32 %v479, 16
  %v677 = vrot.slane %v675, 1
  %v678 = vsel %vm498, %v673, %v677
  %v680 = vshrl.u32 %v447, 16
  %v682 = vshll.u32 %v447, 16
  %v684 = vrot.slane %v682, 1
  %v685 = vor.u32 %v680, %v684
  %v687 = vshll.u32 %v480, 16
  %v689 = vrot.slane %v687, 1
  %v690 = vsel %vm498, %v685, %v689
  %v692 = vshrl.u32 %v449, 16
  %v694 = vshll.u32 %v449, 16
  %v696 = vrot.slane %v694, 1
  %v697 = vor.u32 %v692, %v696
  %v699 = vshll.u32 %v482, 16
  %v701 = vrot.slane %v699, 1
  %v702 = vsel %vm498, %v697, %v701
  %v704 = vshrl.u32 %v450, 16
  %v706 = vshll.u32 %v450, 16
  %v708 = vrot.slane %v706, 1
  %v709 = vor.u32 %v704, %v708
  %v711 = vshll.u32 %v483, 16
  %v713 = vrot.slane %v711, 1
  %v714 = vsel %vm498, %v709, %v713
  %v716 = vshrl.u32 %v451, 16
  %v718 = vshll.u32 %v451, 16
  %v720 = vrot.slane %v718, 1
  %v721 = vor.u32 %v716, %v720
  %v723 = vshll.u32 %v484, 16
  %v725 = vrot.slane %v723, 1
  %v726 = vsel %vm498, %v721, %v725
  %v728 = vshrl.u32 %v452, 16
  %v730 = vshll.u32 %v452, 16
  %v732 = vrot.slane %v730, 1
  %v733 = vor.u32 %v728, %v732
  %v735 = vshll.u32 %v485, 16
  %v737 = vrot.slane %v735, 1
  %v738 = vsel %vm498, %v733, %v737
  %v740 = vshrl.u32 %v453, 16
  %v742 = vshll.u32 %v453, 16
  %v744 = vrot.slane %v742, 1
  %v745 = vor.u32 %v740, %v744
  %v747 = vshll.u32 %v486, 16
  %v749 = vrot.slane %v747, 1
  %v750 = vsel %vm498, %v745, %v749
  %v752 = vshrl.u32 %v454, 16
  %v754 = vshll.u32 %v454, 16
  %v756 = vrot.slane %v754, 1
  %v757 = vor.u32 %v752, %v756
  %v759 = vshll.u32 %v487, 16
  %v761 = vrot.slane %v759, 1
  %v762 = vsel %vm498, %v757, %v761
  %v764 = vshrl.u32 %v455, 16
  %v766 = vshll.u32 %v455, 16
  %v768 = vrot.slane %v766, 1
  %v769 = vor.u32 %v764, %v768
  %v771 = vshll.u32 %v488, 16
  %v773 = vrot.slane %v771, 1
  %v774 = vsel %vm498, %v769, %v773
  %v776 = vshrl.u32 %v456, 16
  %v778 = vshll.u32 %v456, 16
  %v780 = vrot.slane %v778, 1
  %v781 = vor.u32 %v776, %v780
  %v783 = vshll.u32 %v489, 16
  %v785 = vrot.slane %v783, 1
  %v786 = vsel %vm498, %v781, %v785
  %v788 = vshrl.u32 %v457, 16
  %v790 = vshll.u32 %v457, 16
  %v792 = vrot.slane %v790, 1
  %v793 = vor.u32 %v788, %v792
  %v795 = vshll.u32 %v490, 16
  %v797 = vrot.slane %v795, 1
  %v798 = vsel %vm498, %v793, %v797
  %v800 = vshrl.u32 %v458, 16
  %v802 = vshll.u32 %v458, 16
  %v804 = vrot.slane %v802, 1
  %v805 = vor.u32 %v800, %v804
  %v807 = vshll.u32 %v491, 16
  %v809 = vrot.slane %v807, 1
  %v810 = vsel %vm498, %v805, %v809
  %v812 = vshrl.u32 %v459, 16
  %v814 = vshll.u32 %v459, 16
  %v816 = vrot.slane %v814, 1
  %v817 = vor.u32 %v812, %v816
  %v819 = vshll.u32 %v492, 16
  %v821 = vrot.slane %v819, 1
  %v822 = vsel %vm498, %v817, %v821
  %v824 = vshrl.u32 %v460, 16
  %v826 = vshll.u32 %v460, 16
  %v828 = vrot.slane %v826, 1
  %v829 = vor.u32 %v824, %v828
  %v831 = vshll.u32 %v493, 16
  %v833 = vrot.slane %v831, 1
  %v834 = vsel %vm498, %v829, %v833
  %v836 = vshrl.u32 %v461, 16
  %v838 = vshll.u32 %v461, 16
  %v840 = vrot.slane %v838, 1
  %v841 = vor.u32 %v836, %v840
  %v843 = vshll.u32 %v494, 16
  %v845 = vrot.slane %v843, 1
  %v846 = vsel %vm498, %v841, %v845
  %v848 = vshrl.u32 %v462, 16
  %v850 = vshll.u32 %v462, 16
  %v852 = vrot.slane %v850, 1
  %v853 = vor.u32 %v848, %v852
  %v855 = vshll.u32 %v495, 16
  %v857 = vrot.slane %v855, 1
  %v858 = vsel %vm498, %v853, %v857
  %v860 = vshrl.u32 %v463, 16
  %v862 = vshll.u32 %v463, 16
  %v864 = vrot.slane %v862, 1
  %v865 = vor.u32 %v860, %v864
  %v867 = vshll.u32 %v496, 16
  %v869 = vrot.slane %v867, 1
  %v870 = vsel %vm498, %v865, %v869
  %871 = vrot.lane.b32.xlu0 %v510, 4
  %v872 = vpop.permute.xlu0 %871
  %873 = vrot.lane.b32.xlu0 %v522, 4
  %v874 = vpop.permute.xlu0 %873
  %875 = vrot.lane.b32.xlu0 %v534, 4
  %v876 = vpop.permute.xlu0 %875
  %877 = vrot.lane.b32.xlu0 %v546, 4
  %v878 = vpop.permute.xlu0 %877
  %879 = vrot.lane.b32.xlu0 %v558, 4
  %v880 = vpop.permute.xlu0 %879
  %881 = vrot.lane.b32.xlu0 %v570, 4
  %v882 = vpop.permute.xlu0 %881
  %883 = vrot.lane.b32.xlu0 %v582, 4
  %v884 = vpop.permute.xlu0 %883
  %885 = vrot.lane.b32.xlu0 %v594, 4
  %v886 = vpop.permute.xlu0 %885
  %887 = vrot.lane.b32.xlu0 %v606, 4
  %v888 = vpop.permute.xlu0 %887
  %889 = vrot.lane.b32.xlu0 %v618, 4
  %v890 = vpop.permute.xlu0 %889
  %891 = vrot.lane.b32.xlu0 %v630, 4
  %v892 = vpop.permute.xlu0 %891
  %893 = vrot.lane.b32.xlu0 %v642, 4
  %v894 = vpop.permute.xlu0 %893
  %895 = vrot.lane.b32.xlu0 %v654, 4
  %v896 = vpop.permute.xlu0 %895
  %897 = vrot.lane.b32.xlu0 %v666, 4
  %v898 = vpop.permute.xlu0 %897
  %899 = vrot.lane.b32.xlu0 %v678, 4
  %v900 = vpop.permute.xlu0 %899
  %901 = vrot.lane.b32.xlu0 %v690, 4
  %v902 = vpop.permute.xlu0 %901
  %903 = vrot.lane.b32.xlu0 %v702, 4
  %v904 = vpop.permute.xlu0 %903
  %905 = vrot.lane.b32.xlu0 %v714, 4
  %v906 = vpop.permute.xlu0 %905
  %907 = vrot.lane.b32.xlu0 %v726, 4
  %v908 = vpop.permute.xlu0 %907
  %909 = vrot.lane.b32.xlu0 %v738, 4
  %v910 = vpop.permute.xlu0 %909
  %911 = vrot.lane.b32.xlu0 %v750, 4
  %v912 = vpop.permute.xlu0 %911
  %913 = vrot.lane.b32.xlu0 %v762, 4
  %v914 = vpop.permute.xlu0 %913
  %915 = vrot.lane.b32.xlu0 %v774, 4
  %v916 = vpop.permute.xlu0 %915
  %917 = vrot.lane.b32.xlu0 %v786, 4
  %v918 = vpop.permute.xlu0 %917
  %919 = vrot.lane.b32.xlu0 %v798, 4
  %v920 = vpop.permute.xlu0 %919
  %921 = vrot.lane.b32.xlu0 %v810, 4
  %v922 = vpop.permute.xlu0 %921
  %923 = vrot.lane.b32.xlu0 %v822, 4
  %v924 = vpop.permute.xlu0 %923
  %925 = vrot.lane.b32.xlu0 %v834, 4
  %v926 = vpop.permute.xlu0 %925
  %927 = vrot.lane.b32.xlu0 %v846, 4
  %v928 = vpop.permute.xlu0 %927
  %929 = vrot.lane.b32.xlu0 %v858, 4
  %v930 = vpop.permute.xlu0 %929
  %931 = vrot.lane.b32.xlu0 %v870, 4
  %v932 = vpop.permute.xlu0 %931
  %vm995 = vcmask 1046528
  %v996 = vrot.slane %v432, 1
  %v997 = vrot.slane %v465, 1
  %v998 = vsel %vm995, %v996, %v997
  %v999 = vrot.slane %v433, 1
  %v1000 = vrot.slane %v466, 1
  %v1001 = vsel %vm995, %v999, %v1000
  %v1002 = vrot.slane %v434, 1
  %v1003 = vrot.slane %v467, 1
  %v1004 = vsel %vm995, %v1002, %v1003
  %v1005 = vrot.slane %v435, 1
  %v1006 = vrot.slane %v468, 1
  %v1007 = vsel %vm995, %v1005, %v1006
  %v1008 = vrot.slane %v436, 1
  %v1009 = vrot.slane %v469, 1
  %v1010 = vsel %vm995, %v1008, %v1009
  %v1011 = vrot.slane %v437, 1
  %v1012 = vrot.slane %v470, 1
  %v1013 = vsel %vm995, %v1011, %v1012
  %v1014 = vrot.slane %v438, 1
  %v1015 = vrot.slane %v471, 1
  %v1016 = vsel %vm995, %v1014, %v1015
  %v1017 = vrot.slane %v439, 1
  %v1018 = vrot.slane %v472, 1
  %v1019 = vsel %vm995, %v1017, %v1018
  %v1020 = vrot.slane %v440, 1
  %v1021 = vrot.slane %v473, 1
  %v1022 = vsel %vm995, %v1020, %v1021
  %v1023 = vrot.slane %v441, 1
  %v1024 = vrot.slane %v474, 1
  %v1025 = vsel %vm995, %v1023, %v1024
  %v1026 = vrot.slane %v442, 1
  %v1027 = vrot.slane %v475, 1
  %v1028 = vsel %vm995, %v1026, %v1027
  %v1029 = vrot.slane %v443, 1
  %v1030 = vrot.slane %v476, 1
  %v1031 = vsel %vm995, %v1029, %v1030
  %v1032 = vrot.slane %v444, 1
  %v1033 = vrot.slane %v477, 1
  %v1034 = vsel %vm995, %v1032, %v1033
  %v1035 = vrot.slane %v445, 1
  %v1036 = vrot.slane %v478, 1
  %v1037 = vsel %vm995, %v1035, %v1036
  %v1038 = vrot.slane %v446, 1
  %v1039 = vrot.slane %v479, 1
  %v1040 = vsel %vm995, %v1038, %v1039
  %v1041 = vrot.slane %v447, 1
  %v1042 = vrot.slane %v480, 1
  %v1043 = vsel %vm995, %v1041, %v1042
  %v1044 = vrot.slane %v449, 1
  %v1045 = vrot.slane %v482, 1
  %v1046 = vsel %vm995, %v1044, %v1045
  %v1047 = vrot.slane %v450, 1
  %v1048 = vrot.slane %v483, 1
  %v1049 = vsel %vm995, %v1047, %v1048
  %v1050 = vrot.slane %v451, 1
  %v1051 = vrot.slane %v484, 1
  %v1052 = vsel %vm995, %v1050, %v1051
  %v1053 = vrot.slane %v452, 1
  %v1054 = vrot.slane %v485, 1
  %v1055 = vsel %vm995, %v1053, %v1054
  %v1056 = vrot.slane %v453, 1
  %v1057 = vrot.slane %v486, 1
  %v1058 = vsel %vm995, %v1056, %v1057
  %v1059 = vrot.slane %v454, 1
  %v1060 = vrot.slane %v487, 1
  %v1061 = vsel %vm995, %v1059, %v1060
  %v1062 = vrot.slane %v455, 1
  %v1063 = vrot.slane %v488, 1
  %v1064 = vsel %vm995, %v1062, %v1063
  %v1065 = vrot.slane %v456, 1
  %v1066 = vrot.slane %v489, 1
  %v1067 = vsel %vm995, %v1065, %v1066
  %v1068 = vrot.slane %v457, 1
  %v1069 = vrot.slane %v490, 1
  %v1070 = vsel %vm995, %v1068, %v1069
  %v1071 = vrot.slane %v458, 1
  %v1072 = vrot.slane %v491, 1
  %v1073 = vsel %vm995, %v1071, %v1072
  %v1074 = vrot.slane %v459, 1
  %v1075 = vrot.slane %v492, 1
  %v1076 = vsel %vm995, %v1074, %v1075
  %v1077 = vrot.slane %v460, 1
  %v1078 = vrot.slane %v493, 1
  %v1079 = vsel %vm995, %v1077, %v1078
  %v1080 = vrot.slane %v461, 1
  %v1081 = vrot.slane %v494, 1
  %v1082 = vsel %vm995, %v1080, %v1081
  %v1083 = vrot.slane %v462, 1
  %v1084 = vrot.slane %v495, 1
  %v1085 = vsel %vm995, %v1083, %v1084
  %v1086 = vrot.slane %v463, 1
  %v1087 = vrot.slane %v496, 1
  %v1088 = vsel %vm995, %v1086, %v1087
  %1089 = vrot.lane.b32.xlu0 %v998, 8
  %v1090 = vpop.permute.xlu0 %1089
  %1091 = vrot.lane.b32.xlu0 %v1001, 8
  %v1092 = vpop.permute.xlu0 %1091
  %1093 = vrot.lane.b32.xlu0 %v1004, 8
  %v1094 = vpop.permute.xlu0 %1093
  %1095 = vrot.lane.b32.xlu0 %v1007, 8
  %v1096 = vpop.permute.xlu0 %1095
  %1097 = vrot.lane.b32.xlu0 %v1010, 8
  %v1098 = vpop.permute.xlu0 %1097
  %1099 = vrot.lane.b32.xlu0 %v1013, 8
  %v1100 = vpop.permute.xlu0 %1099
  %1101 = vrot.lane.b32.xlu0 %v1016, 8
  %v1102 = vpop.permute.xlu0 %1101
  %1103 = vrot.lane.b32.xlu0 %v1019, 8
  %v1104 = vpop.permute.xlu0 %1103
  %1105 = vrot.lane.b32.xlu0 %v1022, 8
  %v1106 = vpop.permute.xlu0 %1105
  %1107 = vrot.lane.b32.xlu0 %v1025, 8
  %v1108 = vpop.permute.xlu0 %1107
  %1109 = vrot.lane.b32.xlu0 %v1028, 8
  %v1110 = vpop.permute.xlu0 %1109
  %1111 = vrot.lane.b32.xlu0 %v1031, 8
  %v1112 = vpop.permute.xlu0 %1111
  %1113 = vrot.lane.b32.xlu0 %v1034, 8
  %v1114 = vpop.permute.xlu0 %1113
  %1115 = vrot.lane.b32.xlu0 %v1037, 8
  %v1116 = vpop.permute.xlu0 %1115
  %1117 = vrot.lane.b32.xlu0 %v1040, 8
  %v1118 = vpop.permute.xlu0 %1117
  %1119 = vrot.lane.b32.xlu0 %v1043, 8
  %v1120 = vpop.permute.xlu0 %1119
  %1121 = vrot.lane.b32.xlu0 %v1046, 8
  %v1122 = vpop.permute.xlu0 %1121
  %1123 = vrot.lane.b32.xlu0 %v1049, 8
  %v1124 = vpop.permute.xlu0 %1123
  %1125 = vrot.lane.b32.xlu0 %v1052, 8
  %v1126 = vpop.permute.xlu0 %1125
  %1127 = vrot.lane.b32.xlu0 %v1055, 8
  %v1128 = vpop.permute.xlu0 %1127
  %1129 = vrot.lane.b32.xlu0 %v1058, 8
  %v1130 = vpop.permute.xlu0 %1129
  %1131 = vrot.lane.b32.xlu0 %v1061, 8
  %v1132 = vpop.permute.xlu0 %1131
  %1133 = vrot.lane.b32.xlu0 %v1064, 8
  %v1134 = vpop.permute.xlu0 %1133
  %1135 = vrot.lane.b32.xlu0 %v1067, 8
  %v1136 = vpop.permute.xlu0 %1135
  %1137 = vrot.lane.b32.xlu0 %v1070, 8
  %v1138 = vpop.permute.xlu0 %1137
  %1139 = vrot.lane.b32.xlu0 %v1073, 8
  %v1140 = vpop.permute.xlu0 %1139
  %1141 = vrot.lane.b32.xlu0 %v1076, 8
  %v1142 = vpop.permute.xlu0 %1141
  %1143 = vrot.lane.b32.xlu0 %v1079, 8
  %v1144 = vpop.permute.xlu0 %1143
  %1145 = vrot.lane.b32.xlu0 %v1082, 8
  %v1146 = vpop.permute.xlu0 %1145
  %1147 = vrot.lane.b32.xlu0 %v1085, 8
  %v1148 = vpop.permute.xlu0 %1147
  %1149 = vrot.lane.b32.xlu0 %v1088, 8
  %v1150 = vpop.permute.xlu0 %1149
  %1153 = vrot.lane.b32.xlu0 %v433, 12
  %v1154 = vpop.permute.xlu0 %1153
  %1155 = vrot.lane.b32.xlu0 %v434, 12
  %v1156 = vpop.permute.xlu0 %1155
  %1157 = vrot.lane.b32.xlu0 %v435, 12
  %v1158 = vpop.permute.xlu0 %1157
  %1159 = vrot.lane.b32.xlu0 %v436, 12
  %v1160 = vpop.permute.xlu0 %1159
  %1161 = vrot.lane.b32.xlu0 %v437, 12
  %v1162 = vpop.permute.xlu0 %1161
  %1163 = vrot.lane.b32.xlu0 %v438, 12
  %v1164 = vpop.permute.xlu0 %1163
  %1165 = vrot.lane.b32.xlu0 %v439, 12
  %v1166 = vpop.permute.xlu0 %1165
  %1167 = vrot.lane.b32.xlu0 %v440, 12
  %v1168 = vpop.permute.xlu0 %1167
  %1169 = vrot.lane.b32.xlu0 %v441, 12
  %v1170 = vpop.permute.xlu0 %1169
  %1171 = vrot.lane.b32.xlu0 %v442, 12
  %v1172 = vpop.permute.xlu0 %1171
  %1173 = vrot.lane.b32.xlu0 %v443, 12
  %v1174 = vpop.permute.xlu0 %1173
  %1175 = vrot.lane.b32.xlu0 %v444, 12
  %v1176 = vpop.permute.xlu0 %1175
  %1177 = vrot.lane.b32.xlu0 %v445, 12
  %v1178 = vpop.permute.xlu0 %1177
  %1179 = vrot.lane.b32.xlu0 %v446, 12
  %v1180 = vpop.permute.xlu0 %1179
  %1181 = vrot.lane.b32.xlu0 %v447, 12
  %v1182 = vpop.permute.xlu0 %1181
  %1183 = vrot.lane.b32.xlu0 %v448, 12
  %v1184 = vpop.permute.xlu0 %1183
  %1185 = vrot.lane.b32.xlu0 %v449, 12
  %v1186 = vpop.permute.xlu0 %1185
  %1187 = vrot.lane.b32.xlu0 %v450, 12
  %v1188 = vpop.permute.xlu0 %1187
  %1189 = vrot.lane.b32.xlu0 %v451, 12
  %v1190 = vpop.permute.xlu0 %1189
  %1191 = vrot.lane.b32.xlu0 %v452, 12
  %v1192 = vpop.permute.xlu0 %1191
  %1193 = vrot.lane.b32.xlu0 %v453, 12
  %v1194 = vpop.permute.xlu0 %1193
  %1195 = vrot.lane.b32.xlu0 %v454, 12
  %v1196 = vpop.permute.xlu0 %1195
  %1197 = vrot.lane.b32.xlu0 %v455, 12
  %v1198 = vpop.permute.xlu0 %1197
  %1199 = vrot.lane.b32.xlu0 %v456, 12
  %v1200 = vpop.permute.xlu0 %1199
  %1201 = vrot.lane.b32.xlu0 %v457, 12
  %v1202 = vpop.permute.xlu0 %1201
  %1203 = vrot.lane.b32.xlu0 %v458, 12
  %v1204 = vpop.permute.xlu0 %1203
  %1205 = vrot.lane.b32.xlu0 %v459, 12
  %v1206 = vpop.permute.xlu0 %1205
  %1207 = vrot.lane.b32.xlu0 %v460, 12
  %v1208 = vpop.permute.xlu0 %1207
  %1209 = vrot.lane.b32.xlu0 %v461, 12
  %v1210 = vpop.permute.xlu0 %1209
  %1211 = vrot.lane.b32.xlu0 %v462, 12
  %v1212 = vpop.permute.xlu0 %1211
  %1213 = vrot.lane.b32.xlu0 %v463, 12
  %v1214 = vpop.permute.xlu0 %1213
  %1215 = vrot.lane.b32.xlu0 %v464, 12
  %v1216 = vpop.permute.xlu0 %1215
  %v1218 = vshrl.u32 %v448, 16
  %v1220 = vshll.u32 %v448, 16
  %v1222 = vrot.slane %v1220, 1
  %v1223 = vor.u32 %v1218, %v1222
  %v1225 = vshll.u32 %v481, 16
  %v1227 = vrot.slane %v1225, 1
  %v1228 = vsel %vm498, %v1223, %v1227
  %v1230 = vshrl.u32 %v464, 16
  %v1232 = vshll.u32 %v464, 16
  %v1234 = vrot.slane %v1232, 1
  %v1235 = vor.u32 %v1230, %v1234
  %v1237 = vshll.u32 %v497, 16
  %v1239 = vrot.slane %v1237, 1
  %v1240 = vsel %vm498, %v1235, %v1239
  %1241 = vrot.lane.b32.xlu0 %v522, 16
  %v1242 = vpop.permute.xlu0 %1241
  %1243 = vrot.lane.b32.xlu0 %v534, 16
  %v1244 = vpop.permute.xlu0 %1243
  %1245 = vrot.lane.b32.xlu0 %v546, 16
  %v1246 = vpop.permute.xlu0 %1245
  %1247 = vrot.lane.b32.xlu0 %v558, 16
  %v1248 = vpop.permute.xlu0 %1247
  %1249 = vrot.lane.b32.xlu0 %v570, 16
  %v1250 = vpop.permute.xlu0 %1249
  %1251 = vrot.lane.b32.xlu0 %v582, 16
  %v1252 = vpop.permute.xlu0 %1251
  %1253 = vrot.lane.b32.xlu0 %v594, 16
  %v1254 = vpop.permute.xlu0 %1253
  %1255 = vrot.lane.b32.xlu0 %v606, 16
  %v1256 = vpop.permute.xlu0 %1255
  %1257 = vrot.lane.b32.xlu0 %v618, 16
  %v1258 = vpop.permute.xlu0 %1257
  %1259 = vrot.lane.b32.xlu0 %v630, 16
  %v1260 = vpop.permute.xlu0 %1259
  %1261 = vrot.lane.b32.xlu0 %v642, 16
  %v1262 = vpop.permute.xlu0 %1261
  %1263 = vrot.lane.b32.xlu0 %v654, 16
  %v1264 = vpop.permute.xlu0 %1263
  %1265 = vrot.lane.b32.xlu0 %v666, 16
  %v1266 = vpop.permute.xlu0 %1265
  %1267 = vrot.lane.b32.xlu0 %v678, 16
  %v1268 = vpop.permute.xlu0 %1267
  %1269 = vrot.lane.b32.xlu0 %v690, 16
  %v1270 = vpop.permute.xlu0 %1269
  %1271 = vrot.lane.b32.xlu0 %v1228, 16
  %v1272 = vpop.permute.xlu0 %1271
  %1273 = vrot.lane.b32.xlu0 %v702, 16
  %v1274 = vpop.permute.xlu0 %1273
  %1275 = vrot.lane.b32.xlu0 %v714, 16
  %v1276 = vpop.permute.xlu0 %1275
  %1277 = vrot.lane.b32.xlu0 %v726, 16
  %v1278 = vpop.permute.xlu0 %1277
  %1279 = vrot.lane.b32.xlu0 %v738, 16
  %v1280 = vpop.permute.xlu0 %1279
  %1281 = vrot.lane.b32.xlu0 %v750, 16
  %v1282 = vpop.permute.xlu0 %1281
  %1283 = vrot.lane.b32.xlu0 %v762, 16
  %v1284 = vpop.permute.xlu0 %1283
  %1285 = vrot.lane.b32.xlu0 %v774, 16
  %v1286 = vpop.permute.xlu0 %1285
  %1287 = vrot.lane.b32.xlu0 %v786, 16
  %v1288 = vpop.permute.xlu0 %1287
  %1289 = vrot.lane.b32.xlu0 %v798, 16
  %v1290 = vpop.permute.xlu0 %1289
  %1291 = vrot.lane.b32.xlu0 %v810, 16
  %v1292 = vpop.permute.xlu0 %1291
  %1293 = vrot.lane.b32.xlu0 %v822, 16
  %v1294 = vpop.permute.xlu0 %1293
  %1295 = vrot.lane.b32.xlu0 %v834, 16
  %v1296 = vpop.permute.xlu0 %1295
  %1297 = vrot.lane.b32.xlu0 %v846, 16
  %v1298 = vpop.permute.xlu0 %1297
  %1299 = vrot.lane.b32.xlu0 %v858, 16
  %v1300 = vpop.permute.xlu0 %1299
  %1301 = vrot.lane.b32.xlu0 %v870, 16
  %v1302 = vpop.permute.xlu0 %1301
  %1303 = vrot.lane.b32.xlu0 %v1240, 16
  %v1304 = vpop.permute.xlu0 %1303
  %v1307 = vrot.slane %v448, 1
  %v1308 = vrot.slane %v481, 1
  %v1309 = vsel %vm995, %v1307, %v1308
  %v1310 = vrot.slane %v464, 1
  %v1311 = vrot.slane %v497, 1
  %v1312 = vsel %vm995, %v1310, %v1311
  %1313 = vrot.lane.b32.xlu0 %v1001, 20
  %v1314 = vpop.permute.xlu0 %1313
  %1315 = vrot.lane.b32.xlu0 %v1004, 20
  %v1316 = vpop.permute.xlu0 %1315
  %1317 = vrot.lane.b32.xlu0 %v1007, 20
  %v1318 = vpop.permute.xlu0 %1317
  %1319 = vrot.lane.b32.xlu0 %v1010, 20
  %v1320 = vpop.permute.xlu0 %1319
  %1321 = vrot.lane.b32.xlu0 %v1013, 20
  %v1322 = vpop.permute.xlu0 %1321
  %1323 = vrot.lane.b32.xlu0 %v1016, 20
  %v1324 = vpop.permute.xlu0 %1323
  %1325 = vrot.lane.b32.xlu0 %v1019, 20
  %v1326 = vpop.permute.xlu0 %1325
  %1327 = vrot.lane.b32.xlu0 %v1022, 20
  %v1328 = vpop.permute.xlu0 %1327
  %1329 = vrot.lane.b32.xlu0 %v1025, 20
  %v1330 = vpop.permute.xlu0 %1329
  %1331 = vrot.lane.b32.xlu0 %v1028, 20
  %v1332 = vpop.permute.xlu0 %1331
  %1333 = vrot.lane.b32.xlu0 %v1031, 20
  %v1334 = vpop.permute.xlu0 %1333
  %1335 = vrot.lane.b32.xlu0 %v1034, 20
  %v1336 = vpop.permute.xlu0 %1335
  %1337 = vrot.lane.b32.xlu0 %v1037, 20
  %v1338 = vpop.permute.xlu0 %1337
  %1339 = vrot.lane.b32.xlu0 %v1040, 20
  %v1340 = vpop.permute.xlu0 %1339
  %1341 = vrot.lane.b32.xlu0 %v1043, 20
  %v1342 = vpop.permute.xlu0 %1341
  %1343 = vrot.lane.b32.xlu0 %v1309, 20
  %v1344 = vpop.permute.xlu0 %1343
  %1345 = vrot.lane.b32.xlu0 %v1046, 20
  %v1346 = vpop.permute.xlu0 %1345
  %1347 = vrot.lane.b32.xlu0 %v1049, 20
  %v1348 = vpop.permute.xlu0 %1347
  %1349 = vrot.lane.b32.xlu0 %v1052, 20
  %v1350 = vpop.permute.xlu0 %1349
  %1351 = vrot.lane.b32.xlu0 %v1055, 20
  %v1352 = vpop.permute.xlu0 %1351
  %1353 = vrot.lane.b32.xlu0 %v1058, 20
  %v1354 = vpop.permute.xlu0 %1353
  %1355 = vrot.lane.b32.xlu0 %v1061, 20
  %v1356 = vpop.permute.xlu0 %1355
  %1357 = vrot.lane.b32.xlu0 %v1064, 20
  %v1358 = vpop.permute.xlu0 %1357
  %1359 = vrot.lane.b32.xlu0 %v1067, 20
  %v1360 = vpop.permute.xlu0 %1359
  %1361 = vrot.lane.b32.xlu0 %v1070, 20
  %v1362 = vpop.permute.xlu0 %1361
  %1363 = vrot.lane.b32.xlu0 %v1073, 20
  %v1364 = vpop.permute.xlu0 %1363
  %1365 = vrot.lane.b32.xlu0 %v1076, 20
  %v1366 = vpop.permute.xlu0 %1365
  %1367 = vrot.lane.b32.xlu0 %v1079, 20
  %v1368 = vpop.permute.xlu0 %1367
  %1369 = vrot.lane.b32.xlu0 %v1082, 20
  %v1370 = vpop.permute.xlu0 %1369
  %1371 = vrot.lane.b32.xlu0 %v1085, 20
  %v1372 = vpop.permute.xlu0 %1371
  %1373 = vrot.lane.b32.xlu0 %v1088, 20
  %v1374 = vpop.permute.xlu0 %1373
  %1375 = vrot.lane.b32.xlu0 %v1312, 20
  %v1376 = vpop.permute.xlu0 %1375
  %1377 = vrot.lane.b32.xlu0 %v434, 24
  %v1378 = vpop.permute.xlu0 %1377
  %1379 = vrot.lane.b32.xlu0 %v435, 24
  %v1380 = vpop.permute.xlu0 %1379
  %1381 = vrot.lane.b32.xlu0 %v436, 24
  %v1382 = vpop.permute.xlu0 %1381
  %1383 = vrot.lane.b32.xlu0 %v437, 24
  %v1384 = vpop.permute.xlu0 %1383
  %1385 = vrot.lane.b32.xlu0 %v438, 24
  %v1386 = vpop.permute.xlu0 %1385
  %1387 = vrot.lane.b32.xlu0 %v439, 24
  %v1388 = vpop.permute.xlu0 %1387
  %1389 = vrot.lane.b32.xlu0 %v440, 24
  %v1390 = vpop.permute.xlu0 %1389
  %1391 = vrot.lane.b32.xlu0 %v441, 24
  %v1392 = vpop.permute.xlu0 %1391
  %1393 = vrot.lane.b32.xlu0 %v442, 24
  %v1394 = vpop.permute.xlu0 %1393
  %1395 = vrot.lane.b32.xlu0 %v443, 24
  %v1396 = vpop.permute.xlu0 %1395
  %1397 = vrot.lane.b32.xlu0 %v444, 24
  %v1398 = vpop.permute.xlu0 %1397
  %1399 = vrot.lane.b32.xlu0 %v445, 24
  %v1400 = vpop.permute.xlu0 %1399
  %1401 = vrot.lane.b32.xlu0 %v446, 24
  %v1402 = vpop.permute.xlu0 %1401
  %1403 = vrot.lane.b32.xlu0 %v447, 24
  %v1404 = vpop.permute.xlu0 %1403
  %1405 = vrot.lane.b32.xlu0 %v448, 24
  %v1406 = vpop.permute.xlu0 %1405
  %1407 = vrot.lane.b32.xlu0 %v432, 24
  %v1408 = vpop.permute.xlu0 %1407
  %1409 = vrot.lane.b32.xlu0 %v450, 24
  %v1410 = vpop.permute.xlu0 %1409
  %1411 = vrot.lane.b32.xlu0 %v451, 24
  %v1412 = vpop.permute.xlu0 %1411
  %1413 = vrot.lane.b32.xlu0 %v452, 24
  %v1414 = vpop.permute.xlu0 %1413
  %1415 = vrot.lane.b32.xlu0 %v453, 24
  %v1416 = vpop.permute.xlu0 %1415
  %1417 = vrot.lane.b32.xlu0 %v454, 24
  %v1418 = vpop.permute.xlu0 %1417
  %1419 = vrot.lane.b32.xlu0 %v455, 24
  %v1420 = vpop.permute.xlu0 %1419
  %1421 = vrot.lane.b32.xlu0 %v456, 24
  %v1422 = vpop.permute.xlu0 %1421
  %1423 = vrot.lane.b32.xlu0 %v457, 24
  %v1424 = vpop.permute.xlu0 %1423
  %1425 = vrot.lane.b32.xlu0 %v458, 24
  %v1426 = vpop.permute.xlu0 %1425
  %1427 = vrot.lane.b32.xlu0 %v459, 24
  %v1428 = vpop.permute.xlu0 %1427
  %1429 = vrot.lane.b32.xlu0 %v460, 24
  %v1430 = vpop.permute.xlu0 %1429
  %1431 = vrot.lane.b32.xlu0 %v461, 24
  %v1432 = vpop.permute.xlu0 %1431
  %1433 = vrot.lane.b32.xlu0 %v462, 24
  %v1434 = vpop.permute.xlu0 %1433
  %1435 = vrot.lane.b32.xlu0 %v463, 24
  %v1436 = vpop.permute.xlu0 %1435
  %1437 = vrot.lane.b32.xlu0 %v464, 24
  %v1438 = vpop.permute.xlu0 %1437
  %1439 = vrot.lane.b32.xlu0 %v534, 28
  %v1440 = vpop.permute.xlu0 %1439
  %1441 = vrot.lane.b32.xlu0 %v546, 28
  %v1442 = vpop.permute.xlu0 %1441
  %1443 = vrot.lane.b32.xlu0 %v558, 28
  %v1444 = vpop.permute.xlu0 %1443
  %1445 = vrot.lane.b32.xlu0 %v570, 28
  %v1446 = vpop.permute.xlu0 %1445
  %1447 = vrot.lane.b32.xlu0 %v582, 28
  %v1448 = vpop.permute.xlu0 %1447
  %1449 = vrot.lane.b32.xlu0 %v594, 28
  %v1450 = vpop.permute.xlu0 %1449
  %1451 = vrot.lane.b32.xlu0 %v606, 28
  %v1452 = vpop.permute.xlu0 %1451
  %1453 = vrot.lane.b32.xlu0 %v618, 28
  %v1454 = vpop.permute.xlu0 %1453
  %1455 = vrot.lane.b32.xlu0 %v630, 28
  %v1456 = vpop.permute.xlu0 %1455
  %1457 = vrot.lane.b32.xlu0 %v642, 28
  %v1458 = vpop.permute.xlu0 %1457
  %1459 = vrot.lane.b32.xlu0 %v654, 28
  %v1460 = vpop.permute.xlu0 %1459
  %1461 = vrot.lane.b32.xlu0 %v666, 28
  %v1462 = vpop.permute.xlu0 %1461
  %1463 = vrot.lane.b32.xlu0 %v678, 28
  %v1464 = vpop.permute.xlu0 %1463
  %1465 = vrot.lane.b32.xlu0 %v690, 28
  %v1466 = vpop.permute.xlu0 %1465
  %1467 = vrot.lane.b32.xlu0 %v1228, 28
  %v1468 = vpop.permute.xlu0 %1467
  %1469 = vrot.lane.b32.xlu0 %v510, 28
  %v1470 = vpop.permute.xlu0 %1469
  %1471 = vrot.lane.b32.xlu0 %v714, 28
  %v1472 = vpop.permute.xlu0 %1471
  %1473 = vrot.lane.b32.xlu0 %v726, 28
  %v1474 = vpop.permute.xlu0 %1473
  %1475 = vrot.lane.b32.xlu0 %v738, 28
  %v1476 = vpop.permute.xlu0 %1475
  %1477 = vrot.lane.b32.xlu0 %v750, 28
  %v1478 = vpop.permute.xlu0 %1477
  %1479 = vrot.lane.b32.xlu0 %v762, 28
  %v1480 = vpop.permute.xlu0 %1479
  %1481 = vrot.lane.b32.xlu0 %v774, 28
  %v1482 = vpop.permute.xlu0 %1481
  %1483 = vrot.lane.b32.xlu0 %v786, 28
  %v1484 = vpop.permute.xlu0 %1483
  %1485 = vrot.lane.b32.xlu0 %v798, 28
  %v1486 = vpop.permute.xlu0 %1485
  %1487 = vrot.lane.b32.xlu0 %v810, 28
  %v1488 = vpop.permute.xlu0 %1487
  %1489 = vrot.lane.b32.xlu0 %v822, 28
  %v1490 = vpop.permute.xlu0 %1489
  %1491 = vrot.lane.b32.xlu0 %v834, 28
  %v1492 = vpop.permute.xlu0 %1491
  %1493 = vrot.lane.b32.xlu0 %v846, 28
  %v1494 = vpop.permute.xlu0 %1493
  %1495 = vrot.lane.b32.xlu0 %v858, 28
  %v1496 = vpop.permute.xlu0 %1495
  %1497 = vrot.lane.b32.xlu0 %v870, 28
  %v1498 = vpop.permute.xlu0 %1497
  %1499 = vrot.lane.b32.xlu0 %v1240, 28
  %v1500 = vpop.permute.xlu0 %1499
  %1501 = vrot.lane.b32.xlu0 %v1004, 32
  %v1502 = vpop.permute.xlu0 %1501
  %1503 = vrot.lane.b32.xlu0 %v1007, 32
  %v1504 = vpop.permute.xlu0 %1503
  %1505 = vrot.lane.b32.xlu0 %v1010, 32
  %v1506 = vpop.permute.xlu0 %1505
  %1507 = vrot.lane.b32.xlu0 %v1013, 32
  %v1508 = vpop.permute.xlu0 %1507
  %1509 = vrot.lane.b32.xlu0 %v1016, 32
  %v1510 = vpop.permute.xlu0 %1509
  %1511 = vrot.lane.b32.xlu0 %v1019, 32
  %v1512 = vpop.permute.xlu0 %1511
  %1513 = vrot.lane.b32.xlu0 %v1022, 32
  %v1514 = vpop.permute.xlu0 %1513
  %1515 = vrot.lane.b32.xlu0 %v1025, 32
  %v1516 = vpop.permute.xlu0 %1515
  %1517 = vrot.lane.b32.xlu0 %v1028, 32
  %v1518 = vpop.permute.xlu0 %1517
  %1519 = vrot.lane.b32.xlu0 %v1031, 32
  %v1520 = vpop.permute.xlu0 %1519
  %1521 = vrot.lane.b32.xlu0 %v1034, 32
  %v1522 = vpop.permute.xlu0 %1521
  %1523 = vrot.lane.b32.xlu0 %v1037, 32
  %v1524 = vpop.permute.xlu0 %1523
  %1525 = vrot.lane.b32.xlu0 %v1040, 32
  %v1526 = vpop.permute.xlu0 %1525
  %1527 = vrot.lane.b32.xlu0 %v1043, 32
  %v1528 = vpop.permute.xlu0 %1527
  %1529 = vrot.lane.b32.xlu0 %v1309, 32
  %v1530 = vpop.permute.xlu0 %1529
  %1531 = vrot.lane.b32.xlu0 %v998, 32
  %v1532 = vpop.permute.xlu0 %1531
  %1533 = vrot.lane.b32.xlu0 %v1049, 32
  %v1534 = vpop.permute.xlu0 %1533
  %1535 = vrot.lane.b32.xlu0 %v1052, 32
  %v1536 = vpop.permute.xlu0 %1535
  %1537 = vrot.lane.b32.xlu0 %v1055, 32
  %v1538 = vpop.permute.xlu0 %1537
  %1539 = vrot.lane.b32.xlu0 %v1058, 32
  %v1540 = vpop.permute.xlu0 %1539
  %1541 = vrot.lane.b32.xlu0 %v1061, 32
  %v1542 = vpop.permute.xlu0 %1541
  %1543 = vrot.lane.b32.xlu0 %v1064, 32
  %v1544 = vpop.permute.xlu0 %1543
  %1545 = vrot.lane.b32.xlu0 %v1067, 32
  %v1546 = vpop.permute.xlu0 %1545
  %1547 = vrot.lane.b32.xlu0 %v1070, 32
  %v1548 = vpop.permute.xlu0 %1547
  %1549 = vrot.lane.b32.xlu0 %v1073, 32
  %v1550 = vpop.permute.xlu0 %1549
  %1551 = vrot.lane.b32.xlu0 %v1076, 32
  %v1552 = vpop.permute.xlu0 %1551
  %1553 = vrot.lane.b32.xlu0 %v1079, 32
  %v1554 = vpop.permute.xlu0 %1553
  %1555 = vrot.lane.b32.xlu0 %v1082, 32
  %v1556 = vpop.permute.xlu0 %1555
  %1557 = vrot.lane.b32.xlu0 %v1085, 32
  %v1558 = vpop.permute.xlu0 %1557
  %1559 = vrot.lane.b32.xlu0 %v1088, 32
  %v1560 = vpop.permute.xlu0 %1559
  %1561 = vrot.lane.b32.xlu0 %v1312, 32
  %v1562 = vpop.permute.xlu0 %1561
  %vm1563 = vcmask 31744
  %v1565 = vsel %vm1563, %v432, %v872
  %v1567 = vsel %vm1563, %v433, %v874
  %v1569 = vsel %vm1563, %v434, %v876
  %v1571 = vsel %vm1563, %v435, %v878
  %v1573 = vsel %vm1563, %v436, %v880
  %v1575 = vsel %vm1563, %v437, %v882
  %v1577 = vsel %vm1563, %v438, %v884
  %v1579 = vsel %vm1563, %v439, %v886
  %v1581 = vsel %vm1563, %v440, %v888
  %v1583 = vsel %vm1563, %v441, %v890
  %v1585 = vsel %vm1563, %v442, %v892
  %v1587 = vsel %vm1563, %v443, %v894
  %v1589 = vsel %vm1563, %v444, %v896
  %v1591 = vsel %vm1563, %v445, %v898
  %v1593 = vsel %vm1563, %v446, %v900
  %v1595 = vsel %vm1563, %v447, %v902
  %v1597 = vsel %vm1563, %v449, %v904
  %v1599 = vsel %vm1563, %v450, %v906
  %v1601 = vsel %vm1563, %v451, %v908
  %v1603 = vsel %vm1563, %v452, %v910
  %v1605 = vsel %vm1563, %v453, %v912
  %v1607 = vsel %vm1563, %v454, %v914
  %v1609 = vsel %vm1563, %v455, %v916
  %v1611 = vsel %vm1563, %v456, %v918
  %v1613 = vsel %vm1563, %v457, %v920
  %v1615 = vsel %vm1563, %v458, %v922
  %v1617 = vsel %vm1563, %v459, %v924
  %v1619 = vsel %vm1563, %v460, %v926
  %v1621 = vsel %vm1563, %v461, %v928
  %v1623 = vsel %vm1563, %v462, %v930
  %v1625 = vsel %vm1563, %v463, %v932
  %vm1626 = vcmask 64512
  %v1628 = vsel %vm1626, %v1565, %v1090
  %v1630 = vsel %vm1626, %v1567, %v1092
  %v1632 = vsel %vm1626, %v1569, %v1094
  %v1634 = vsel %vm1626, %v1571, %v1096
  %v1636 = vsel %vm1626, %v1573, %v1098
  %v1638 = vsel %vm1626, %v1575, %v1100
  %v1640 = vsel %vm1626, %v1577, %v1102
  %v1642 = vsel %vm1626, %v1579, %v1104
  %v1644 = vsel %vm1626, %v1581, %v1106
  %v1646 = vsel %vm1626, %v1583, %v1108
  %v1648 = vsel %vm1626, %v1585, %v1110
  %v1650 = vsel %vm1626, %v1587, %v1112
  %v1652 = vsel %vm1626, %v1589, %v1114
  %v1654 = vsel %vm1626, %v1591, %v1116
  %v1656 = vsel %vm1626, %v1593, %v1118
  %v1658 = vsel %vm1626, %v1595, %v1120
  %v1660 = vsel %vm1626, %v1597, %v1122
  %v1662 = vsel %vm1626, %v1599, %v1124
  %v1664 = vsel %vm1626, %v1601, %v1126
  %v1666 = vsel %vm1626, %v1603, %v1128
  %v1668 = vsel %vm1626, %v1605, %v1130
  %v1670 = vsel %vm1626, %v1607, %v1132
  %v1672 = vsel %vm1626, %v1609, %v1134
  %v1674 = vsel %vm1626, %v1611, %v1136
  %v1676 = vsel %vm1626, %v1613, %v1138
  %v1678 = vsel %vm1626, %v1615, %v1140
  %v1680 = vsel %vm1626, %v1617, %v1142
  %v1682 = vsel %vm1626, %v1619, %v1144
  %v1684 = vsel %vm1626, %v1621, %v1146
  %v1686 = vsel %vm1626, %v1623, %v1148
  %v1688 = vsel %vm1626, %v1625, %v1150
  %vm1689 = vcmask 97280
  %v1691 = vsel %vm1689, %v1628, %v1154
  %v1693 = vsel %vm1689, %v1630, %v1156
  %v1695 = vsel %vm1689, %v1632, %v1158
  %v1697 = vsel %vm1689, %v1634, %v1160
  %v1699 = vsel %vm1689, %v1636, %v1162
  %v1701 = vsel %vm1689, %v1638, %v1164
  %v1703 = vsel %vm1689, %v1640, %v1166
  %v1705 = vsel %vm1689, %v1642, %v1168
  %v1707 = vsel %vm1689, %v1644, %v1170
  %v1709 = vsel %vm1689, %v1646, %v1172
  %v1711 = vsel %vm1689, %v1648, %v1174
  %v1713 = vsel %vm1689, %v1650, %v1176
  %v1715 = vsel %vm1689, %v1652, %v1178
  %v1717 = vsel %vm1689, %v1654, %v1180
  %v1719 = vsel %vm1689, %v1656, %v1182
  %v1721 = vsel %vm1689, %v1658, %v1184
  %v1723 = vsel %vm1689, %v1628, %v1186
  %v1725 = vsel %vm1689, %v1660, %v1188
  %v1727 = vsel %vm1689, %v1662, %v1190
  %v1729 = vsel %vm1689, %v1664, %v1192
  %v1731 = vsel %vm1689, %v1666, %v1194
  %v1733 = vsel %vm1689, %v1668, %v1196
  %v1735 = vsel %vm1689, %v1670, %v1198
  %v1737 = vsel %vm1689, %v1672, %v1200
  %v1739 = vsel %vm1689, %v1674, %v1202
  %v1741 = vsel %vm1689, %v1676, %v1204
  %v1743 = vsel %vm1689, %v1678, %v1206
  %v1745 = vsel %vm1689, %v1680, %v1208
  %v1747 = vsel %vm1689, %v1682, %v1210
  %v1749 = vsel %vm1689, %v1684, %v1212
  %v1751 = vsel %vm1689, %v1686, %v1214
  %v1753 = vsel %vm1689, %v1688, %v1216
  %vm1754 = vcmask 130048
  %v1756 = vsel %vm1754, %v1691, %v1242
  %v1758 = vsel %vm1754, %v1693, %v1244
  %v1760 = vsel %vm1754, %v1695, %v1246
  %v1762 = vsel %vm1754, %v1697, %v1248
  %v1764 = vsel %vm1754, %v1699, %v1250
  %v1766 = vsel %vm1754, %v1701, %v1252
  %v1768 = vsel %vm1754, %v1703, %v1254
  %v1770 = vsel %vm1754, %v1705, %v1256
  %v1772 = vsel %vm1754, %v1707, %v1258
  %v1774 = vsel %vm1754, %v1709, %v1260
  %v1776 = vsel %vm1754, %v1711, %v1262
  %v1778 = vsel %vm1754, %v1713, %v1264
  %v1780 = vsel %vm1754, %v1715, %v1266
  %v1782 = vsel %vm1754, %v1717, %v1268
  %v1784 = vsel %vm1754, %v1719, %v1270
  %v1786 = vsel %vm1754, %v1721, %v1272
  %v1788 = vsel %vm1754, %v1723, %v1274
  %v1790 = vsel %vm1754, %v1725, %v1276
  %v1792 = vsel %vm1754, %v1727, %v1278
  %v1794 = vsel %vm1754, %v1729, %v1280
  %v1796 = vsel %vm1754, %v1731, %v1282
  %v1798 = vsel %vm1754, %v1733, %v1284
  %v1800 = vsel %vm1754, %v1735, %v1286
  %v1802 = vsel %vm1754, %v1737, %v1288
  %v1804 = vsel %vm1754, %v1739, %v1290
  %v1806 = vsel %vm1754, %v1741, %v1292
  %v1808 = vsel %vm1754, %v1743, %v1294
  %v1810 = vsel %vm1754, %v1745, %v1296
  %v1812 = vsel %vm1754, %v1747, %v1298
  %v1814 = vsel %vm1754, %v1749, %v1300
  %v1816 = vsel %vm1754, %v1751, %v1302
  %v1818 = vsel %vm1754, %v1753, %v1304
  %vm1819 = vcmask 162816
  %v1821 = vsel %vm1819, %v1756, %v1314
  %v1823 = vsel %vm1819, %v1758, %v1316
  %v1825 = vsel %vm1819, %v1760, %v1318
  %v1827 = vsel %vm1819, %v1762, %v1320
  %v1829 = vsel %vm1819, %v1764, %v1322
  %v1831 = vsel %vm1819, %v1766, %v1324
  %v1833 = vsel %vm1819, %v1768, %v1326
  %v1835 = vsel %vm1819, %v1770, %v1328
  %v1837 = vsel %vm1819, %v1772, %v1330
  %v1839 = vsel %vm1819, %v1774, %v1332
  %v1841 = vsel %vm1819, %v1776, %v1334
  %v1843 = vsel %vm1819, %v1778, %v1336
  %v1845 = vsel %vm1819, %v1780, %v1338
  %v1847 = vsel %vm1819, %v1782, %v1340
  %v1849 = vsel %vm1819, %v1784, %v1342
  %v1851 = vsel %vm1819, %v1786, %v1344
  %v1853 = vsel %vm1819, %v1788, %v1346
  %v1855 = vsel %vm1819, %v1790, %v1348
  %v1857 = vsel %vm1819, %v1792, %v1350
  %v1859 = vsel %vm1819, %v1794, %v1352
  %v1861 = vsel %vm1819, %v1796, %v1354
  %v1863 = vsel %vm1819, %v1798, %v1356
  %v1865 = vsel %vm1819, %v1800, %v1358
  %v1867 = vsel %vm1819, %v1802, %v1360
  %v1869 = vsel %vm1819, %v1804, %v1362
  %v1871 = vsel %vm1819, %v1806, %v1364
  %v1873 = vsel %vm1819, %v1808, %v1366
  %v1875 = vsel %vm1819, %v1810, %v1368
  %v1877 = vsel %vm1819, %v1812, %v1370
  %v1879 = vsel %vm1819, %v1814, %v1372
  %v1881 = vsel %vm1819, %v1816, %v1374
  %v1883 = vsel %vm1819, %v1818, %v1376
  %vm1884 = vcmask 195584
  %v1886 = vsel %vm1884, %v1821, %v1378
  %v1888 = vsel %vm1884, %v1823, %v1380
  %v1890 = vsel %vm1884, %v1825, %v1382
  %v1892 = vsel %vm1884, %v1827, %v1384
  %v1894 = vsel %vm1884, %v1829, %v1386
  %v1896 = vsel %vm1884, %v1831, %v1388
  %v1898 = vsel %vm1884, %v1833, %v1390
  %v1900 = vsel %vm1884, %v1835, %v1392
  %v1902 = vsel %vm1884, %v1837, %v1394
  %v1904 = vsel %vm1884, %v1839, %v1396
  %v1906 = vsel %vm1884, %v1841, %v1398
  %v1908 = vsel %vm1884, %v1843, %v1400
  %v1910 = vsel %vm1884, %v1845, %v1402
  %v1912 = vsel %vm1884, %v1847, %v1404
  %v1914 = vsel %vm1884, %v1849, %v1406
  %v1916 = vsel %vm1884, %v1851, %v1408
  %v1918 = vsel %vm1884, %v1853, %v1410
  %v1920 = vsel %vm1884, %v1855, %v1412
  %v1922 = vsel %vm1884, %v1857, %v1414
  %v1924 = vsel %vm1884, %v1859, %v1416
  %v1926 = vsel %vm1884, %v1861, %v1418
  %v1928 = vsel %vm1884, %v1863, %v1420
  %v1930 = vsel %vm1884, %v1865, %v1422
  %v1932 = vsel %vm1884, %v1867, %v1424
  %v1934 = vsel %vm1884, %v1869, %v1426
  %v1936 = vsel %vm1884, %v1871, %v1428
  %v1938 = vsel %vm1884, %v1873, %v1430
  %v1940 = vsel %vm1884, %v1875, %v1432
  %v1942 = vsel %vm1884, %v1877, %v1434
  %v1944 = vsel %vm1884, %v1879, %v1436
  %v1946 = vsel %vm1884, %v1881, %v1438
  %v1947 = vsel %vm1884, %v1883, %v1408
  %vm1948 = vcmask 228352
  %v1950 = vsel %vm1948, %v1886, %v1440
  %v1952 = vsel %vm1948, %v1888, %v1442
  %v1954 = vsel %vm1948, %v1890, %v1444
  %v1956 = vsel %vm1948, %v1892, %v1446
  %v1958 = vsel %vm1948, %v1894, %v1448
  %v1960 = vsel %vm1948, %v1896, %v1450
  %v1962 = vsel %vm1948, %v1898, %v1452
  %v1964 = vsel %vm1948, %v1900, %v1454
  %v1966 = vsel %vm1948, %v1902, %v1456
  %v1968 = vsel %vm1948, %v1904, %v1458
  %v1970 = vsel %vm1948, %v1906, %v1460
  %v1972 = vsel %vm1948, %v1908, %v1462
  %v1974 = vsel %vm1948, %v1910, %v1464
  %v1976 = vsel %vm1948, %v1912, %v1466
  %v1978 = vsel %vm1948, %v1914, %v1468
  %v1980 = vsel %vm1948, %v1916, %v1470
  %v1982 = vsel %vm1948, %v1918, %v1472
  %v1984 = vsel %vm1948, %v1920, %v1474
  %v1986 = vsel %vm1948, %v1922, %v1476
  %v1988 = vsel %vm1948, %v1924, %v1478
  %v1990 = vsel %vm1948, %v1926, %v1480
  %v1992 = vsel %vm1948, %v1928, %v1482
  %v1994 = vsel %vm1948, %v1930, %v1484
  %v1996 = vsel %vm1948, %v1932, %v1486
  %v1998 = vsel %vm1948, %v1934, %v1488
  %v2000 = vsel %vm1948, %v1936, %v1490
  %v2002 = vsel %vm1948, %v1938, %v1492
  %v2004 = vsel %vm1948, %v1940, %v1494
  %v2006 = vsel %vm1948, %v1942, %v1496
  %v2008 = vsel %vm1948, %v1944, %v1498
  %v2010 = vsel %vm1948, %v1946, %v1500
  %v2011 = vsel %vm1948, %v1947, %v1470
  %vm2012 = vcmask 261120
  %v2014 = vsel %vm2012, %v1950, %v1502
  %v2016 = vsel %vm2012, %v1952, %v1504
  %v2018 = vsel %vm2012, %v1954, %v1506
  %v2020 = vsel %vm2012, %v1956, %v1508
  %v2022 = vsel %vm2012, %v1958, %v1510
  %v2024 = vsel %vm2012, %v1960, %v1512
  %v2026 = vsel %vm2012, %v1962, %v1514
  %v2028 = vsel %vm2012, %v1964, %v1516
  %v2030 = vsel %vm2012, %v1966, %v1518
  %v2032 = vsel %vm2012, %v1968, %v1520
  %v2034 = vsel %vm2012, %v1970, %v1522
  %v2036 = vsel %vm2012, %v1972, %v1524
  %v2038 = vsel %vm2012, %v1974, %v1526
  %v2040 = vsel %vm2012, %v1976, %v1528
  %v2042 = vsel %vm2012, %v1978, %v1530
  %v2044 = vsel %vm2012, %v1980, %v1532
  %v2046 = vsel %vm2012, %v1982, %v1534
  %v2048 = vsel %vm2012, %v1984, %v1536
  %v2050 = vsel %vm2012, %v1986, %v1538
  %v2052 = vsel %vm2012, %v1988, %v1540
  %v2054 = vsel %vm2012, %v1990, %v1542
  %v2056 = vsel %vm2012, %v1992, %v1544
  %v2058 = vsel %vm2012, %v1994, %v1546
  %v2060 = vsel %vm2012, %v1996, %v1548
  %v2062 = vsel %vm2012, %v1998, %v1550
  %v2064 = vsel %vm2012, %v2000, %v1552
  %v2066 = vsel %vm2012, %v2002, %v1554
  %v2068 = vsel %vm2012, %v2004, %v1556
  %v2070 = vsel %vm2012, %v2006, %v1558
  %v2072 = vsel %vm2012, %v2008, %v1560
  %v2074 = vsel %vm2012, %v2010, %v1562
  %v2075 = vsel %vm2012, %v2011, %v1532
  %v2076 = vld [vmem:[%s1] sm:$0xf]
  %v2077 = vld [vmem:[%s1 + $0x4] sm:$0xf]
  %v2078 = vld [vmem:[%s1 + $0x8] sm:$0xf]
  %v2079 = vld [vmem:[%s1 + $0xc] sm:$0xf]
  %v2080 = vld [vmem:[%s1 + $0x10] sm:$0x3]
  %v2086 = vunpack.c.l.b16 %v2076
  %v2087 = vunpack.c.l.b16 %v2077
  %v2088 = vunpack.c.l.b16 %v2078
  %v2089 = vunpack.c.l.b16 %v2079
  %v2090 = vunpack.c.l.b16 %v2080
  %v2091 = vpack.c.b16 %v2087, %v2086
  %v2092 = vpack.c.b16 %v2089, %v2088
  %v2093 = vpack.c.b16 %v2090, %v2090
  %vm2096 = vcmask 293888
  %v2097 = vsel %vm2096, %v2014, 0
  %v2099 = vsel %vm2096, %v2016, 0
  %v2101 = vsel %vm2096, %v2018, 0
  %v2103 = vsel %vm2096, %v2020, 0
  %v2105 = vsel %vm2096, %v2022, 0
  %v2107 = vsel %vm2096, %v2024, 0
  %v2109 = vsel %vm2096, %v2026, 0
  %v2111 = vsel %vm2096, %v2028, 0
  %v2113 = vsel %vm2096, %v2030, 0
  %v2115 = vsel %vm2096, %v2032, 0
  %v2117 = vsel %vm2096, %v2034, 0
  %v2119 = vsel %vm2096, %v2036, 0
  %v2121 = vsel %vm2096, %v2038, 0
  %v2123 = vsel %vm2096, %v2040, 0
  %v2125 = vsel %vm2096, %v2042, 0
  %v2127 = vsel %vm2096, %v2044, 0
  %v2129 = vsel %vm2096, %v2046, 0
  %v2131 = vsel %vm2096, %v2048, 0
  %v2133 = vsel %vm2096, %v2050, 0
  %v2135 = vsel %vm2096, %v2052, 0
  %v2137 = vsel %vm2096, %v2054, 0
  %v2139 = vsel %vm2096, %v2056, 0
  %v2141 = vsel %vm2096, %v2058, 0
  %v2143 = vsel %vm2096, %v2060, 0
  %v2145 = vsel %vm2096, %v2062, 0
  %v2147 = vsel %vm2096, %v2064, 0
  %v2149 = vsel %vm2096, %v2066, 0
  %v2151 = vsel %vm2096, %v2068, 0
  %v2153 = vsel %vm2096, %v2070, 0
  %v2155 = vsel %vm2096, %v2072, 0
  %v2157 = vsel %vm2096, %v2074, 0
  %v2159 = vsel %vm2096, %v2075, 0
  %vm2161 = vcmask 1041408
  %v2163 = vsel %vm2161, %v2093, 0
  %2165 = vmatprep.subr.bf16.mxu0 0
  %2166 = vmatpush1.bf16.msra.mxu0 %v2091
  %2167 = vmatprep.subr.bf16.mxu0 0
  %2168 = vmatpush1.bf16.msra.mxu0 %v2092
  %2169 = vmatprep.subr.bf16.mxu0 0
  %2170 = vmatpush1.bf16.msra.mxu0 %v2163
  %2171 = vmatprep.subr.bf16.mxu0 0
  %2172 = vmatpush1.bf16.msra.mxu0 0
  %2173 = vmatprep.subr.bf16.mxu0 0
  %2174 = vmatpush1.bf16.msra.mxu0 0
  %2175 = vmatprep.subr.bf16.mxu0 0
  %2176 = vmatpush1.bf16.msra.mxu0 0
  %2177 = vmatprep.subr.bf16.mxu0 0
  %2178 = vmatpush1.bf16.msra.mxu0 0
  %2179 = vmatprep.subr.bf16.mxu0 0
  %2180 = vmatpush1.bf16.msra.mxu0 0
  %2181 = vmatprep.subr.bf16.mxu0 0
  %2182 = vmatpush1.bf16.msra.mxu0 0
  %2183 = vmatprep.subr.bf16.mxu0 0
  %2184 = vmatpush1.bf16.msra.mxu0 0
  %2185 = vmatprep.subr.bf16.mxu0 0
  %2186 = vmatpush1.bf16.msra.mxu0 0
  %2187 = vmatprep.subr.bf16.mxu0 0
  %2188 = vmatpush1.bf16.msra.mxu0 0
  %2189 = vmatprep.subr.bf16.mxu0 0
  %2190 = vmatpush1.bf16.msra.mxu0 0
  %2191 = vmatprep.subr.bf16.mxu0 0
  %2192 = vmatpush1.bf16.msra.mxu0 0
  %2193 = vmatprep.subr.bf16.mxu0 0
  %2194 = vmatpush1.bf16.msra.mxu0 0
  %2195 = vmatprep.subr.bf16.mxu0 0
  %2196 = vmatpush1.bf16.msra.mxu0 0
  %2197 = vmatprep.mubr.bf16.mxu0 0
  %2198 = vmatmul.mubr.bf16.gmra.mrb[0].mxu0 %v2097
  %v2199 = vpop.f32.mrb[0].mxu0
  %v2200 = vadd.f32 0.0, %v2199
  %v2201 = vpop.f32.mrb[0].mxu0
  %v2202 = vpop.f32.mrb[0].mxu0
  %v2203 = vadd.f32 0.0, %v2202
  %v2204 = vpop.f32.mrb[0].mxu0
  %2205 = vmatprep.mubr.bf16.mxu0 0
  %2206 = vmatmul.mubr.bf16.gmra.mrb[0].mxu0 %v2099
  %v2207 = vpop.f32.mrb[0].mxu0
  %v2208 = vadd.f32 0.0, %v2207
  %v2209 = vpop.f32.mrb[0].mxu0
  %v2210 = vpop.f32.mrb[0].mxu0
  %v2211 = vadd.f32 0.0, %v2210
  %v2212 = vpop.f32.mrb[0].mxu0
  %2213 = vmatprep.mubr.bf16.mxu0 0
  %2214 = vmatmul.mubr.bf16.gmra.mrb[0].mxu0 %v2101
  %v2215 = vpop.f32.mrb[0].mxu0
  %v2216 = vadd.f32 0.0, %v2215
  %v2217 = vpop.f32.mrb[0].mxu0
  %v2218 = vpop.f32.mrb[0].mxu0
  %v2219 = vadd.f32 0.0, %v2218
  %v2220 = vpop.f32.mrb[0].mxu0
  %2221 = vmatprep.mubr.bf16.mxu0 0
  %2222 = vmatmul.mubr.bf16.gmra.mrb[0].mxu0 %v2103
  %v2223 = vpop.f32.mrb[0].mxu0
  %v2224 = vadd.f32 0.0, %v2223
  %v2225 = vpop.f32.mrb[0].mxu0
  %v2226 = vpop.f32.mrb[0].mxu0
  %v2227 = vadd.f32 0.0, %v2226
  %v2228 = vpop.f32.mrb[0].mxu0
  %2229 = vmatprep.mubr.bf16.mxu0 0
  %2230 = vmatmul.mubr.bf16.gmra.mrb[0].mxu0 %v2105
  %v2231 = vpop.f32.mrb[0].mxu0
  %v2232 = vadd.f32 0.0, %v2231
  %v2233 = vpop.f32.mrb[0].mxu0
  %v2234 = vpop.f32.mrb[0].mxu0
  %v2235 = vadd.f32 0.0, %v2234
  %v2236 = vpop.f32.mrb[0].mxu0
  %2237 = vmatprep.mubr.bf16.mxu0 0
  %2238 = vmatmul.mubr.bf16.gmra.mrb[0].mxu0 %v2107
  %v2239 = vpop.f32.mrb[0].mxu0
  %v2240 = vadd.f32 0.0, %v2239
  %v2241 = vpop.f32.mrb[0].mxu0
  %v2242 = vpop.f32.mrb[0].mxu0
  %v2243 = vadd.f32 0.0, %v2242
  %v2244 = vpop.f32.mrb[0].mxu0
  %2245 = vmatprep.mubr.bf16.mxu0 0
  %2246 = vmatmul.mubr.bf16.gmra.mrb[0].mxu0 %v2109
  %v2247 = vpop.f32.mrb[0].mxu0
  %v2248 = vadd.f32 0.0, %v2247
  %v2249 = vpop.f32.mrb[0].mxu0
  %v2250 = vpop.f32.mrb[0].mxu0
  %v2251 = vadd.f32 0.0, %v2250
  %v2252 = vpop.f32.mrb[0].mxu0
  %2253 = vmatprep.mubr.bf16.mxu0 0
  %2254 = vmatmul.mubr.bf16.gmra.mrb[0].mxu0 %v2111
  %v2255 = vpop.f32.mrb[0].mxu0
  %v2256 = vadd.f32 0.0, %v2255
  %v2257 = vpop.f32.mrb[0].mxu0
  %v2258 = vpop.f32.mrb[0].mxu0
  %v2259 = vadd.f32 0.0, %v2258
  %v2260 = vpop.f32.mrb[0].mxu0
  %2261 = vmatprep.mubr.bf16.mxu0 0
  %2262 = vmatmul.mubr.bf16.gmra.mrb[0].mxu0 %v2113
  %v2263 = vpop.f32.mrb[0].mxu0
  %v2264 = vadd.f32 0.0, %v2263
  %v2265 = vpop.f32.mrb[0].mxu0
  %v2266 = vpop.f32.mrb[0].mxu0
  %v2267 = vadd.f32 0.0, %v2266
  %v2268 = vpop.f32.mrb[0].mxu0
  %2269 = vmatprep.mubr.bf16.mxu0 0
  %2270 = vmatmul.mubr.bf16.gmra.mrb[0].mxu0 %v2115
  %v2271 = vpop.f32.mrb[0].mxu0
  %v2272 = vadd.f32 0.0, %v2271
  %v2273 = vpop.f32.mrb[0].mxu0
  %v2274 = vpop.f32.mrb[0].mxu0
  %v2275 = vadd.f32 0.0, %v2274
  %v2276 = vpop.f32.mrb[0].mxu0
  %2277 = vmatprep.mubr.bf16.mxu0 0
  %2278 = vmatmul.mubr.bf16.gmra.mrb[0].mxu0 %v2117
  %v2279 = vpop.f32.mrb[0].mxu0
  %v2280 = vadd.f32 0.0, %v2279
  %v2281 = vpop.f32.mrb[0].mxu0
  %v2282 = vpop.f32.mrb[0].mxu0
  %v2283 = vadd.f32 0.0, %v2282
  %v2284 = vpop.f32.mrb[0].mxu0
  %2285 = vmatprep.mubr.bf16.mxu0 0
  %2286 = vmatmul.mubr.bf16.gmra.mrb[0].mxu0 %v2119
  %v2287 = vpop.f32.mrb[0].mxu0
  %v2288 = vadd.f32 0.0, %v2287
  %v2289 = vpop.f32.mrb[0].mxu0
  %v2290 = vpop.f32.mrb[0].mxu0
  %v2291 = vadd.f32 0.0, %v2290
  %v2292 = vpop.f32.mrb[0].mxu0
  %2293 = vmatprep.mubr.bf16.mxu0 0
  %2294 = vmatmul.mubr.bf16.gmra.mrb[0].mxu0 %v2121
  %v2295 = vpop.f32.mrb[0].mxu0
  %v2296 = vadd.f32 0.0, %v2295
  %v2297 = vpop.f32.mrb[0].mxu0
  %v2298 = vpop.f32.mrb[0].mxu0
  %v2299 = vadd.f32 0.0, %v2298
  %v2300 = vpop.f32.mrb[0].mxu0
  %2301 = vmatprep.mubr.bf16.mxu0 0
  %2302 = vmatmul.mubr.bf16.gmra.mrb[0].mxu0 %v2123
  %v2303 = vpop.f32.mrb[0].mxu0
  %v2304 = vadd.f32 0.0, %v2303
  %v2305 = vpop.f32.mrb[0].mxu0
  %v2306 = vpop.f32.mrb[0].mxu0
  %v2307 = vadd.f32 0.0, %v2306
  %v2308 = vpop.f32.mrb[0].mxu0
  %2309 = vmatprep.mubr.bf16.mxu0 0
  %2310 = vmatmul.mubr.bf16.gmra.mrb[0].mxu0 %v2125
  %v2311 = vpop.f32.mrb[0].mxu0
  %v2312 = vadd.f32 0.0, %v2311
  %v2313 = vpop.f32.mrb[0].mxu0
  %v2314 = vpop.f32.mrb[0].mxu0
  %v2315 = vadd.f32 0.0, %v2314
  %v2316 = vpop.f32.mrb[0].mxu0
  %2317 = vmatprep.mubr.bf16.mxu0 0
  %2318 = vmatmul.mubr.bf16.gmra.mrb[0].mxu0 %v2127
  %v2319 = vpop.f32.mrb[0].mxu0
  %v2320 = vadd.f32 0.0, %v2319
  %v2321 = vpop.f32.mrb[0].mxu0
  %v2322 = vpop.f32.mrb[0].mxu0
  %v2323 = vadd.f32 0.0, %v2322
  %v2324 = vpop.f32.mrb[0].mxu0
  %2325 = vmatprep.mubr.bf16.mxu0 0
  %2326 = vmatmul.mubr.bf16.gmra.mrb[0].mxu0 %v2129
  %v2327 = vpop.f32.mrb[0].mxu0
  %v2328 = vadd.f32 0.0, %v2327
  %v2329 = vpop.f32.mrb[0].mxu0
  %v2330 = vpop.f32.mrb[0].mxu0
  %v2331 = vadd.f32 0.0, %v2330
  %v2332 = vpop.f32.mrb[0].mxu0
  %2333 = vmatprep.mubr.bf16.mxu0 0
  %2334 = vmatmul.mubr.bf16.gmra.mrb[0].mxu0 %v2131
  %v2335 = vpop.f32.mrb[0].mxu0
  %v2336 = vadd.f32 0.0, %v2335
  %v2337 = vpop.f32.mrb[0].mxu0
  %v2338 = vpop.f32.mrb[0].mxu0
  %v2339 = vadd.f32 0.0, %v2338
  %v2340 = vpop.f32.mrb[0].mxu0
  %2341 = vmatprep.mubr.bf16.mxu0 0
  %2342 = vmatmul.mubr.bf16.gmra.mrb[0].mxu0 %v2133
  %v2343 = vpop.f32.mrb[0].mxu0
  %v2344 = vadd.f32 0.0, %v2343
  %v2345 = vpop.f32.mrb[0].mxu0
  %v2346 = vpop.f32.mrb[0].mxu0
  %v2347 = vadd.f32 0.0, %v2346
  %v2348 = vpop.f32.mrb[0].mxu0
  %2349 = vmatprep.mubr.bf16.mxu0 0
  %2350 = vmatmul.mubr.bf16.gmra.mrb[0].mxu0 %v2135
  %v2351 = vpop.f32.mrb[0].mxu0
  %v2352 = vadd.f32 0.0, %v2351
  %v2353 = vpop.f32.mrb[0].mxu0
  %v2354 = vpop.f32.mrb[0].mxu0
  %v2355 = vadd.f32 0.0, %v2354
  %v2356 = vpop.f32.mrb[0].mxu0
  %2357 = vmatprep.mubr.bf16.mxu0 0
  %2358 = vmatmul.mubr.bf16.gmra.mrb[0].mxu0 %v2137
  %v2359 = vpop.f32.mrb[0].mxu0
  %v2360 = vadd.f32 0.0, %v2359
  %v2361 = vpop.f32.mrb[0].mxu0
  %v2362 = vpop.f32.mrb[0].mxu0
  %v2363 = vadd.f32 0.0, %v2362
  %v2364 = vpop.f32.mrb[0].mxu0
  %2365 = vmatprep.mubr.bf16.mxu0 0
  %2366 = vmatmul.mubr.bf16.gmra.mrb[0].mxu0 %v2139
  %v2367 = vpop.f32.mrb[0].mxu0
  %v2368 = vadd.f32 0.0, %v2367
  %v2369 = vpop.f32.mrb[0].mxu0
  %v2370 = vpop.f32.mrb[0].mxu0
  %v2371 = vadd.f32 0.0, %v2370
  %v2372 = vpop.f32.mrb[0].mxu0
  %2373 = vmatprep.mubr.bf16.mxu0 0
  %2374 = vmatmul.mubr.bf16.gmra.mrb[0].mxu0 %v2141
  %v2375 = vpop.f32.mrb[0].mxu0
  %v2376 = vadd.f32 0.0, %v2375
  %v2377 = vpop.f32.mrb[0].mxu0
  %v2378 = vpop.f32.mrb[0].mxu0
  %v2379 = vadd.f32 0.0, %v2378
  %v2380 = vpop.f32.mrb[0].mxu0
  %2381 = vmatprep.mubr.bf16.mxu0 0
  %2382 = vmatmul.mubr.bf16.gmra.mrb[0].mxu0 %v2143
  %v2383 = vpop.f32.mrb[0].mxu0
  %v2384 = vadd.f32 0.0, %v2383
  %v2385 = vpop.f32.mrb[0].mxu0
  %v2386 = vpop.f32.mrb[0].mxu0
  %v2387 = vadd.f32 0.0, %v2386
  %v2388 = vpop.f32.mrb[0].mxu0
  %2389 = vmatprep.mubr.bf16.mxu0 0
  %2390 = vmatmul.mubr.bf16.gmra.mrb[0].mxu0 %v2145
  %v2391 = vpop.f32.mrb[0].mxu0
  %v2392 = vadd.f32 0.0, %v2391
  %v2393 = vpop.f32.mrb[0].mxu0
  %v2394 = vpop.f32.mrb[0].mxu0
  %v2395 = vadd.f32 0.0, %v2394
  %v2396 = vpop.f32.mrb[0].mxu0
  %2397 = vmatprep.mubr.bf16.mxu0 0
  %2398 = vmatmul.mubr.bf16.gmra.mrb[0].mxu0 %v2147
  %v2399 = vpop.f32.mrb[0].mxu0
  %v2400 = vadd.f32 0.0, %v2399
  %v2401 = vpop.f32.mrb[0].mxu0
  %v2402 = vpop.f32.mrb[0].mxu0
  %v2403 = vadd.f32 0.0, %v2402
  %v2404 = vpop.f32.mrb[0].mxu0
  %2405 = vmatprep.mubr.bf16.mxu0 0
  %2406 = vmatmul.mubr.bf16.gmra.mrb[0].mxu0 %v2149
  %v2407 = vpop.f32.mrb[0].mxu0
  %v2408 = vadd.f32 0.0, %v2407
  %v2409 = vpop.f32.mrb[0].mxu0
  %v2410 = vpop.f32.mrb[0].mxu0
  %v2411 = vadd.f32 0.0, %v2410
  %v2412 = vpop.f32.mrb[0].mxu0
  %2413 = vmatprep.mubr.bf16.mxu0 0
  %2414 = vmatmul.mubr.bf16.gmra.mrb[0].mxu0 %v2151
  %v2415 = vpop.f32.mrb[0].mxu0
  %v2416 = vadd.f32 0.0, %v2415
  %v2417 = vpop.f32.mrb[0].mxu0
  %v2418 = vpop.f32.mrb[0].mxu0
  %v2419 = vadd.f32 0.0, %v2418
  %v2420 = vpop.f32.mrb[0].mxu0
  %2421 = vmatprep.mubr.bf16.mxu0 0
  %2422 = vmatmul.mubr.bf16.gmra.mrb[0].mxu0 %v2153
  %v2423 = vpop.f32.mrb[0].mxu0
  %v2424 = vadd.f32 0.0, %v2423
  %v2425 = vpop.f32.mrb[0].mxu0
  %v2426 = vpop.f32.mrb[0].mxu0
  %v2427 = vadd.f32 0.0, %v2426
  %v2428 = vpop.f32.mrb[0].mxu0
  %2429 = vmatprep.mubr.bf16.mxu0 0
  %2430 = vmatmul.mubr.bf16.gmra.mrb[0].mxu0 %v2155
  %v2431 = vpop.f32.mrb[0].mxu0
  %v2432 = vadd.f32 0.0, %v2431
  %v2433 = vpop.f32.mrb[0].mxu0
  %v2434 = vpop.f32.mrb[0].mxu0
  %v2435 = vadd.f32 0.0, %v2434
  %v2436 = vpop.f32.mrb[0].mxu0
  %2437 = vmatprep.mubr.bf16.mxu0 0
  %2438 = vmatmul.mubr.bf16.gmra.mrb[0].mxu0 %v2157
  %v2439 = vpop.f32.mrb[0].mxu0
  %v2440 = vadd.f32 0.0, %v2439
  %v2441 = vpop.f32.mrb[0].mxu0
  %v2442 = vpop.f32.mrb[0].mxu0
  %v2443 = vadd.f32 0.0, %v2442
  %v2444 = vpop.f32.mrb[0].mxu0
  %2445 = vmatprep.mubr.bf16.mxu0 0
  %2446 = vmatmul.mubr.bf16.gmra.mrb[0].mxu0 %v2159
  %v2447 = vpop.f32.mrb[0].mxu0
  %v2448 = vadd.f32 0.0, %v2447
  %v2449 = vpop.f32.mrb[0].mxu0
  %v2450 = vpop.f32.mrb[0].mxu0
  %v2451 = vadd.f32 0.0, %v2450
  %v2452 = vpop.f32.mrb[0].mxu0
  %2453 = vdwg.mxu0
  %v2454 = vld [vmem:[%s2] sm:$0x1]
  %v2455 = vld [vmem:[%s3] sm:$0x1]
  %v2456 = vsel %vm1626, %v2200, 0.0
  %v2457 = vsel %vm1626, %v2203, 0.0
  %v2458 = vadd.f32 %v2456, %v2457
  %v2459 = vsel %vm1626, %v2208, 0.0
  %v2460 = vadd.f32 %v2458, %v2459
  %v2461 = vsel %vm1626, %v2211, 0.0
  %v2462 = vadd.f32 %v2460, %v2461
  %v2463 = vsel %vm1626, %v2216, 0.0
  %v2464 = vadd.f32 %v2462, %v2463
  %v2465 = vsel %vm1626, %v2219, 0.0
  %v2466 = vadd.f32 %v2464, %v2465
  %v2467 = vsel %vm1626, %v2224, 0.0
  %v2468 = vadd.f32 %v2466, %v2467
  %v2469 = vsel %vm1626, %v2227, 0.0
  %v2470 = vadd.f32 %v2468, %v2469
  %v2471 = vsel %vm1626, %v2232, 0.0
  %v2472 = vadd.f32 %v2470, %v2471
  %v2473 = vsel %vm1626, %v2235, 0.0
  %v2474 = vadd.f32 %v2472, %v2473
  %v2475 = vsel %vm1626, %v2240, 0.0
  %v2476 = vadd.f32 %v2474, %v2475
  %v2477 = vsel %vm1626, %v2243, 0.0
  %v2478 = vadd.f32 %v2476, %v2477
  %v2479 = vsel %vm1626, %v2248, 0.0
  %v2480 = vadd.f32 %v2478, %v2479
  %v2481 = vsel %vm1626, %v2251, 0.0
  %v2482 = vadd.f32 %v2480, %v2481
  %v2483 = vsel %vm1626, %v2256, 0.0
  %v2484 = vadd.f32 %v2482, %v2483
  %v2485 = vsel %vm1626, %v2259, 0.0
  %v2486 = vadd.f32 %v2484, %v2485
  %v2487 = vsel %vm1626, %v2264, 0.0
  %v2488 = vadd.f32 %v2486, %v2487
  %v2489 = vsel %vm1626, %v2267, 0.0
  %v2490 = vadd.f32 %v2488, %v2489
  %v2491 = vsel %vm1626, %v2272, 0.0
  %v2492 = vadd.f32 %v2490, %v2491
  %v2493 = vsel %vm1626, %v2275, 0.0
  %v2494 = vadd.f32 %v2492, %v2493
  %v2495 = vsel %vm1626, %v2280, 0.0
  %v2496 = vadd.f32 %v2494, %v2495
  %v2497 = vsel %vm1626, %v2283, 0.0
  %v2498 = vadd.f32 %v2496, %v2497
  %v2499 = vsel %vm1626, %v2288, 0.0
  %v2500 = vadd.f32 %v2498, %v2499
  %v2501 = vsel %vm1626, %v2291, 0.0
  %v2502 = vadd.f32 %v2500, %v2501
  %v2503 = vsel %vm1626, %v2296, 0.0
  %v2504 = vadd.f32 %v2502, %v2503
  %v2505 = vsel %vm1626, %v2299, 0.0
  %v2506 = vadd.f32 %v2504, %v2505
  %v2507 = vsel %vm1626, %v2304, 0.0
  %v2508 = vadd.f32 %v2506, %v2507
  %v2509 = vsel %vm1626, %v2307, 0.0
  %v2510 = vadd.f32 %v2508, %v2509
  %v2511 = vsel %vm1626, %v2312, 0.0
  %v2512 = vadd.f32 %v2510, %v2511
  %v2513 = vsel %vm1626, %v2315, 0.0
  %v2514 = vadd.f32 %v2512, %v2513
  %v2515 = vsel %vm1626, %v2320, 0.0
  %v2516 = vadd.f32 %v2514, %v2515
  %v2517 = vsel %vm1626, %v2323, 0.0
  %v2518 = vadd.f32 %v2516, %v2517
  %v2519 = vsel %vm1626, %v2328, 0.0
  %v2520 = vadd.f32 %v2518, %v2519
  %v2521 = vsel %vm1626, %v2331, 0.0
  %v2522 = vadd.f32 %v2520, %v2521
  %v2523 = vsel %vm1626, %v2336, 0.0
  %v2524 = vadd.f32 %v2522, %v2523
  %v2525 = vsel %vm1626, %v2339, 0.0
  %v2526 = vadd.f32 %v2524, %v2525
  %v2527 = vsel %vm1626, %v2344, 0.0
  %v2528 = vadd.f32 %v2526, %v2527
  %v2529 = vsel %vm1626, %v2347, 0.0
  %v2530 = vadd.f32 %v2528, %v2529
  %v2531 = vsel %vm1626, %v2352, 0.0
  %v2532 = vadd.f32 %v2530, %v2531
  %v2533 = vsel %vm1626, %v2355, 0.0
  %v2534 = vadd.f32 %v2532, %v2533
  %v2535 = vsel %vm1626, %v2360, 0.0
  %v2536 = vadd.f32 %v2534, %v2535
  %v2537 = vsel %vm1626, %v2363, 0.0
  %v2538 = vadd.f32 %v2536, %v2537
  %v2539 = vsel %vm1626, %v2368, 0.0
  %v2540 = vadd.f32 %v2538, %v2539
  %v2541 = vsel %vm1626, %v2371, 0.0
  %v2542 = vadd.f32 %v2540, %v2541
  %v2543 = vsel %vm1626, %v2376, 0.0
  %v2544 = vadd.f32 %v2542, %v2543
  %v2545 = vsel %vm1626, %v2379, 0.0
  %v2546 = vadd.f32 %v2544, %v2545
  %v2547 = vsel %vm1626, %v2384, 0.0
  %v2548 = vadd.f32 %v2546, %v2547
  %v2549 = vsel %vm1626, %v2387, 0.0
  %v2550 = vadd.f32 %v2548, %v2549
  %v2551 = vsel %vm1626, %v2392, 0.0
  %v2552 = vadd.f32 %v2550, %v2551
  %v2553 = vsel %vm1626, %v2395, 0.0
  %v2554 = vadd.f32 %v2552, %v2553
  %v2555 = vsel %vm1626, %v2400, 0.0
  %v2556 = vadd.f32 %v2554, %v2555
  %v2557 = vsel %vm1626, %v2403, 0.0
  %v2558 = vadd.f32 %v2556, %v2557
  %v2559 = vsel %vm1626, %v2408, 0.0
  %v2560 = vadd.f32 %v2558, %v2559
  %v2561 = vsel %vm1626, %v2411, 0.0
  %v2562 = vadd.f32 %v2560, %v2561
  %v2563 = vsel %vm1626, %v2416, 0.0
  %v2564 = vadd.f32 %v2562, %v2563
  %v2565 = vsel %vm1626, %v2419, 0.0
  %v2566 = vadd.f32 %v2564, %v2565
  %v2567 = vsel %vm1626, %v2424, 0.0
  %v2568 = vadd.f32 %v2566, %v2567
  %v2569 = vsel %vm1626, %v2427, 0.0
  %v2570 = vadd.f32 %v2568, %v2569
  %v2571 = vsel %vm1626, %v2432, 0.0
  %v2572 = vadd.f32 %v2570, %v2571
  %v2573 = vsel %vm1626, %v2435, 0.0
  %v2574 = vadd.f32 %v2572, %v2573
  %v2575 = vsel %vm1626, %v2440, 0.0
  %v2576 = vadd.f32 %v2574, %v2575
  %v2577 = vsel %vm1626, %v2443, 0.0
  %v2578 = vadd.f32 %v2576, %v2577
  %v2579 = vsel %vm1626, %v2448, 0.0
  %v2580 = vadd.f32 %v2578, %v2579
  %v2581 = vsel %vm1626, %v2451, 0.0
  %v2582 = vadd.f32 %v2580, %v2581
  %v2583 = vrot.slane %v2582, 4
  %v2584 = vadd.f32 %v2582, %v2583
  %v2585 = vrot.slane %v2584, 2
  %v2586 = vadd.f32 %v2584, %v2585
  %v2587 = vrot.slane %v2586, 1
  %v2588 = vadd.f32 %v2586, %v2587
  %v2589 = vmul.f32 %v2588, 0.001953125
  %v2590 = vmul.f32 %v2200, %v2200
  %v2591 = vmul.f32 %v2203, %v2203
  %v2592 = vmul.f32 %v2208, %v2208
  %v2593 = vmul.f32 %v2211, %v2211
  %v2594 = vmul.f32 %v2216, %v2216
  %v2595 = vmul.f32 %v2219, %v2219
  %v2596 = vmul.f32 %v2224, %v2224
  %v2597 = vmul.f32 %v2227, %v2227
  %v2598 = vmul.f32 %v2232, %v2232
  %v2599 = vmul.f32 %v2235, %v2235
  %v2600 = vmul.f32 %v2240, %v2240
  %v2601 = vmul.f32 %v2243, %v2243
  %v2602 = vmul.f32 %v2248, %v2248
  %v2603 = vmul.f32 %v2251, %v2251
  %v2604 = vmul.f32 %v2256, %v2256
  %v2605 = vmul.f32 %v2259, %v2259
  %v2606 = vmul.f32 %v2264, %v2264
  %v2607 = vmul.f32 %v2267, %v2267
  %v2608 = vmul.f32 %v2272, %v2272
  %v2609 = vmul.f32 %v2275, %v2275
  %v2610 = vmul.f32 %v2280, %v2280
  %v2611 = vmul.f32 %v2283, %v2283
  %v2612 = vmul.f32 %v2288, %v2288
  %v2613 = vmul.f32 %v2291, %v2291
  %v2614 = vmul.f32 %v2296, %v2296
  %v2615 = vmul.f32 %v2299, %v2299
  %v2616 = vmul.f32 %v2304, %v2304
  %v2617 = vmul.f32 %v2307, %v2307
  %v2618 = vmul.f32 %v2312, %v2312
  %v2619 = vmul.f32 %v2315, %v2315
  %v2620 = vmul.f32 %v2320, %v2320
  %v2621 = vmul.f32 %v2323, %v2323
  %v2622 = vmul.f32 %v2328, %v2328
  %v2623 = vmul.f32 %v2331, %v2331
  %v2624 = vmul.f32 %v2336, %v2336
  %v2625 = vmul.f32 %v2339, %v2339
  %v2626 = vmul.f32 %v2344, %v2344
  %v2627 = vmul.f32 %v2347, %v2347
  %v2628 = vmul.f32 %v2352, %v2352
  %v2629 = vmul.f32 %v2355, %v2355
  %v2630 = vmul.f32 %v2360, %v2360
  %v2631 = vmul.f32 %v2363, %v2363
  %v2632 = vmul.f32 %v2368, %v2368
  %v2633 = vmul.f32 %v2371, %v2371
  %v2634 = vmul.f32 %v2376, %v2376
  %v2635 = vmul.f32 %v2379, %v2379
  %v2636 = vmul.f32 %v2384, %v2384
  %v2637 = vmul.f32 %v2387, %v2387
  %v2638 = vmul.f32 %v2392, %v2392
  %v2639 = vmul.f32 %v2395, %v2395
  %v2640 = vmul.f32 %v2400, %v2400
  %v2641 = vmul.f32 %v2403, %v2403
  %v2642 = vmul.f32 %v2408, %v2408
  %v2643 = vmul.f32 %v2411, %v2411
  %v2644 = vmul.f32 %v2416, %v2416
  %v2645 = vmul.f32 %v2419, %v2419
  %v2646 = vmul.f32 %v2424, %v2424
  %v2647 = vmul.f32 %v2427, %v2427
  %v2648 = vmul.f32 %v2432, %v2432
  %v2649 = vmul.f32 %v2435, %v2435
  %v2650 = vmul.f32 %v2440, %v2440
  %v2651 = vmul.f32 %v2443, %v2443
  %v2652 = vmul.f32 %v2448, %v2448
  %v2653 = vmul.f32 %v2451, %v2451
  %v2654 = vsel %vm1626, %v2590, 0.0
  %v2655 = vsel %vm1626, %v2591, 0.0
  %v2656 = vadd.f32 %v2654, %v2655
  %v2657 = vsel %vm1626, %v2592, 0.0
  %v2658 = vadd.f32 %v2656, %v2657
  %v2659 = vsel %vm1626, %v2593, 0.0
  %v2660 = vadd.f32 %v2658, %v2659
  %v2661 = vsel %vm1626, %v2594, 0.0
  %v2662 = vadd.f32 %v2660, %v2661
  %v2663 = vsel %vm1626, %v2595, 0.0
  %v2664 = vadd.f32 %v2662, %v2663
  %v2665 = vsel %vm1626, %v2596, 0.0
  %v2666 = vadd.f32 %v2664, %v2665
  %v2667 = vsel %vm1626, %v2597, 0.0
  %v2668 = vadd.f32 %v2666, %v2667
  %v2669 = vsel %vm1626, %v2598, 0.0
  %v2670 = vadd.f32 %v2668, %v2669
  %v2671 = vsel %vm1626, %v2599, 0.0
  %v2672 = vadd.f32 %v2670, %v2671
  %v2673 = vsel %vm1626, %v2600, 0.0
  %v2674 = vadd.f32 %v2672, %v2673
  %v2675 = vsel %vm1626, %v2601, 0.0
  %v2676 = vadd.f32 %v2674, %v2675
  %v2677 = vsel %vm1626, %v2602, 0.0
  %v2678 = vadd.f32 %v2676, %v2677
  %v2679 = vsel %vm1626, %v2603, 0.0
  %v2680 = vadd.f32 %v2678, %v2679
  %v2681 = vsel %vm1626, %v2604, 0.0
  %v2682 = vadd.f32 %v2680, %v2681
  %v2683 = vsel %vm1626, %v2605, 0.0
  %v2684 = vadd.f32 %v2682, %v2683
  %v2685 = vsel %vm1626, %v2606, 0.0
  %v2686 = vadd.f32 %v2684, %v2685
  %v2687 = vsel %vm1626, %v2607, 0.0
  %v2688 = vadd.f32 %v2686, %v2687
  %v2689 = vsel %vm1626, %v2608, 0.0
  %v2690 = vadd.f32 %v2688, %v2689
  %v2691 = vsel %vm1626, %v2609, 0.0
  %v2692 = vadd.f32 %v2690, %v2691
  %v2693 = vsel %vm1626, %v2610, 0.0
  %v2694 = vadd.f32 %v2692, %v2693
  %v2695 = vsel %vm1626, %v2611, 0.0
  %v2696 = vadd.f32 %v2694, %v2695
  %v2697 = vsel %vm1626, %v2612, 0.0
  %v2698 = vadd.f32 %v2696, %v2697
  %v2699 = vsel %vm1626, %v2613, 0.0
  %v2700 = vadd.f32 %v2698, %v2699
  %v2701 = vsel %vm1626, %v2614, 0.0
  %v2702 = vadd.f32 %v2700, %v2701
  %v2703 = vsel %vm1626, %v2615, 0.0
  %v2704 = vadd.f32 %v2702, %v2703
  %v2705 = vsel %vm1626, %v2616, 0.0
  %v2706 = vadd.f32 %v2704, %v2705
  %v2707 = vsel %vm1626, %v2617, 0.0
  %v2708 = vadd.f32 %v2706, %v2707
  %v2709 = vsel %vm1626, %v2618, 0.0
  %v2710 = vadd.f32 %v2708, %v2709
  %v2711 = vsel %vm1626, %v2619, 0.0
  %v2712 = vadd.f32 %v2710, %v2711
  %v2713 = vsel %vm1626, %v2620, 0.0
  %v2714 = vadd.f32 %v2712, %v2713
  %v2715 = vsel %vm1626, %v2621, 0.0
  %v2716 = vadd.f32 %v2714, %v2715
  %v2717 = vsel %vm1626, %v2622, 0.0
  %v2718 = vadd.f32 %v2716, %v2717
  %v2719 = vsel %vm1626, %v2623, 0.0
  %v2720 = vadd.f32 %v2718, %v2719
  %v2721 = vsel %vm1626, %v2624, 0.0
  %v2722 = vadd.f32 %v2720, %v2721
  %v2723 = vsel %vm1626, %v2625, 0.0
  %v2724 = vadd.f32 %v2722, %v2723
  %v2725 = vsel %vm1626, %v2626, 0.0
  %v2726 = vadd.f32 %v2724, %v2725
  %v2727 = vsel %vm1626, %v2627, 0.0
  %v2728 = vadd.f32 %v2726, %v2727
  %v2729 = vsel %vm1626, %v2628, 0.0
  %v2730 = vadd.f32 %v2728, %v2729
  %v2731 = vsel %vm1626, %v2629, 0.0
  %v2732 = vadd.f32 %v2730, %v2731
  %v2733 = vsel %vm1626, %v2630, 0.0
  %v2734 = vadd.f32 %v2732, %v2733
  %v2735 = vsel %vm1626, %v2631, 0.0
  %v2736 = vadd.f32 %v2734, %v2735
  %v2737 = vsel %vm1626, %v2632, 0.0
  %v2738 = vadd.f32 %v2736, %v2737
  %v2739 = vsel %vm1626, %v2633, 0.0
  %v2740 = vadd.f32 %v2738, %v2739
  %v2741 = vsel %vm1626, %v2634, 0.0
  %v2742 = vadd.f32 %v2740, %v2741
  %v2743 = vsel %vm1626, %v2635, 0.0
  %v2744 = vadd.f32 %v2742, %v2743
  %v2745 = vsel %vm1626, %v2636, 0.0
  %v2746 = vadd.f32 %v2744, %v2745
  %v2747 = vsel %vm1626, %v2637, 0.0
  %v2748 = vadd.f32 %v2746, %v2747
  %v2749 = vsel %vm1626, %v2638, 0.0
  %v2750 = vadd.f32 %v2748, %v2749
  %v2751 = vsel %vm1626, %v2639, 0.0
  %v2752 = vadd.f32 %v2750, %v2751
  %v2753 = vsel %vm1626, %v2640, 0.0
  %v2754 = vadd.f32 %v2752, %v2753
  %v2755 = vsel %vm1626, %v2641, 0.0
  %v2756 = vadd.f32 %v2754, %v2755
  %v2757 = vsel %vm1626, %v2642, 0.0
  %v2758 = vadd.f32 %v2756, %v2757
  %v2759 = vsel %vm1626, %v2643, 0.0
  %v2760 = vadd.f32 %v2758, %v2759
  %v2761 = vsel %vm1626, %v2644, 0.0
  %v2762 = vadd.f32 %v2760, %v2761
  %v2763 = vsel %vm1626, %v2645, 0.0
  %v2764 = vadd.f32 %v2762, %v2763
  %v2765 = vsel %vm1626, %v2646, 0.0
  %v2766 = vadd.f32 %v2764, %v2765
  %v2767 = vsel %vm1626, %v2647, 0.0
  %v2768 = vadd.f32 %v2766, %v2767
  %v2769 = vsel %vm1626, %v2648, 0.0
  %v2770 = vadd.f32 %v2768, %v2769
  %v2771 = vsel %vm1626, %v2649, 0.0
  %v2772 = vadd.f32 %v2770, %v2771
  %v2773 = vsel %vm1626, %v2650, 0.0
  %v2774 = vadd.f32 %v2772, %v2773
  %v2775 = vsel %vm1626, %v2651, 0.0
  %v2776 = vadd.f32 %v2774, %v2775
  %v2777 = vsel %vm1626, %v2652, 0.0
  %v2778 = vadd.f32 %v2776, %v2777
  %v2779 = vsel %vm1626, %v2653, 0.0
  %v2780 = vadd.f32 %v2778, %v2779
  %v2781 = vrot.slane %v2780, 4
  %v2782 = vadd.f32 %v2780, %v2781
  %v2783 = vrot.slane %v2782, 2
  %v2784 = vadd.f32 %v2782, %v2783
  %v2785 = vrot.slane %v2784, 1
  %v2786 = vadd.f32 %v2784, %v2785
  %v2787 = vmul.f32 %v2786, 0.001953125
  %v2788 = vmul.f32 %v2589, %v2589
  %v2789 = vsub.f32 %v2787, %v2788
  %v2790 = vadd.f32 %v2789, 1e-05
  %v2791 = vrsqrt.pop %v2790
  %v2792 = vmul.f32 %v2454, %v2791
  %v2794 = vlaneseq
  %v2795 = vshrl.u32 %v2794, 7
  %v2796 = vsub.s32 0, %v2795
  %v2797 = vrot.slane %v2792, %v2796
  %v2799 = vmul.f32 %v2200, %v2797
  %v2800 = vmul.f32 %v2203, %v2797
  %v2801 = vmul.f32 %v2208, %v2797
  %v2802 = vmul.f32 %v2211, %v2797
  %v2803 = vmul.f32 %v2216, %v2797
  %v2804 = vmul.f32 %v2219, %v2797
  %v2805 = vmul.f32 %v2224, %v2797
  %v2806 = vmul.f32 %v2227, %v2797
  %v2807 = vmul.f32 %v2232, %v2797
  %v2808 = vmul.f32 %v2235, %v2797
  %v2809 = vmul.f32 %v2240, %v2797
  %v2810 = vmul.f32 %v2243, %v2797
  %v2811 = vmul.f32 %v2248, %v2797
  %v2812 = vmul.f32 %v2251, %v2797
  %v2813 = vmul.f32 %v2256, %v2797
  %v2814 = vmul.f32 %v2259, %v2797
  %v2815 = vmul.f32 %v2264, %v2797
  %v2816 = vmul.f32 %v2267, %v2797
  %v2817 = vmul.f32 %v2272, %v2797
  %v2818 = vmul.f32 %v2275, %v2797
  %v2819 = vmul.f32 %v2280, %v2797
  %v2820 = vmul.f32 %v2283, %v2797
  %v2821 = vmul.f32 %v2288, %v2797
  %v2822 = vmul.f32 %v2291, %v2797
  %v2823 = vmul.f32 %v2296, %v2797
  %v2824 = vmul.f32 %v2299, %v2797
  %v2825 = vmul.f32 %v2304, %v2797
  %v2826 = vmul.f32 %v2307, %v2797
  %v2827 = vmul.f32 %v2312, %v2797
  %v2828 = vmul.f32 %v2315, %v2797
  %v2829 = vmul.f32 %v2320, %v2797
  %v2830 = vmul.f32 %v2323, %v2797
  %v2831 = vmul.f32 %v2328, %v2797
  %v2832 = vmul.f32 %v2331, %v2797
  %v2833 = vmul.f32 %v2336, %v2797
  %v2834 = vmul.f32 %v2339, %v2797
  %v2835 = vmul.f32 %v2344, %v2797
  %v2836 = vmul.f32 %v2347, %v2797
  %v2837 = vmul.f32 %v2352, %v2797
  %v2838 = vmul.f32 %v2355, %v2797
  %v2839 = vmul.f32 %v2360, %v2797
  %v2840 = vmul.f32 %v2363, %v2797
  %v2841 = vmul.f32 %v2368, %v2797
  %v2842 = vmul.f32 %v2371, %v2797
  %v2843 = vmul.f32 %v2376, %v2797
  %v2844 = vmul.f32 %v2379, %v2797
  %v2845 = vmul.f32 %v2384, %v2797
  %v2846 = vmul.f32 %v2387, %v2797
  %v2847 = vmul.f32 %v2392, %v2797
  %v2848 = vmul.f32 %v2395, %v2797
  %v2849 = vmul.f32 %v2400, %v2797
  %v2850 = vmul.f32 %v2403, %v2797
  %v2851 = vmul.f32 %v2408, %v2797
  %v2852 = vmul.f32 %v2411, %v2797
  %v2853 = vmul.f32 %v2416, %v2797
  %v2854 = vmul.f32 %v2419, %v2797
  %v2855 = vmul.f32 %v2424, %v2797
  %v2856 = vmul.f32 %v2427, %v2797
  %v2857 = vmul.f32 %v2432, %v2797
  %v2858 = vmul.f32 %v2435, %v2797
  %v2859 = vmul.f32 %v2440, %v2797
  %v2860 = vmul.f32 %v2443, %v2797
  %v2861 = vmul.f32 %v2448, %v2797
  %v2862 = vmul.f32 %v2451, %v2797
  %v2863 = vmul.f32 %v2589, %v2792
  %v2864 = vsub.f32 %v2455, %v2863
  %v2866 = vlaneseq
  %v2867 = vshrl.u32 %v2866, 7
  %v2868 = vsub.s32 0, %v2867
  %v2869 = vrot.slane %v2864, %v2868
  %v2871 = vadd.f32 %v2799, %v2869
  %v2872 = vadd.f32 %v2800, %v2869
  %v2873 = vadd.f32 %v2801, %v2869
  %v2874 = vadd.f32 %v2802, %v2869
  %v2875 = vadd.f32 %v2803, %v2869
  %v2876 = vadd.f32 %v2804, %v2869
  %v2877 = vadd.f32 %v2805, %v2869
  %v2878 = vadd.f32 %v2806, %v2869
  %v2879 = vadd.f32 %v2807, %v2869
  %v2880 = vadd.f32 %v2808, %v2869
  %v2881 = vadd.f32 %v2809, %v2869
  %v2882 = vadd.f32 %v2810, %v2869
  %v2883 = vadd.f32 %v2811, %v2869
  %v2884 = vadd.f32 %v2812, %v2869
  %v2885 = vadd.f32 %v2813, %v2869
  %v2886 = vadd.f32 %v2814, %v2869
  %v2887 = vadd.f32 %v2815, %v2869
  %v2888 = vadd.f32 %v2816, %v2869
  %v2889 = vadd.f32 %v2817, %v2869
  %v2890 = vadd.f32 %v2818, %v2869
  %v2891 = vadd.f32 %v2819, %v2869
  %v2892 = vadd.f32 %v2820, %v2869
  %v2893 = vadd.f32 %v2821, %v2869
  %v2894 = vadd.f32 %v2822, %v2869
  %v2895 = vadd.f32 %v2823, %v2869
  %v2896 = vadd.f32 %v2824, %v2869
  %v2897 = vadd.f32 %v2825, %v2869
  %v2898 = vadd.f32 %v2826, %v2869
  %v2899 = vadd.f32 %v2827, %v2869
  %v2900 = vadd.f32 %v2828, %v2869
  %v2901 = vadd.f32 %v2829, %v2869
  %v2902 = vadd.f32 %v2830, %v2869
  %v2903 = vadd.f32 %v2831, %v2869
  %v2904 = vadd.f32 %v2832, %v2869
  %v2905 = vadd.f32 %v2833, %v2869
  %v2906 = vadd.f32 %v2834, %v2869
  %v2907 = vadd.f32 %v2835, %v2869
  %v2908 = vadd.f32 %v2836, %v2869
  %v2909 = vadd.f32 %v2837, %v2869
  %v2910 = vadd.f32 %v2838, %v2869
  %v2911 = vadd.f32 %v2839, %v2869
  %v2912 = vadd.f32 %v2840, %v2869
  %v2913 = vadd.f32 %v2841, %v2869
  %v2914 = vadd.f32 %v2842, %v2869
  %v2915 = vadd.f32 %v2843, %v2869
  %v2916 = vadd.f32 %v2844, %v2869
  %v2917 = vadd.f32 %v2845, %v2869
  %v2918 = vadd.f32 %v2846, %v2869
  %v2919 = vadd.f32 %v2847, %v2869
  %v2920 = vadd.f32 %v2848, %v2869
  %v2921 = vadd.f32 %v2849, %v2869
  %v2922 = vadd.f32 %v2850, %v2869
  %v2923 = vadd.f32 %v2851, %v2869
  %v2924 = vadd.f32 %v2852, %v2869
  %v2925 = vadd.f32 %v2853, %v2869
  %v2926 = vadd.f32 %v2854, %v2869
  %v2927 = vadd.f32 %v2855, %v2869
  %v2928 = vadd.f32 %v2856, %v2869
  %v2929 = vadd.f32 %v2857, %v2869
  %v2930 = vadd.f32 %v2858, %v2869
  %v2931 = vadd.f32 %v2859, %v2869
  %v2932 = vadd.f32 %v2860, %v2869
  %v2933 = vadd.f32 %v2861, %v2869
  %v2934 = vadd.f32 %v2862, %v2869
  %v2935 = vmax.f32 %v2871, 0.0
  %v2936 = vmax.f32 %v2872, 0.0
  %v2937 = vmax.f32 %v2873, 0.0
  %v2938 = vmax.f32 %v2874, 0.0
  %v2939 = vmax.f32 %v2875, 0.0
  %v2940 = vmax.f32 %v2876, 0.0
  %v2941 = vmax.f32 %v2877, 0.0
  %v2942 = vmax.f32 %v2878, 0.0
  %v2943 = vmax.f32 %v2879, 0.0
  %v2944 = vmax.f32 %v2880, 0.0
  %v2945 = vmax.f32 %v2881, 0.0
  %v2946 = vmax.f32 %v2882, 0.0
  %v2947 = vmax.f32 %v2883, 0.0
  %v2948 = vmax.f32 %v2884, 0.0
  %v2949 = vmax.f32 %v2885, 0.0
  %v2950 = vmax.f32 %v2886, 0.0
  %v2951 = vmax.f32 %v2887, 0.0
  %v2952 = vmax.f32 %v2888, 0.0
  %v2953 = vmax.f32 %v2889, 0.0
  %v2954 = vmax.f32 %v2890, 0.0
  %v2955 = vmax.f32 %v2891, 0.0
  %v2956 = vmax.f32 %v2892, 0.0
  %v2957 = vmax.f32 %v2893, 0.0
  %v2958 = vmax.f32 %v2894, 0.0
  %v2959 = vmax.f32 %v2895, 0.0
  %v2960 = vmax.f32 %v2896, 0.0
  %v2961 = vmax.f32 %v2897, 0.0
  %v2962 = vmax.f32 %v2898, 0.0
  %v2963 = vmax.f32 %v2899, 0.0
  %v2964 = vmax.f32 %v2900, 0.0
  %v2965 = vmax.f32 %v2901, 0.0
  %v2966 = vmax.f32 %v2902, 0.0
  %v2967 = vmax.f32 %v2903, 0.0
  %v2968 = vmax.f32 %v2904, 0.0
  %v2969 = vmax.f32 %v2905, 0.0
  %v2970 = vmax.f32 %v2906, 0.0
  %v2971 = vmax.f32 %v2907, 0.0
  %v2972 = vmax.f32 %v2908, 0.0
  %v2973 = vmax.f32 %v2909, 0.0
  %v2974 = vmax.f32 %v2910, 0.0
  %v2975 = vmax.f32 %v2911, 0.0
  %v2976 = vmax.f32 %v2912, 0.0
  %v2977 = vmax.f32 %v2913, 0.0
  %v2978 = vmax.f32 %v2914, 0.0
  %v2979 = vmax.f32 %v2915, 0.0
  %v2980 = vmax.f32 %v2916, 0.0
  %v2981 = vmax.f32 %v2917, 0.0
  %v2982 = vmax.f32 %v2918, 0.0
  %v2983 = vmax.f32 %v2919, 0.0
  %v2984 = vmax.f32 %v2920, 0.0
  %v2985 = vmax.f32 %v2921, 0.0
  %v2986 = vmax.f32 %v2922, 0.0
  %v2987 = vmax.f32 %v2923, 0.0
  %v2988 = vmax.f32 %v2924, 0.0
  %v2989 = vmax.f32 %v2925, 0.0
  %v2990 = vmax.f32 %v2926, 0.0
  %v2991 = vmax.f32 %v2927, 0.0
  %v2992 = vmax.f32 %v2928, 0.0
  %v2993 = vmax.f32 %v2929, 0.0
  %v2994 = vmax.f32 %v2930, 0.0
  %v2995 = vmax.f32 %v2931, 0.0
  %v2996 = vmax.f32 %v2932, 0.0
  %v2997 = vmax.f32 %v2933, 0.0
  %v2998 = vmax.f32 %v2934, 0.0
  %v2999 = vpack.c.bf16 %v2936, %v2935
  %v3000 = vpack.c.bf16 %v2938, %v2937
  %v3001 = vpack.c.bf16 %v2940, %v2939
  %v3002 = vpack.c.bf16 %v2942, %v2941
  %v3003 = vpack.c.bf16 %v2944, %v2943
  %v3004 = vpack.c.bf16 %v2946, %v2945
  %v3005 = vpack.c.bf16 %v2948, %v2947
  %v3006 = vpack.c.bf16 %v2950, %v2949
  %v3007 = vpack.c.bf16 %v2952, %v2951
  %v3008 = vpack.c.bf16 %v2954, %v2953
  %v3009 = vpack.c.bf16 %v2956, %v2955
  %v3010 = vpack.c.bf16 %v2958, %v2957
  %v3011 = vpack.c.bf16 %v2960, %v2959
  %v3012 = vpack.c.bf16 %v2962, %v2961
  %v3013 = vpack.c.bf16 %v2964, %v2963
  %v3014 = vpack.c.bf16 %v2966, %v2965
  %v3015 = vpack.c.bf16 %v2968, %v2967
  %v3016 = vpack.c.bf16 %v2970, %v2969
  %v3017 = vpack.c.bf16 %v2972, %v2971
  %v3018 = vpack.c.bf16 %v2974, %v2973
  %v3019 = vpack.c.bf16 %v2976, %v2975
  %v3020 = vpack.c.bf16 %v2978, %v2977
  %v3021 = vpack.c.bf16 %v2980, %v2979
  %v3022 = vpack.c.bf16 %v2982, %v2981
  %v3023 = vpack.c.bf16 %v2984, %v2983
  %v3024 = vpack.c.bf16 %v2986, %v2985
  %v3025 = vpack.c.bf16 %v2988, %v2987
  %v3026 = vpack.c.bf16 %v2990, %v2989
  %v3027 = vpack.c.bf16 %v2992, %v2991
  %v3028 = vpack.c.bf16 %v2994, %v2993
  %v3029 = vpack.c.bf16 %v2996, %v2995
  %v3030 = vpack.c.bf16 %v2998, %v2997
  %v3032 = vshrl.u32 %v2999, 16
  %v3034 = vrot.slane %v3032, 7
  %v3035 = vshll.u32 %v2999, 16
  %v3037 = vor.u32 %v3034, %v3035
  %v3039 = vshrl.u32 %v3000, 16
  %v3041 = vrot.slane %v3039, 7
  %v3042 = vshll.u32 %v3000, 16
  %v3044 = vor.u32 %v3041, %v3042
  %v3046 = vshrl.u32 %v3001, 16
  %v3048 = vrot.slane %v3046, 7
  %v3049 = vshll.u32 %v3001, 16
  %v3051 = vor.u32 %v3048, %v3049
  %v3053 = vshrl.u32 %v3002, 16
  %v3055 = vrot.slane %v3053, 7
  %v3056 = vshll.u32 %v3002, 16
  %v3058 = vor.u32 %v3055, %v3056
  %v3060 = vshrl.u32 %v3003, 16
  %v3062 = vrot.slane %v3060, 7
  %v3063 = vshll.u32 %v3003, 16
  %v3065 = vor.u32 %v3062, %v3063
  %v3067 = vshrl.u32 %v3004, 16
  %v3069 = vrot.slane %v3067, 7
  %v3070 = vshll.u32 %v3004, 16
  %v3072 = vor.u32 %v3069, %v3070
  %v3074 = vshrl.u32 %v3005, 16
  %v3076 = vrot.slane %v3074, 7
  %v3077 = vshll.u32 %v3005, 16
  %v3079 = vor.u32 %v3076, %v3077
  %v3081 = vshrl.u32 %v3006, 16
  %v3083 = vrot.slane %v3081, 7
  %v3084 = vshll.u32 %v3006, 16
  %v3086 = vor.u32 %v3083, %v3084
  %v3088 = vshrl.u32 %v3007, 16
  %v3090 = vrot.slane %v3088, 7
  %v3091 = vshll.u32 %v3007, 16
  %v3093 = vor.u32 %v3090, %v3091
  %v3095 = vshrl.u32 %v3008, 16
  %v3097 = vrot.slane %v3095, 7
  %v3098 = vshll.u32 %v3008, 16
  %v3100 = vor.u32 %v3097, %v3098
  %v3102 = vshrl.u32 %v3009, 16
  %v3104 = vrot.slane %v3102, 7
  %v3105 = vshll.u32 %v3009, 16
  %v3107 = vor.u32 %v3104, %v3105
  %v3109 = vshrl.u32 %v3010, 16
  %v3111 = vrot.slane %v3109, 7
  %v3112 = vshll.u32 %v3010, 16
  %v3114 = vor.u32 %v3111, %v3112
  %v3116 = vshrl.u32 %v3011, 16
  %v3118 = vrot.slane %v3116, 7
  %v3119 = vshll.u32 %v3011, 16
  %v3121 = vor.u32 %v3118, %v3119
  %v3123 = vshrl.u32 %v3012, 16
  %v3125 = vrot.slane %v3123, 7
  %v3126 = vshll.u32 %v3012, 16
  %v3128 = vor.u32 %v3125, %v3126
  %v3130 = vshrl.u32 %v3013, 16
  %v3132 = vrot.slane %v3130, 7
  %v3133 = vshll.u32 %v3013, 16
  %v3135 = vor.u32 %v3132, %v3133
  %v3137 = vshrl.u32 %v3014, 16
  %v3139 = vrot.slane %v3137, 7
  %v3140 = vshll.u32 %v3014, 16
  %v3142 = vor.u32 %v3139, %v3140
  %v3144 = vshrl.u32 %v3015, 16
  %v3146 = vrot.slane %v3144, 7
  %v3147 = vshll.u32 %v3015, 16
  %v3149 = vor.u32 %v3146, %v3147
  %v3151 = vshrl.u32 %v3016, 16
  %v3153 = vrot.slane %v3151, 7
  %v3154 = vshll.u32 %v3016, 16
  %v3156 = vor.u32 %v3153, %v3154
  %v3158 = vshrl.u32 %v3017, 16
  %v3160 = vrot.slane %v3158, 7
  %v3161 = vshll.u32 %v3017, 16
  %v3163 = vor.u32 %v3160, %v3161
  %v3165 = vshrl.u32 %v3018, 16
  %v3167 = vrot.slane %v3165, 7
  %v3168 = vshll.u32 %v3018, 16
  %v3170 = vor.u32 %v3167, %v3168
  %v3172 = vshrl.u32 %v3019, 16
  %v3174 = vrot.slane %v3172, 7
  %v3175 = vshll.u32 %v3019, 16
  %v3177 = vor.u32 %v3174, %v3175
  %v3179 = vshrl.u32 %v3020, 16
  %v3181 = vrot.slane %v3179, 7
  %v3182 = vshll.u32 %v3020, 16
  %v3184 = vor.u32 %v3181, %v3182
  %v3186 = vshrl.u32 %v3021, 16
  %v3188 = vrot.slane %v3186, 7
  %v3189 = vshll.u32 %v3021, 16
  %v3191 = vor.u32 %v3188, %v3189
  %v3193 = vshrl.u32 %v3022, 16
  %v3195 = vrot.slane %v3193, 7
  %v3196 = vshll.u32 %v3022, 16
  %v3198 = vor.u32 %v3195, %v3196
  %v3200 = vshrl.u32 %v3023, 16
  %v3202 = vrot.slane %v3200, 7
  %v3203 = vshll.u32 %v3023, 16
  %v3205 = vor.u32 %v3202, %v3203
  %v3207 = vshrl.u32 %v3024, 16
  %v3209 = vrot.slane %v3207, 7
  %v3210 = vshll.u32 %v3024, 16
  %v3212 = vor.u32 %v3209, %v3210
  %v3214 = vshrl.u32 %v3025, 16
  %v3216 = vrot.slane %v3214, 7
  %v3217 = vshll.u32 %v3025, 16
  %v3219 = vor.u32 %v3216, %v3217
  %v3221 = vshrl.u32 %v3026, 16
  %v3223 = vrot.slane %v3221, 7
  %v3224 = vshll.u32 %v3026, 16
  %v3226 = vor.u32 %v3223, %v3224
  %v3228 = vshrl.u32 %v3027, 16
  %v3230 = vrot.slane %v3228, 7
  %v3231 = vshll.u32 %v3027, 16
  %v3233 = vor.u32 %v3230, %v3231
  %v3235 = vshrl.u32 %v3028, 16
  %v3237 = vrot.slane %v3235, 7
  %v3238 = vshll.u32 %v3028, 16
  %v3240 = vor.u32 %v3237, %v3238
  %v3242 = vshrl.u32 %v3029, 16
  %v3244 = vrot.slane %v3242, 7
  %v3245 = vshll.u32 %v3029, 16
  %v3247 = vor.u32 %v3244, %v3245
  %v3249 = vshrl.u32 %v3030, 16
  %v3251 = vrot.slane %v3249, 7
  %v3252 = vshll.u32 %v3030, 16
  %v3254 = vor.u32 %v3251, %v3252
  %v3319 = vsel %vm431, 0, %v3037
  %v3320 = vsel %vm431, 0, %v3044
  %v3321 = vsel %vm431, 0, %v3051
  %v3322 = vsel %vm431, 0, %v3058
  %v3323 = vsel %vm431, 0, %v3065
  %v3324 = vsel %vm431, 0, %v3072
  %v3325 = vsel %vm431, 0, %v3079
  %v3326 = vsel %vm431, 0, %v3086
  %v3327 = vsel %vm431, 0, %v3093
  %v3328 = vsel %vm431, 0, %v3100
  %v3329 = vsel %vm431, 0, %v3107
  %v3330 = vsel %vm431, 0, %v3114
  %v3331 = vsel %vm431, 0, %v3121
  %v3332 = vsel %vm431, 0, %v3128
  %v3333 = vsel %vm431, 0, %v3135
  %v3334 = vsel %vm431, 0, %v3142
  %v3335 = vsel %vm431, 0, %v3149
  %v3336 = vsel %vm431, 0, %v3156
  %v3337 = vsel %vm431, 0, %v3163
  %v3338 = vsel %vm431, 0, %v3170
  %v3339 = vsel %vm431, 0, %v3177
  %v3340 = vsel %vm431, 0, %v3184
  %v3341 = vsel %vm431, 0, %v3191
  %v3342 = vsel %vm431, 0, %v3198
  %v3343 = vsel %vm431, 0, %v3205
  %v3344 = vsel %vm431, 0, %v3212
  %v3345 = vsel %vm431, 0, %v3219
  %v3346 = vsel %vm431, 0, %v3226
  %v3347 = vsel %vm431, 0, %v3233
  %v3348 = vsel %vm431, 0, %v3240
  %v3349 = vsel %vm431, 0, %v3247
  %v3350 = vsel %vm431, 0, %v3254
  %v3351 = vsel %vm431, %v3034, 0
  %v3352 = vsel %vm431, %v3041, 0
  %v3353 = vsel %vm431, %v3048, 0
  %v3354 = vsel %vm431, %v3055, 0
  %v3355 = vsel %vm431, %v3062, 0
  %v3356 = vsel %vm431, %v3069, 0
  %v3357 = vsel %vm431, %v3076, 0
  %v3358 = vsel %vm431, %v3083, 0
  %v3359 = vsel %vm431, %v3090, 0
  %v3360 = vsel %vm431, %v3097, 0
  %v3361 = vsel %vm431, %v3104, 0
  %v3362 = vsel %vm431, %v3111, 0
  %v3363 = vsel %vm431, %v3118, 0
  %v3364 = vsel %vm431, %v3125, 0
  %v3365 = vsel %vm431, %v3132, 0
  %v3366 = vsel %vm431, %v3139, 0
  %v3367 = vsel %vm431, %v3146, 0
  %v3368 = vsel %vm431, %v3153, 0
  %v3369 = vsel %vm431, %v3160, 0
  %v3370 = vsel %vm431, %v3167, 0
  %v3371 = vsel %vm431, %v3174, 0
  %v3372 = vsel %vm431, %v3181, 0
  %v3373 = vsel %vm431, %v3188, 0
  %v3374 = vsel %vm431, %v3195, 0
  %v3375 = vsel %vm431, %v3202, 0
  %v3376 = vsel %vm431, %v3209, 0
  %v3377 = vsel %vm431, %v3216, 0
  %v3378 = vsel %vm431, %v3223, 0
  %v3379 = vsel %vm431, %v3230, 0
  %v3380 = vsel %vm431, %v3237, 0
  %v3381 = vsel %vm431, %v3244, 0
  %v3382 = vsel %vm431, %v3251, 0
  %v3384 = vshrl.u32 %v3319, 16
  %v3386 = vshll.u32 %v3319, 16
  %v3388 = vrot.slane %v3386, 1
  %v3389 = vor.u32 %v3384, %v3388
  %v3391 = vshll.u32 %v3351, 16
  %v3393 = vrot.slane %v3391, 1
  %v3394 = vsel %vm498, %v3389, %v3393
  %v3396 = vshrl.u32 %v3320, 16
  %v3398 = vshll.u32 %v3320, 16
  %v3400 = vrot.slane %v3398, 1
  %v3401 = vor.u32 %v3396, %v3400
  %v3403 = vshll.u32 %v3352, 16
  %v3405 = vrot.slane %v3403, 1
  %v3406 = vsel %vm498, %v3401, %v3405
  %v3408 = vshrl.u32 %v3321, 16
  %v3410 = vshll.u32 %v3321, 16
  %v3412 = vrot.slane %v3410, 1
  %v3413 = vor.u32 %v3408, %v3412
  %v3415 = vshll.u32 %v3353, 16
  %v3417 = vrot.slane %v3415, 1
  %v3418 = vsel %vm498, %v3413, %v3417
  %v3420 = vshrl.u32 %v3322, 16
  %v3422 = vshll.u32 %v3322, 16
  %v3424 = vrot.slane %v3422, 1
  %v3425 = vor.u32 %v3420, %v3424
  %v3427 = vshll.u32 %v3354, 16
  %v3429 = vrot.slane %v3427, 1
  %v3430 = vsel %vm498, %v3425, %v3429
  %v3432 = vshrl.u32 %v3323, 16
  %v3434 = vshll.u32 %v3323, 16
  %v3436 = vrot.slane %v3434, 1
  %v3437 = vor.u32 %v3432, %v3436
  %v3439 = vshll.u32 %v3355, 16
  %v3441 = vrot.slane %v3439, 1
  %v3442 = vsel %vm498, %v3437, %v3441
  %v3444 = vshrl.u32 %v3324, 16
  %v3446 = vshll.u32 %v3324, 16
  %v3448 = vrot.slane %v3446, 1
  %v3449 = vor.u32 %v3444, %v3448
  %v3451 = vshll.u32 %v3356, 16
  %v3453 = vrot.slane %v3451, 1
  %v3454 = vsel %vm498, %v3449, %v3453
  %v3456 = vshrl.u32 %v3325, 16
  %v3458 = vshll.u32 %v3325, 16
  %v3460 = vrot.slane %v3458, 1
  %v3461 = vor.u32 %v3456, %v3460
  %v3463 = vshll.u32 %v3357, 16
  %v3465 = vrot.slane %v3463, 1
  %v3466 = vsel %vm498, %v3461, %v3465
  %v3468 = vshrl.u32 %v3326, 16
  %v3470 = vshll.u32 %v3326, 16
  %v3472 = vrot.slane %v3470, 1
  %v3473 = vor.u32 %v3468, %v3472
  %v3475 = vshll.u32 %v3358, 16
  %v3477 = vrot.slane %v3475, 1
  %v3478 = vsel %vm498, %v3473, %v3477
  %v3480 = vshrl.u32 %v3327, 16
  %v3482 = vshll.u32 %v3327, 16
  %v3484 = vrot.slane %v3482, 1
  %v3485 = vor.u32 %v3480, %v3484
  %v3487 = vshll.u32 %v3359, 16
  %v3489 = vrot.slane %v3487, 1
  %v3490 = vsel %vm498, %v3485, %v3489
  %v3492 = vshrl.u32 %v3328, 16
  %v3494 = vshll.u32 %v3328, 16
  %v3496 = vrot.slane %v3494, 1
  %v3497 = vor.u32 %v3492, %v3496
  %v3499 = vshll.u32 %v3360, 16
  %v3501 = vrot.slane %v3499, 1
  %v3502 = vsel %vm498, %v3497, %v3501
  %v3504 = vshrl.u32 %v3329, 16
  %v3506 = vshll.u32 %v3329, 16
  %v3508 = vrot.slane %v3506, 1
  %v3509 = vor.u32 %v3504, %v3508
  %v3511 = vshll.u32 %v3361, 16
  %v3513 = vrot.slane %v3511, 1
  %v3514 = vsel %vm498, %v3509, %v3513
  %v3516 = vshrl.u32 %v3330, 16
  %v3518 = vshll.u32 %v3330, 16
  %v3520 = vrot.slane %v3518, 1
  %v3521 = vor.u32 %v3516, %v3520
  %v3523 = vshll.u32 %v3362, 16
  %v3525 = vrot.slane %v3523, 1
  %v3526 = vsel %vm498, %v3521, %v3525
  %v3528 = vshrl.u32 %v3331, 16
  %v3530 = vshll.u32 %v3331, 16
  %v3532 = vrot.slane %v3530, 1
  %v3533 = vor.u32 %v3528, %v3532
  %v3535 = vshll.u32 %v3363, 16
  %v3537 = vrot.slane %v3535, 1
  %v3538 = vsel %vm498, %v3533, %v3537
  %v3540 = vshrl.u32 %v3332, 16
  %v3542 = vshll.u32 %v3332, 16
  %v3544 = vrot.slane %v3542, 1
  %v3545 = vor.u32 %v3540, %v3544
  %v3547 = vshll.u32 %v3364, 16
  %v3549 = vrot.slane %v3547, 1
  %v3550 = vsel %vm498, %v3545, %v3549
  %v3552 = vshrl.u32 %v3333, 16
  %v3554 = vshll.u32 %v3333, 16
  %v3556 = vrot.slane %v3554, 1
  %v3557 = vor.u32 %v3552, %v3556
  %v3559 = vshll.u32 %v3365, 16
  %v3561 = vrot.slane %v3559, 1
  %v3562 = vsel %vm498, %v3557, %v3561
  %v3564 = vshrl.u32 %v3335, 16
  %v3566 = vshll.u32 %v3335, 16
  %v3568 = vrot.slane %v3566, 1
  %v3569 = vor.u32 %v3564, %v3568
  %v3571 = vshll.u32 %v3367, 16
  %v3573 = vrot.slane %v3571, 1
  %v3574 = vsel %vm498, %v3569, %v3573
  %v3576 = vshrl.u32 %v3336, 16
  %v3578 = vshll.u32 %v3336, 16
  %v3580 = vrot.slane %v3578, 1
  %v3581 = vor.u32 %v3576, %v3580
  %v3583 = vshll.u32 %v3368, 16
  %v3585 = vrot.slane %v3583, 1
  %v3586 = vsel %vm498, %v3581, %v3585
  %v3588 = vshrl.u32 %v3337, 16
  %v3590 = vshll.u32 %v3337, 16
  %v3592 = vrot.slane %v3590, 1
  %v3593 = vor.u32 %v3588, %v3592
  %v3595 = vshll.u32 %v3369, 16
  %v3597 = vrot.slane %v3595, 1
  %v3598 = vsel %vm498, %v3593, %v3597
  %v3600 = vshrl.u32 %v3338, 16
  %v3602 = vshll.u32 %v3338, 16
  %v3604 = vrot.slane %v3602, 1
  %v3605 = vor.u32 %v3600, %v3604
  %v3607 = vshll.u32 %v3370, 16
  %v3609 = vrot.slane %v3607, 1
  %v3610 = vsel %vm498, %v3605, %v3609
  %v3612 = vshrl.u32 %v3339, 16
  %v3614 = vshll.u32 %v3339, 16
  %v3616 = vrot.slane %v3614, 1
  %v3617 = vor.u32 %v3612, %v3616
  %v3619 = vshll.u32 %v3371, 16
  %v3621 = vrot.slane %v3619, 1
  %v3622 = vsel %vm498, %v3617, %v3621
  %v3624 = vshrl.u32 %v3340, 16
  %v3626 = vshll.u32 %v3340, 16
  %v3628 = vrot.slane %v3626, 1
  %v3629 = vor.u32 %v3624, %v3628
  %v3631 = vshll.u32 %v3372, 16
  %v3633 = vrot.slane %v3631, 1
  %v3634 = vsel %vm498, %v3629, %v3633
  %v3636 = vshrl.u32 %v3341, 16
  %v3638 = vshll.u32 %v3341, 16
  %v3640 = vrot.slane %v3638, 1
  %v3641 = vor.u32 %v3636, %v3640
  %v3643 = vshll.u32 %v3373, 16
  %v3645 = vrot.slane %v3643, 1
  %v3646 = vsel %vm498, %v3641, %v3645
  %v3648 = vshrl.u32 %v3342, 16
  %v3650 = vshll.u32 %v3342, 16
  %v3652 = vrot.slane %v3650, 1
  %v3653 = vor.u32 %v3648, %v3652
  %v3655 = vshll.u32 %v3374, 16
  %v3657 = vrot.slane %v3655, 1
  %v3658 = vsel %vm498, %v3653, %v3657
  %v3660 = vshrl.u32 %v3343, 16
  %v3662 = vshll.u32 %v3343, 16
  %v3664 = vrot.slane %v3662, 1
  %v3665 = vor.u32 %v3660, %v3664
  %v3667 = vshll.u32 %v3375, 16
  %v3669 = vrot.slane %v3667, 1
  %v3670 = vsel %vm498, %v3665, %v3669
  %v3672 = vshrl.u32 %v3344, 16
  %v3674 = vshll.u32 %v3344, 16
  %v3676 = vrot.slane %v3674, 1
  %v3677 = vor.u32 %v3672, %v3676
  %v3679 = vshll.u32 %v3376, 16
  %v3681 = vrot.slane %v3679, 1
  %v3682 = vsel %vm498, %v3677, %v3681
  %v3684 = vshrl.u32 %v3345, 16
  %v3686 = vshll.u32 %v3345, 16
  %v3688 = vrot.slane %v3686, 1
  %v3689 = vor.u32 %v3684, %v3688
  %v3691 = vshll.u32 %v3377, 16
  %v3693 = vrot.slane %v3691, 1
  %v3694 = vsel %vm498, %v3689, %v3693
  %v3696 = vshrl.u32 %v3346, 16
  %v3698 = vshll.u32 %v3346, 16
  %v3700 = vrot.slane %v3698, 1
  %v3701 = vor.u32 %v3696, %v3700
  %v3703 = vshll.u32 %v3378, 16
  %v3705 = vrot.slane %v3703, 1
  %v3706 = vsel %vm498, %v3701, %v3705
  %v3708 = vshrl.u32 %v3347, 16
  %v3710 = vshll.u32 %v3347, 16
  %v3712 = vrot.slane %v3710, 1
  %v3713 = vor.u32 %v3708, %v3712
  %v3715 = vshll.u32 %v3379, 16
  %v3717 = vrot.slane %v3715, 1
  %v3718 = vsel %vm498, %v3713, %v3717
  %v3720 = vshrl.u32 %v3348, 16
  %v3722 = vshll.u32 %v3348, 16
  %v3724 = vrot.slane %v3722, 1
  %v3725 = vor.u32 %v3720, %v3724
  %v3727 = vshll.u32 %v3380, 16
  %v3729 = vrot.slane %v3727, 1
  %v3730 = vsel %vm498, %v3725, %v3729
  %v3732 = vshrl.u32 %v3349, 16
  %v3734 = vshll.u32 %v3349, 16
  %v3736 = vrot.slane %v3734, 1
  %v3737 = vor.u32 %v3732, %v3736
  %v3739 = vshll.u32 %v3381, 16
  %v3741 = vrot.slane %v3739, 1
  %v3742 = vsel %vm498, %v3737, %v3741
  %3743 = vrot.lane.b32.xlu0 %v510, 8
  %v3744 = vpop.permute.xlu0 %3743
  %3745 = vrot.lane.b32.xlu0 %v3394, 8
  %v3746 = vpop.permute.xlu0 %3745
  %3747 = vrot.lane.b32.xlu0 %v3406, 8
  %v3748 = vpop.permute.xlu0 %3747
  %3749 = vrot.lane.b32.xlu0 %v3418, 8
  %v3750 = vpop.permute.xlu0 %3749
  %3751 = vrot.lane.b32.xlu0 %v3430, 8
  %v3752 = vpop.permute.xlu0 %3751
  %3753 = vrot.lane.b32.xlu0 %v3442, 8
  %v3754 = vpop.permute.xlu0 %3753
  %3755 = vrot.lane.b32.xlu0 %v3454, 8
  %v3756 = vpop.permute.xlu0 %3755
  %3757 = vrot.lane.b32.xlu0 %v3466, 8
  %v3758 = vpop.permute.xlu0 %3757
  %3759 = vrot.lane.b32.xlu0 %v3478, 8
  %v3760 = vpop.permute.xlu0 %3759
  %3761 = vrot.lane.b32.xlu0 %v3490, 8
  %v3762 = vpop.permute.xlu0 %3761
  %3763 = vrot.lane.b32.xlu0 %v3502, 8
  %v3764 = vpop.permute.xlu0 %3763
  %3765 = vrot.lane.b32.xlu0 %v3514, 8
  %v3766 = vpop.permute.xlu0 %3765
  %3767 = vrot.lane.b32.xlu0 %v3526, 8
  %v3768 = vpop.permute.xlu0 %3767
  %3769 = vrot.lane.b32.xlu0 %v3538, 8
  %v3770 = vpop.permute.xlu0 %3769
  %3771 = vrot.lane.b32.xlu0 %v3550, 8
  %v3772 = vpop.permute.xlu0 %3771
  %3773 = vrot.lane.b32.xlu0 %v3562, 8
  %v3774 = vpop.permute.xlu0 %3773
  %3775 = vrot.lane.b32.xlu0 %v3574, 8
  %v3776 = vpop.permute.xlu0 %3775
  %3777 = vrot.lane.b32.xlu0 %v3586, 8
  %v3778 = vpop.permute.xlu0 %3777
  %3779 = vrot.lane.b32.xlu0 %v3598, 8
  %v3780 = vpop.permute.xlu0 %3779
  %3781 = vrot.lane.b32.xlu0 %v3610, 8
  %v3782 = vpop.permute.xlu0 %3781
  %3783 = vrot.lane.b32.xlu0 %v3622, 8
  %v3784 = vpop.permute.xlu0 %3783
  %3785 = vrot.lane.b32.xlu0 %v3634, 8
  %v3786 = vpop.permute.xlu0 %3785
  %3787 = vrot.lane.b32.xlu0 %v3646, 8
  %v3788 = vpop.permute.xlu0 %3787
  %3789 = vrot.lane.b32.xlu0 %v3658, 8
  %v3790 = vpop.permute.xlu0 %3789
  %3791 = vrot.lane.b32.xlu0 %v3670, 8
  %v3792 = vpop.permute.xlu0 %3791
  %3793 = vrot.lane.b32.xlu0 %v3682, 8
  %v3794 = vpop.permute.xlu0 %3793
  %3795 = vrot.lane.b32.xlu0 %v3694, 8
  %v3796 = vpop.permute.xlu0 %3795
  %3797 = vrot.lane.b32.xlu0 %v3706, 8
  %v3798 = vpop.permute.xlu0 %3797
  %3799 = vrot.lane.b32.xlu0 %v3718, 8
  %v3800 = vpop.permute.xlu0 %3799
  %3801 = vrot.lane.b32.xlu0 %v3730, 8
  %v3802 = vpop.permute.xlu0 %3801
  %3803 = vrot.lane.b32.xlu0 %v3742, 8
  %v3804 = vpop.permute.xlu0 %3803
  %v3865 = vrot.slane %v3319, 1
  %v3866 = vrot.slane %v3351, 1
  %v3867 = vsel %vm995, %v3865, %v3866
  %v3868 = vrot.slane %v3320, 1
  %v3869 = vrot.slane %v3352, 1
  %v3870 = vsel %vm995, %v3868, %v3869
  %v3871 = vrot.slane %v3321, 1
  %v3872 = vrot.slane %v3353, 1
  %v3873 = vsel %vm995, %v3871, %v3872
  %v3874 = vrot.slane %v3322, 1
  %v3875 = vrot.slane %v3354, 1
  %v3876 = vsel %vm995, %v3874, %v3875
  %v3877 = vrot.slane %v3323, 1
  %v3878 = vrot.slane %v3355, 1
  %v3879 = vsel %vm995, %v3877, %v3878
  %v3880 = vrot.slane %v3324, 1
  %v3881 = vrot.slane %v3356, 1
  %v3882 = vsel %vm995, %v3880, %v3881
  %v3883 = vrot.slane %v3325, 1
  %v3884 = vrot.slane %v3357, 1
  %v3885 = vsel %vm995, %v3883, %v3884
  %v3886 = vrot.slane %v3326, 1
  %v3887 = vrot.slane %v3358, 1
  %v3888 = vsel %vm995, %v3886, %v3887
  %v3889 = vrot.slane %v3327, 1
  %v3890 = vrot.slane %v3359, 1
  %v3891 = vsel %vm995, %v3889, %v3890
  %v3892 = vrot.slane %v3328, 1
  %v3893 = vrot.slane %v3360, 1
  %v3894 = vsel %vm995, %v3892, %v3893
  %v3895 = vrot.slane %v3329, 1
  %v3896 = vrot.slane %v3361, 1
  %v3897 = vsel %vm995, %v3895, %v3896
  %v3898 = vrot.slane %v3330, 1
  %v3899 = vrot.slane %v3362, 1
  %v3900 = vsel %vm995, %v3898, %v3899
  %v3901 = vrot.slane %v3331, 1
  %v3902 = vrot.slane %v3363, 1
  %v3903 = vsel %vm995, %v3901, %v3902
  %v3904 = vrot.slane %v3332, 1
  %v3905 = vrot.slane %v3364, 1
  %v3906 = vsel %vm995, %v3904, %v3905
  %v3907 = vrot.slane %v3333, 1
  %v3908 = vrot.slane %v3365, 1
  %v3909 = vsel %vm995, %v3907, %v3908
  %v3910 = vrot.slane %v3335, 1
  %v3911 = vrot.slane %v3367, 1
  %v3912 = vsel %vm995, %v3910, %v3911
  %v3913 = vrot.slane %v3336, 1
  %v3914 = vrot.slane %v3368, 1
  %v3915 = vsel %vm995, %v3913, %v3914
  %v3916 = vrot.slane %v3337, 1
  %v3917 = vrot.slane %v3369, 1
  %v3918 = vsel %vm995, %v3916, %v3917
  %v3919 = vrot.slane %v3338, 1
  %v3920 = vrot.slane %v3370, 1
  %v3921 = vsel %vm995, %v3919, %v3920
  %v3922 = vrot.slane %v3339, 1
  %v3923 = vrot.slane %v3371, 1
  %v3924 = vsel %vm995, %v3922, %v3923
  %v3925 = vrot.slane %v3340, 1
  %v3926 = vrot.slane %v3372, 1
  %v3927 = vsel %vm995, %v3925, %v3926
  %v3928 = vrot.slane %v3341, 1
  %v3929 = vrot.slane %v3373, 1
  %v3930 = vsel %vm995, %v3928, %v3929
  %v3931 = vrot.slane %v3342, 1
  %v3932 = vrot.slane %v3374, 1
  %v3933 = vsel %vm995, %v3931, %v3932
  %v3934 = vrot.slane %v3343, 1
  %v3935 = vrot.slane %v3375, 1
  %v3936 = vsel %vm995, %v3934, %v3935
  %v3937 = vrot.slane %v3344, 1
  %v3938 = vrot.slane %v3376, 1
  %v3939 = vsel %vm995, %v3937, %v3938
  %v3940 = vrot.slane %v3345, 1
  %v3941 = vrot.slane %v3377, 1
  %v3942 = vsel %vm995, %v3940, %v3941
  %v3943 = vrot.slane %v3346, 1
  %v3944 = vrot.slane %v3378, 1
  %v3945 = vsel %vm995, %v3943, %v3944
  %v3946 = vrot.slane %v3347, 1
  %v3947 = vrot.slane %v3379, 1
  %v3948 = vsel %vm995, %v3946, %v3947
  %v3949 = vrot.slane %v3348, 1
  %v3950 = vrot.slane %v3380, 1
  %v3951 = vsel %vm995, %v3949, %v3950
  %v3952 = vrot.slane %v3349, 1
  %v3953 = vrot.slane %v3381, 1
  %v3954 = vsel %vm995, %v3952, %v3953
  %3955 = vrot.lane.b32.xlu0 %v998, 16
  %v3956 = vpop.permute.xlu0 %3955
  %3957 = vrot.lane.b32.xlu0 %v3867, 16
  %v3958 = vpop.permute.xlu0 %3957
  %3959 = vrot.lane.b32.xlu0 %v3870, 16
  %v3960 = vpop.permute.xlu0 %3959
  %3961 = vrot.lane.b32.xlu0 %v3873, 16
  %v3962 = vpop.permute.xlu0 %3961
  %3963 = vrot.lane.b32.xlu0 %v3876, 16
  %v3964 = vpop.permute.xlu0 %3963
  %3965 = vrot.lane.b32.xlu0 %v3879, 16
  %v3966 = vpop.permute.xlu0 %3965
  %3967 = vrot.lane.b32.xlu0 %v3882, 16
  %v3968 = vpop.permute.xlu0 %3967
  %3969 = vrot.lane.b32.xlu0 %v3885, 16
  %v3970 = vpop.permute.xlu0 %3969
  %3971 = vrot.lane.b32.xlu0 %v3888, 16
  %v3972 = vpop.permute.xlu0 %3971
  %3973 = vrot.lane.b32.xlu0 %v3891, 16
  %v3974 = vpop.permute.xlu0 %3973
  %3975 = vrot.lane.b32.xlu0 %v3894, 16
  %v3976 = vpop.permute.xlu0 %3975
  %3977 = vrot.lane.b32.xlu0 %v3897, 16
  %v3978 = vpop.permute.xlu0 %3977
  %3979 = vrot.lane.b32.xlu0 %v3900, 16
  %v3980 = vpop.permute.xlu0 %3979
  %3981 = vrot.lane.b32.xlu0 %v3903, 16
  %v3982 = vpop.permute.xlu0 %3981
  %3983 = vrot.lane.b32.xlu0 %v3906, 16
  %v3984 = vpop.permute.xlu0 %3983
  %3985 = vrot.lane.b32.xlu0 %v3909, 16
  %v3986 = vpop.permute.xlu0 %3985
  %3987 = vrot.lane.b32.xlu0 %v3912, 16
  %v3988 = vpop.permute.xlu0 %3987
  %3989 = vrot.lane.b32.xlu0 %v3915, 16
  %v3990 = vpop.permute.xlu0 %3989
  %3991 = vrot.lane.b32.xlu0 %v3918, 16
  %v3992 = vpop.permute.xlu0 %3991
  %3993 = vrot.lane.b32.xlu0 %v3921, 16
  %v3994 = vpop.permute.xlu0 %3993
  %3995 = vrot.lane.b32.xlu0 %v3924, 16
  %v3996 = vpop.permute.xlu0 %3995
  %3997 = vrot.lane.b32.xlu0 %v3927, 16
  %v3998 = vpop.permute.xlu0 %3997
  %3999 = vrot.lane.b32.xlu0 %v3930, 16
  %v4000 = vpop.permute.xlu0 %3999
  %4001 = vrot.lane.b32.xlu0 %v3933, 16
  %v4002 = vpop.permute.xlu0 %4001
  %4003 = vrot.lane.b32.xlu0 %v3936, 16
  %v4004 = vpop.permute.xlu0 %4003
  %4005 = vrot.lane.b32.xlu0 %v3939, 16
  %v4006 = vpop.permute.xlu0 %4005
  %4007 = vrot.lane.b32.xlu0 %v3942, 16
  %v4008 = vpop.permute.xlu0 %4007
  %4009 = vrot.lane.b32.xlu0 %v3945, 16
  %v4010 = vpop.permute.xlu0 %4009
  %4011 = vrot.lane.b32.xlu0 %v3948, 16
  %v4012 = vpop.permute.xlu0 %4011
  %4013 = vrot.lane.b32.xlu0 %v3951, 16
  %v4014 = vpop.permute.xlu0 %4013
  %4015 = vrot.lane.b32.xlu0 %v3954, 16
  %v4016 = vpop.permute.xlu0 %4015
  %4019 = vrot.lane.b32.xlu0 %v3319, 24
  %v4020 = vpop.permute.xlu0 %4019
  %4021 = vrot.lane.b32.xlu0 %v3320, 24
  %v4022 = vpop.permute.xlu0 %4021
  %4023 = vrot.lane.b32.xlu0 %v3321, 24
  %v4024 = vpop.permute.xlu0 %4023
  %4025 = vrot.lane.b32.xlu0 %v3322, 24
  %v4026 = vpop.permute.xlu0 %4025
  %4027 = vrot.lane.b32.xlu0 %v3323, 24
  %v4028 = vpop.permute.xlu0 %4027
  %4029 = vrot.lane.b32.xlu0 %v3324, 24
  %v4030 = vpop.permute.xlu0 %4029
  %4031 = vrot.lane.b32.xlu0 %v3325, 24
  %v4032 = vpop.permute.xlu0 %4031
  %4033 = vrot.lane.b32.xlu0 %v3326, 24
  %v4034 = vpop.permute.xlu0 %4033
  %4035 = vrot.lane.b32.xlu0 %v3327, 24
  %v4036 = vpop.permute.xlu0 %4035
  %4037 = vrot.lane.b32.xlu0 %v3328, 24
  %v4038 = vpop.permute.xlu0 %4037
  %4039 = vrot.lane.b32.xlu0 %v3329, 24
  %v4040 = vpop.permute.xlu0 %4039
  %4041 = vrot.lane.b32.xlu0 %v3330, 24
  %v4042 = vpop.permute.xlu0 %4041
  %4043 = vrot.lane.b32.xlu0 %v3331, 24
  %v4044 = vpop.permute.xlu0 %4043
  %4045 = vrot.lane.b32.xlu0 %v3332, 24
  %v4046 = vpop.permute.xlu0 %4045
  %4047 = vrot.lane.b32.xlu0 %v3333, 24
  %v4048 = vpop.permute.xlu0 %4047
  %4049 = vrot.lane.b32.xlu0 %v3334, 24
  %v4050 = vpop.permute.xlu0 %4049
  %4051 = vrot.lane.b32.xlu0 %v3335, 24
  %v4052 = vpop.permute.xlu0 %4051
  %4053 = vrot.lane.b32.xlu0 %v3336, 24
  %v4054 = vpop.permute.xlu0 %4053
  %4055 = vrot.lane.b32.xlu0 %v3337, 24
  %v4056 = vpop.permute.xlu0 %4055
  %4057 = vrot.lane.b32.xlu0 %v3338, 24
  %v4058 = vpop.permute.xlu0 %4057
  %4059 = vrot.lane.b32.xlu0 %v3339, 24
  %v4060 = vpop.permute.xlu0 %4059
  %4061 = vrot.lane.b32.xlu0 %v3340, 24
  %v4062 = vpop.permute.xlu0 %4061
  %4063 = vrot.lane.b32.xlu0 %v3341, 24
  %v4064 = vpop.permute.xlu0 %4063
  %4065 = vrot.lane.b32.xlu0 %v3342, 24
  %v4066 = vpop.permute.xlu0 %4065
  %4067 = vrot.lane.b32.xlu0 %v3343, 24
  %v4068 = vpop.permute.xlu0 %4067
  %4069 = vrot.lane.b32.xlu0 %v3344, 24
  %v4070 = vpop.permute.xlu0 %4069
  %4071 = vrot.lane.b32.xlu0 %v3345, 24
  %v4072 = vpop.permute.xlu0 %4071
  %4073 = vrot.lane.b32.xlu0 %v3346, 24
  %v4074 = vpop.permute.xlu0 %4073
  %4075 = vrot.lane.b32.xlu0 %v3347, 24
  %v4076 = vpop.permute.xlu0 %4075
  %4077 = vrot.lane.b32.xlu0 %v3348, 24
  %v4078 = vpop.permute.xlu0 %4077
  %4079 = vrot.lane.b32.xlu0 %v3349, 24
  %v4080 = vpop.permute.xlu0 %4079
  %4081 = vrot.lane.b32.xlu0 %v3350, 24
  %v4082 = vpop.permute.xlu0 %4081
  %v4084 = vshrl.u32 %v3334, 16
  %v4086 = vshll.u32 %v3334, 16
  %v4088 = vrot.slane %v4086, 1
  %v4089 = vor.u32 %v4084, %v4088
  %v4091 = vshll.u32 %v3366, 16
  %v4093 = vrot.slane %v4091, 1
  %v4094 = vsel %vm498, %v4089, %v4093
  %v4096 = vshrl.u32 %v3350, 16
  %v4098 = vshll.u32 %v3350, 16
  %v4100 = vrot.slane %v4098, 1
  %v4101 = vor.u32 %v4096, %v4100
  %v4103 = vshll.u32 %v3382, 16
  %v4105 = vrot.slane %v4103, 1
  %v4106 = vsel %vm498, %v4101, %v4105
  %4107 = vrot.lane.b32.xlu0 %v3394, 32
  %v4108 = vpop.permute.xlu0 %4107
  %4109 = vrot.lane.b32.xlu0 %v3406, 32
  %v4110 = vpop.permute.xlu0 %4109
  %4111 = vrot.lane.b32.xlu0 %v3418, 32
  %v4112 = vpop.permute.xlu0 %4111
  %4113 = vrot.lane.b32.xlu0 %v3430, 32
  %v4114 = vpop.permute.xlu0 %4113
  %4115 = vrot.lane.b32.xlu0 %v3442, 32
  %v4116 = vpop.permute.xlu0 %4115
  %4117 = vrot.lane.b32.xlu0 %v3454, 32
  %v4118 = vpop.permute.xlu0 %4117
  %4119 = vrot.lane.b32.xlu0 %v3466, 32
  %v4120 = vpop.permute.xlu0 %4119
  %4121 = vrot.lane.b32.xlu0 %v3478, 32
  %v4122 = vpop.permute.xlu0 %4121
  %4123 = vrot.lane.b32.xlu0 %v3490, 32
  %v4124 = vpop.permute.xlu0 %4123
  %4125 = vrot.lane.b32.xlu0 %v3502, 32
  %v4126 = vpop.permute.xlu0 %4125
  %4127 = vrot.lane.b32.xlu0 %v3514, 32
  %v4128 = vpop.permute.xlu0 %4127
  %4129 = vrot.lane.b32.xlu0 %v3526, 32
  %v4130 = vpop.permute.xlu0 %4129
  %4131 = vrot.lane.b32.xlu0 %v3538, 32
  %v4132 = vpop.permute.xlu0 %4131
  %4133 = vrot.lane.b32.xlu0 %v3550, 32
  %v4134 = vpop.permute.xlu0 %4133
  %4135 = vrot.lane.b32.xlu0 %v3562, 32
  %v4136 = vpop.permute.xlu0 %4135
  %4137 = vrot.lane.b32.xlu0 %v4094, 32
  %v4138 = vpop.permute.xlu0 %4137
  %4139 = vrot.lane.b32.xlu0 %v3574, 32
  %v4140 = vpop.permute.xlu0 %4139
  %4141 = vrot.lane.b32.xlu0 %v3586, 32
  %v4142 = vpop.permute.xlu0 %4141
  %4143 = vrot.lane.b32.xlu0 %v3598, 32
  %v4144 = vpop.permute.xlu0 %4143
  %4145 = vrot.lane.b32.xlu0 %v3610, 32
  %v4146 = vpop.permute.xlu0 %4145
  %4147 = vrot.lane.b32.xlu0 %v3622, 32
  %v4148 = vpop.permute.xlu0 %4147
  %4149 = vrot.lane.b32.xlu0 %v3634, 32
  %v4150 = vpop.permute.xlu0 %4149
  %4151 = vrot.lane.b32.xlu0 %v3646, 32
  %v4152 = vpop.permute.xlu0 %4151
  %4153 = vrot.lane.b32.xlu0 %v3658, 32
  %v4154 = vpop.permute.xlu0 %4153
  %4155 = vrot.lane.b32.xlu0 %v3670, 32
  %v4156 = vpop.permute.xlu0 %4155
  %4157 = vrot.lane.b32.xlu0 %v3682, 32
  %v4158 = vpop.permute.xlu0 %4157
  %4159 = vrot.lane.b32.xlu0 %v3694, 32
  %v4160 = vpop.permute.xlu0 %4159
  %4161 = vrot.lane.b32.xlu0 %v3706, 32
  %v4162 = vpop.permute.xlu0 %4161
  %4163 = vrot.lane.b32.xlu0 %v3718, 32
  %v4164 = vpop.permute.xlu0 %4163
  %4165 = vrot.lane.b32.xlu0 %v3730, 32
  %v4166 = vpop.permute.xlu0 %4165
  %4167 = vrot.lane.b32.xlu0 %v3742, 32
  %v4168 = vpop.permute.xlu0 %4167
  %4169 = vrot.lane.b32.xlu0 %v4106, 32
  %v4170 = vpop.permute.xlu0 %4169
  %v4173 = vrot.slane %v3334, 1
  %v4174 = vrot.slane %v3366, 1
  %v4175 = vsel %vm995, %v4173, %v4174
  %v4176 = vrot.slane %v3350, 1
  %v4177 = vrot.slane %v3382, 1
  %v4178 = vsel %vm995, %v4176, %v4177
  %4179 = vrot.lane.b32.xlu0 %v3867, 40
  %v4180 = vpop.permute.xlu0 %4179
  %4181 = vrot.lane.b32.xlu0 %v3870, 40
  %v4182 = vpop.permute.xlu0 %4181
  %4183 = vrot.lane.b32.xlu0 %v3873, 40
  %v4184 = vpop.permute.xlu0 %4183
  %4185 = vrot.lane.b32.xlu0 %v3876, 40
  %v4186 = vpop.permute.xlu0 %4185
  %4187 = vrot.lane.b32.xlu0 %v3879, 40
  %v4188 = vpop.permute.xlu0 %4187
  %4189 = vrot.lane.b32.xlu0 %v3882, 40
  %v4190 = vpop.permute.xlu0 %4189
  %4191 = vrot.lane.b32.xlu0 %v3885, 40
  %v4192 = vpop.permute.xlu0 %4191
  %4193 = vrot.lane.b32.xlu0 %v3888, 40
  %v4194 = vpop.permute.xlu0 %4193
  %4195 = vrot.lane.b32.xlu0 %v3891, 40
  %v4196 = vpop.permute.xlu0 %4195
  %4197 = vrot.lane.b32.xlu0 %v3894, 40
  %v4198 = vpop.permute.xlu0 %4197
  %4199 = vrot.lane.b32.xlu0 %v3897, 40
  %v4200 = vpop.permute.xlu0 %4199
  %4201 = vrot.lane.b32.xlu0 %v3900, 40
  %v4202 = vpop.permute.xlu0 %4201
  %4203 = vrot.lane.b32.xlu0 %v3903, 40
  %v4204 = vpop.permute.xlu0 %4203
  %4205 = vrot.lane.b32.xlu0 %v3906, 40
  %v4206 = vpop.permute.xlu0 %4205
  %4207 = vrot.lane.b32.xlu0 %v3909, 40
  %v4208 = vpop.permute.xlu0 %4207
  %4209 = vrot.lane.b32.xlu0 %v4175, 40
  %v4210 = vpop.permute.xlu0 %4209
  %4211 = vrot.lane.b32.xlu0 %v3912, 40
  %v4212 = vpop.permute.xlu0 %4211
  %4213 = vrot.lane.b32.xlu0 %v3915, 40
  %v4214 = vpop.permute.xlu0 %4213
  %4215 = vrot.lane.b32.xlu0 %v3918, 40
  %v4216 = vpop.permute.xlu0 %4215
  %4217 = vrot.lane.b32.xlu0 %v3921, 40
  %v4218 = vpop.permute.xlu0 %4217
  %4219 = vrot.lane.b32.xlu0 %v3924, 40
  %v4220 = vpop.permute.xlu0 %4219
  %4221 = vrot.lane.b32.xlu0 %v3927, 40
  %v4222 = vpop.permute.xlu0 %4221
  %4223 = vrot.lane.b32.xlu0 %v3930, 40
  %v4224 = vpop.permute.xlu0 %4223
  %4225 = vrot.lane.b32.xlu0 %v3933, 40
  %v4226 = vpop.permute.xlu0 %4225
  %4227 = vrot.lane.b32.xlu0 %v3936, 40
  %v4228 = vpop.permute.xlu0 %4227
  %4229 = vrot.lane.b32.xlu0 %v3939, 40
  %v4230 = vpop.permute.xlu0 %4229
  %4231 = vrot.lane.b32.xlu0 %v3942, 40
  %v4232 = vpop.permute.xlu0 %4231
  %4233 = vrot.lane.b32.xlu0 %v3945, 40
  %v4234 = vpop.permute.xlu0 %4233
  %4235 = vrot.lane.b32.xlu0 %v3948, 40
  %v4236 = vpop.permute.xlu0 %4235
  %4237 = vrot.lane.b32.xlu0 %v3951, 40
  %v4238 = vpop.permute.xlu0 %4237
  %4239 = vrot.lane.b32.xlu0 %v3954, 40
  %v4240 = vpop.permute.xlu0 %4239
  %4241 = vrot.lane.b32.xlu0 %v4178, 40
  %v4242 = vpop.permute.xlu0 %4241
  %4243 = vrot.lane.b32.xlu0 %v3320, 48
  %v4244 = vpop.permute.xlu0 %4243
  %4245 = vrot.lane.b32.xlu0 %v3321, 48
  %v4246 = vpop.permute.xlu0 %4245
  %4247 = vrot.lane.b32.xlu0 %v3322, 48
  %v4248 = vpop.permute.xlu0 %4247
  %4249 = vrot.lane.b32.xlu0 %v3323, 48
  %v4250 = vpop.permute.xlu0 %4249
  %4251 = vrot.lane.b32.xlu0 %v3324, 48
  %v4252 = vpop.permute.xlu0 %4251
  %4253 = vrot.lane.b32.xlu0 %v3325, 48
  %v4254 = vpop.permute.xlu0 %4253
  %4255 = vrot.lane.b32.xlu0 %v3326, 48
  %v4256 = vpop.permute.xlu0 %4255
  %4257 = vrot.lane.b32.xlu0 %v3327, 48
  %v4258 = vpop.permute.xlu0 %4257
  %4259 = vrot.lane.b32.xlu0 %v3328, 48
  %v4260 = vpop.permute.xlu0 %4259
  %4261 = vrot.lane.b32.xlu0 %v3329, 48
  %v4262 = vpop.permute.xlu0 %4261
  %4263 = vrot.lane.b32.xlu0 %v3330, 48
  %v4264 = vpop.permute.xlu0 %4263
  %4265 = vrot.lane.b32.xlu0 %v3331, 48
  %v4266 = vpop.permute.xlu0 %4265
  %4267 = vrot.lane.b32.xlu0 %v3332, 48
  %v4268 = vpop.permute.xlu0 %4267
  %4269 = vrot.lane.b32.xlu0 %v3333, 48
  %v4270 = vpop.permute.xlu0 %4269
  %4271 = vrot.lane.b32.xlu0 %v3334, 48
  %v4272 = vpop.permute.xlu0 %4271
  %4273 = vrot.lane.b32.xlu0 %v432, 48
  %v4274 = vpop.permute.xlu0 %4273
  %4275 = vrot.lane.b32.xlu0 %v3336, 48
  %v4276 = vpop.permute.xlu0 %4275
  %4277 = vrot.lane.b32.xlu0 %v3337, 48
  %v4278 = vpop.permute.xlu0 %4277
  %4279 = vrot.lane.b32.xlu0 %v3338, 48
  %v4280 = vpop.permute.xlu0 %4279
  %4281 = vrot.lane.b32.xlu0 %v3339, 48
  %v4282 = vpop.permute.xlu0 %4281
  %4283 = vrot.lane.b32.xlu0 %v3340, 48
  %v4284 = vpop.permute.xlu0 %4283
  %4285 = vrot.lane.b32.xlu0 %v3341, 48
  %v4286 = vpop.permute.xlu0 %4285
  %4287 = vrot.lane.b32.xlu0 %v3342, 48
  %v4288 = vpop.permute.xlu0 %4287
  %4289 = vrot.lane.b32.xlu0 %v3343, 48
  %v4290 = vpop.permute.xlu0 %4289
  %4291 = vrot.lane.b32.xlu0 %v3344, 48
  %v4292 = vpop.permute.xlu0 %4291
  %4293 = vrot.lane.b32.xlu0 %v3345, 48
  %v4294 = vpop.permute.xlu0 %4293
  %4295 = vrot.lane.b32.xlu0 %v3346, 48
  %v4296 = vpop.permute.xlu0 %4295
  %4297 = vrot.lane.b32.xlu0 %v3347, 48
  %v4298 = vpop.permute.xlu0 %4297
  %4299 = vrot.lane.b32.xlu0 %v3348, 48
  %v4300 = vpop.permute.xlu0 %4299
  %4301 = vrot.lane.b32.xlu0 %v3349, 48
  %v4302 = vpop.permute.xlu0 %4301
  %4303 = vrot.lane.b32.xlu0 %v3350, 48
  %v4304 = vpop.permute.xlu0 %4303
  %4305 = vrot.lane.b32.xlu0 %v3406, 56
  %v4306 = vpop.permute.xlu0 %4305
  %4307 = vrot.lane.b32.xlu0 %v3418, 56
  %v4308 = vpop.permute.xlu0 %4307
  %4309 = vrot.lane.b32.xlu0 %v3430, 56
  %v4310 = vpop.permute.xlu0 %4309
  %4311 = vrot.lane.b32.xlu0 %v3442, 56
  %v4312 = vpop.permute.xlu0 %4311
  %4313 = vrot.lane.b32.xlu0 %v3454, 56
  %v4314 = vpop.permute.xlu0 %4313
  %4315 = vrot.lane.b32.xlu0 %v3466, 56
  %v4316 = vpop.permute.xlu0 %4315
  %4317 = vrot.lane.b32.xlu0 %v3478, 56
  %v4318 = vpop.permute.xlu0 %4317
  %4319 = vrot.lane.b32.xlu0 %v3490, 56
  %v4320 = vpop.permute.xlu0 %4319
  %4321 = vrot.lane.b32.xlu0 %v3502, 56
  %v4322 = vpop.permute.xlu0 %4321
  %4323 = vrot.lane.b32.xlu0 %v3514, 56
  %v4324 = vpop.permute.xlu0 %4323
  %4325 = vrot.lane.b32.xlu0 %v3526, 56
  %v4326 = vpop.permute.xlu0 %4325
  %4327 = vrot.lane.b32.xlu0 %v3538, 56
  %v4328 = vpop.permute.xlu0 %4327
  %4329 = vrot.lane.b32.xlu0 %v3550, 56
  %v4330 = vpop.permute.xlu0 %4329
  %4331 = vrot.lane.b32.xlu0 %v3562, 56
  %v4332 = vpop.permute.xlu0 %4331
  %4333 = vrot.lane.b32.xlu0 %v4094, 56
  %v4334 = vpop.permute.xlu0 %4333
  %4335 = vrot.lane.b32.xlu0 %v510, 56
  %v4336 = vpop.permute.xlu0 %4335
  %4337 = vrot.lane.b32.xlu0 %v3586, 56
  %v4338 = vpop.permute.xlu0 %4337
  %4339 = vrot.lane.b32.xlu0 %v3598, 56
  %v4340 = vpop.permute.xlu0 %4339
  %4341 = vrot.lane.b32.xlu0 %v3610, 56
  %v4342 = vpop.permute.xlu0 %4341
  %4343 = vrot.lane.b32.xlu0 %v3622, 56
  %v4344 = vpop.permute.xlu0 %4343
  %4345 = vrot.lane.b32.xlu0 %v3634, 56
  %v4346 = vpop.permute.xlu0 %4345
  %4347 = vrot.lane.b32.xlu0 %v3646, 56
  %v4348 = vpop.permute.xlu0 %4347
  %4349 = vrot.lane.b32.xlu0 %v3658, 56
  %v4350 = vpop.permute.xlu0 %4349
  %4351 = vrot.lane.b32.xlu0 %v3670, 56
  %v4352 = vpop.permute.xlu0 %4351
  %4353 = vrot.lane.b32.xlu0 %v3682, 56
  %v4354 = vpop.permute.xlu0 %4353
  %4355 = vrot.lane.b32.xlu0 %v3694, 56
  %v4356 = vpop.permute.xlu0 %4355
  %4357 = vrot.lane.b32.xlu0 %v3706, 56
  %v4358 = vpop.permute.xlu0 %4357
  %4359 = vrot.lane.b32.xlu0 %v3718, 56
  %v4360 = vpop.permute.xlu0 %4359
  %4361 = vrot.lane.b32.xlu0 %v3730, 56
  %v4362 = vpop.permute.xlu0 %4361
  %4363 = vrot.lane.b32.xlu0 %v3742, 56
  %v4364 = vpop.permute.xlu0 %4363
  %4365 = vrot.lane.b32.xlu0 %v4106, 56
  %v4366 = vpop.permute.xlu0 %4365
  %4367 = vrot.lane.b32.xlu0 %v3870, 64
  %v4368 = vpop.permute.xlu0 %4367
  %4369 = vrot.lane.b32.xlu0 %v3873, 64
  %v4370 = vpop.permute.xlu0 %4369
  %4371 = vrot.lane.b32.xlu0 %v3876, 64
  %v4372 = vpop.permute.xlu0 %4371
  %4373 = vrot.lane.b32.xlu0 %v3879, 64
  %v4374 = vpop.permute.xlu0 %4373
  %4375 = vrot.lane.b32.xlu0 %v3882, 64
  %v4376 = vpop.permute.xlu0 %4375
  %4377 = vrot.lane.b32.xlu0 %v3885, 64
  %v4378 = vpop.permute.xlu0 %4377
  %4379 = vrot.lane.b32.xlu0 %v3888, 64
  %v4380 = vpop.permute.xlu0 %4379
  %4381 = vrot.lane.b32.xlu0 %v3891, 64
  %v4382 = vpop.permute.xlu0 %4381
  %4383 = vrot.lane.b32.xlu0 %v3894, 64
  %v4384 = vpop.permute.xlu0 %4383
  %4385 = vrot.lane.b32.xlu0 %v3897, 64
  %v4386 = vpop.permute.xlu0 %4385
  %4387 = vrot.lane.b32.xlu0 %v3900, 64
  %v4388 = vpop.permute.xlu0 %4387
  %4389 = vrot.lane.b32.xlu0 %v3903, 64
  %v4390 = vpop.permute.xlu0 %4389
  %4391 = vrot.lane.b32.xlu0 %v3906, 64
  %v4392 = vpop.permute.xlu0 %4391
  %4393 = vrot.lane.b32.xlu0 %v3909, 64
  %v4394 = vpop.permute.xlu0 %4393
  %4395 = vrot.lane.b32.xlu0 %v4175, 64
  %v4396 = vpop.permute.xlu0 %4395
  %4397 = vrot.lane.b32.xlu0 %v998, 64
  %v4398 = vpop.permute.xlu0 %4397
  %4399 = vrot.lane.b32.xlu0 %v3915, 64
  %v4400 = vpop.permute.xlu0 %4399
  %4401 = vrot.lane.b32.xlu0 %v3918, 64
  %v4402 = vpop.permute.xlu0 %4401
  %4403 = vrot.lane.b32.xlu0 %v3921, 64
  %v4404 = vpop.permute.xlu0 %4403
  %4405 = vrot.lane.b32.xlu0 %v3924, 64
  %v4406 = vpop.permute.xlu0 %4405
  %4407 = vrot.lane.b32.xlu0 %v3927, 64
  %v4408 = vpop.permute.xlu0 %4407
  %4409 = vrot.lane.b32.xlu0 %v3930, 64
  %v4410 = vpop.permute.xlu0 %4409
  %4411 = vrot.lane.b32.xlu0 %v3933, 64
  %v4412 = vpop.permute.xlu0 %4411
  %4413 = vrot.lane.b32.xlu0 %v3936, 64
  %v4414 = vpop.permute.xlu0 %4413
  %4415 = vrot.lane.b32.xlu0 %v3939, 64
  %v4416 = vpop.permute.xlu0 %4415
  %4417 = vrot.lane.b32.xlu0 %v3942, 64
  %v4418 = vpop.permute.xlu0 %4417
  %4419 = vrot.lane.b32.xlu0 %v3945, 64
  %v4420 = vpop.permute.xlu0 %4419
  %4421 = vrot.lane.b32.xlu0 %v3948, 64
  %v4422 = vpop.permute.xlu0 %4421
  %4423 = vrot.lane.b32.xlu0 %v3951, 64
  %v4424 = vpop.permute.xlu0 %4423
  %4425 = vrot.lane.b32.xlu0 %v3954, 64
  %v4426 = vpop.permute.xlu0 %4425
  %4427 = vrot.lane.b32.xlu0 %v4178, 64
  %v4428 = vpop.permute.xlu0 %4427
  %v4430 = vsel %vm1626, %v432, %v3744
  %v4432 = vsel %vm1626, %v3319, %v3746
  %v4434 = vsel %vm1626, %v3320, %v3748
  %v4436 = vsel %vm1626, %v3321, %v3750
  %v4438 = vsel %vm1626, %v3322, %v3752
  %v4440 = vsel %vm1626, %v3323, %v3754
  %v4442 = vsel %vm1626, %v3324, %v3756
  %v4444 = vsel %vm1626, %v3325, %v3758
  %v4446 = vsel %vm1626, %v3326, %v3760
  %v4448 = vsel %vm1626, %v3327, %v3762
  %v4450 = vsel %vm1626, %v3328, %v3764
  %v4452 = vsel %vm1626, %v3329, %v3766
  %v4454 = vsel %vm1626, %v3330, %v3768
  %v4456 = vsel %vm1626, %v3331, %v3770
  %v4458 = vsel %vm1626, %v3332, %v3772
  %v4460 = vsel %vm1626, %v3333, %v3774
  %v4462 = vsel %vm1626, %v3335, %v3776
  %v4464 = vsel %vm1626, %v3336, %v3778
  %v4466 = vsel %vm1626, %v3337, %v3780
  %v4468 = vsel %vm1626, %v3338, %v3782
  %v4470 = vsel %vm1626, %v3339, %v3784
  %v4472 = vsel %vm1626, %v3340, %v3786
  %v4474 = vsel %vm1626, %v3341, %v3788
  %v4476 = vsel %vm1626, %v3342, %v3790
  %v4478 = vsel %vm1626, %v3343, %v3792
  %v4480 = vsel %vm1626, %v3344, %v3794
  %v4482 = vsel %vm1626, %v3345, %v3796
  %v4484 = vsel %vm1626, %v3346, %v3798
  %v4486 = vsel %vm1626, %v3347, %v3800
  %v4488 = vsel %vm1626, %v3348, %v3802
  %v4490 = vsel %vm1626, %v3349, %v3804
  %v4492 = vsel %vm1754, %v4430, %v3956
  %v4494 = vsel %vm1754, %v4432, %v3958
  %v4496 = vsel %vm1754, %v4434, %v3960
  %v4498 = vsel %vm1754, %v4436, %v3962
  %v4500 = vsel %vm1754, %v4438, %v3964
  %v4502 = vsel %vm1754, %v4440, %v3966
  %v4504 = vsel %vm1754, %v4442, %v3968
  %v4506 = vsel %vm1754, %v4444, %v3970
  %v4508 = vsel %vm1754, %v4446, %v3972
  %v4510 = vsel %vm1754, %v4448, %v3974
  %v4512 = vsel %vm1754, %v4450, %v3976
  %v4514 = vsel %vm1754, %v4452, %v3978
  %v4516 = vsel %vm1754, %v4454, %v3980
  %v4518 = vsel %vm1754, %v4456, %v3982
  %v4520 = vsel %vm1754, %v4458, %v3984
  %v4522 = vsel %vm1754, %v4460, %v3986
  %v4524 = vsel %vm1754, %v4462, %v3988
  %v4526 = vsel %vm1754, %v4464, %v3990
  %v4528 = vsel %vm1754, %v4466, %v3992
  %v4530 = vsel %vm1754, %v4468, %v3994
  %v4532 = vsel %vm1754, %v4470, %v3996
  %v4534 = vsel %vm1754, %v4472, %v3998
  %v4536 = vsel %vm1754, %v4474, %v4000
  %v4538 = vsel %vm1754, %v4476, %v4002
  %v4540 = vsel %vm1754, %v4478, %v4004
  %v4542 = vsel %vm1754, %v4480, %v4006
  %v4544 = vsel %vm1754, %v4482, %v4008
  %v4546 = vsel %vm1754, %v4484, %v4010
  %v4548 = vsel %vm1754, %v4486, %v4012
  %v4550 = vsel %vm1754, %v4488, %v4014
  %v4552 = vsel %vm1754, %v4490, %v4016
  %v4554 = vsel %vm1884, %v4492, %v4020
  %v4556 = vsel %vm1884, %v4494, %v4022
  %v4558 = vsel %vm1884, %v4496, %v4024
  %v4560 = vsel %vm1884, %v4498, %v4026
  %v4562 = vsel %vm1884, %v4500, %v4028
  %v4564 = vsel %vm1884, %v4502, %v4030
  %v4566 = vsel %vm1884, %v4504, %v4032
  %v4568 = vsel %vm1884, %v4506, %v4034
  %v4570 = vsel %vm1884, %v4508, %v4036
  %v4572 = vsel %vm1884, %v4510, %v4038
  %v4574 = vsel %vm1884, %v4512, %v4040
  %v4576 = vsel %vm1884, %v4514, %v4042
  %v4578 = vsel %vm1884, %v4516, %v4044
  %v4580 = vsel %vm1884, %v4518, %v4046
  %v4582 = vsel %vm1884, %v4520, %v4048
  %v4584 = vsel %vm1884, %v4522, %v4050
  %v4586 = vsel %vm1884, %v4492, %v4052
  %v4588 = vsel %vm1884, %v4524, %v4054
  %v4590 = vsel %vm1884, %v4526, %v4056
  %v4592 = vsel %vm1884, %v4528, %v4058
  %v4594 = vsel %vm1884, %v4530, %v4060
  %v4596 = vsel %vm1884, %v4532, %v4062
  %v4598 = vsel %vm1884, %v4534, %v4064
  %v4600 = vsel %vm1884, %v4536, %v4066
  %v4602 = vsel %vm1884, %v4538, %v4068
  %v4604 = vsel %vm1884, %v4540, %v4070
  %v4606 = vsel %vm1884, %v4542, %v4072
  %v4608 = vsel %vm1884, %v4544, %v4074
  %v4610 = vsel %vm1884, %v4546, %v4076
  %v4612 = vsel %vm1884, %v4548, %v4078
  %v4614 = vsel %vm1884, %v4550, %v4080
  %v4616 = vsel %vm1884, %v4552, %v4082
  %v4618 = vsel %vm2012, %v4554, %v4108
  %v4620 = vsel %vm2012, %v4556, %v4110
  %v4622 = vsel %vm2012, %v4558, %v4112
  %v4624 = vsel %vm2012, %v4560, %v4114
  %v4626 = vsel %vm2012, %v4562, %v4116
  %v4628 = vsel %vm2012, %v4564, %v4118
  %v4630 = vsel %vm2012, %v4566, %v4120
  %v4632 = vsel %vm2012, %v4568, %v4122
  %v4634 = vsel %vm2012, %v4570, %v4124
  %v4636 = vsel %vm2012, %v4572, %v4126
  %v4638 = vsel %vm2012, %v4574, %v4128
  %v4640 = vsel %vm2012, %v4576, %v4130
  %v4642 = vsel %vm2012, %v4578, %v4132
  %v4644 = vsel %vm2012, %v4580, %v4134
  %v4646 = vsel %vm2012, %v4582, %v4136
  %v4648 = vsel %vm2012, %v4584, %v4138
  %v4650 = vsel %vm2012, %v4586, %v4140
  %v4652 = vsel %vm2012, %v4588, %v4142
  %v4654 = vsel %vm2012, %v4590, %v4144
  %v4656 = vsel %vm2012, %v4592, %v4146
  %v4658 = vsel %vm2012, %v4594, %v4148
  %v4660 = vsel %vm2012, %v4596, %v4150
  %v4662 = vsel %vm2012, %v4598, %v4152
  %v4664 = vsel %vm2012, %v4600, %v4154
  %v4666 = vsel %vm2012, %v4602, %v4156
  %v4668 = vsel %vm2012, %v4604, %v4158
  %v4670 = vsel %vm2012, %v4606, %v4160
  %v4672 = vsel %vm2012, %v4608, %v4162
  %v4674 = vsel %vm2012, %v4610, %v4164
  %v4676 = vsel %vm2012, %v4612, %v4166
  %v4678 = vsel %vm2012, %v4614, %v4168
  %v4680 = vsel %vm2012, %v4616, %v4170
  %vm4681 = vcmask 326656
  %v4683 = vsel %vm4681, %v4618, %v4180
  %v4685 = vsel %vm4681, %v4620, %v4182
  %v4687 = vsel %vm4681, %v4622, %v4184
  %v4689 = vsel %vm4681, %v4624, %v4186
  %v4691 = vsel %vm4681, %v4626, %v4188
  %v4693 = vsel %vm4681, %v4628, %v4190
  %v4695 = vsel %vm4681, %v4630, %v4192
  %v4697 = vsel %vm4681, %v4632, %v4194
  %v4699 = vsel %vm4681, %v4634, %v4196
  %v4701 = vsel %vm4681, %v4636, %v4198
  %v4703 = vsel %vm4681, %v4638, %v4200
  %v4705 = vsel %vm4681, %v4640, %v4202
  %v4707 = vsel %vm4681, %v4642, %v4204
  %v4709 = vsel %vm4681, %v4644, %v4206
  %v4711 = vsel %vm4681, %v4646, %v4208
  %v4713 = vsel %vm4681, %v4648, %v4210
  %v4715 = vsel %vm4681, %v4650, %v4212
  %v4717 = vsel %vm4681, %v4652, %v4214
  %v4719 = vsel %vm4681, %v4654, %v4216
  %v4721 = vsel %vm4681, %v4656, %v4218
  %v4723 = vsel %vm4681, %v4658, %v4220
  %v4725 = vsel %vm4681, %v4660, %v4222
  %v4727 = vsel %vm4681, %v4662, %v4224
  %v4729 = vsel %vm4681, %v4664, %v4226
  %v4731 = vsel %vm4681, %v4666, %v4228
  %v4733 = vsel %vm4681, %v4668, %v4230
  %v4735 = vsel %vm4681, %v4670, %v4232
  %v4737 = vsel %vm4681, %v4672, %v4234
  %v4739 = vsel %vm4681, %v4674, %v4236
  %v4741 = vsel %vm4681, %v4676, %v4238
  %v4743 = vsel %vm4681, %v4678, %v4240
  %v4745 = vsel %vm4681, %v4680, %v4242
  %vm4746 = vcmask 392192
  %v4748 = vsel %vm4746, %v4683, %v4244
  %v4750 = vsel %vm4746, %v4685, %v4246
  %v4752 = vsel %vm4746, %v4687, %v4248
  %v4754 = vsel %vm4746, %v4689, %v4250
  %v4756 = vsel %vm4746, %v4691, %v4252
  %v4758 = vsel %vm4746, %v4693, %v4254
  %v4760 = vsel %vm4746, %v4695, %v4256
  %v4762 = vsel %vm4746, %v4697, %v4258
  %v4764 = vsel %vm4746, %v4699, %v4260
  %v4766 = vsel %vm4746, %v4701, %v4262
  %v4768 = vsel %vm4746, %v4703, %v4264
  %v4770 = vsel %vm4746, %v4705, %v4266
  %v4772 = vsel %vm4746, %v4707, %v4268
  %v4774 = vsel %vm4746, %v4709, %v4270
  %v4776 = vsel %vm4746, %v4711, %v4272
  %v4778 = vsel %vm4746, %v4713, %v4274
  %v4780 = vsel %vm4746, %v4715, %v4276
  %v4782 = vsel %vm4746, %v4717, %v4278
  %v4784 = vsel %vm4746, %v4719, %v4280
  %v4786 = vsel %vm4746, %v4721, %v4282
  %v4788 = vsel %vm4746, %v4723, %v4284
  %v4790 = vsel %vm4746, %v4725, %v4286
  %v4792 = vsel %vm4746, %v4727, %v4288
  %v4794 = vsel %vm4746, %v4729, %v4290
  %v4796 = vsel %vm4746, %v4731, %v4292
  %v4798 = vsel %vm4746, %v4733, %v4294
  %v4800 = vsel %vm4746, %v4735, %v4296
  %v4802 = vsel %vm4746, %v4737, %v4298
  %v4804 = vsel %vm4746, %v4739, %v4300
  %v4806 = vsel %vm4746, %v4741, %v4302
  %v4808 = vsel %vm4746, %v4743, %v4304
  %v4809 = vsel %vm4746, %v4745, %v4274
  %vm4810 = vcmask 457728
  %v4812 = vsel %vm4810, %v4748, %v4306
  %v4814 = vsel %vm4810, %v4750, %v4308
  %v4816 = vsel %vm4810, %v4752, %v4310
  %v4818 = vsel %vm4810, %v4754, %v4312
  %v4820 = vsel %vm4810, %v4756, %v4314
  %v4822 = vsel %vm4810, %v4758, %v4316
  %v4824 = vsel %vm4810, %v4760, %v4318
  %v4826 = vsel %vm4810, %v4762, %v4320
  %v4828 = vsel %vm4810, %v4764, %v4322
  %v4830 = vsel %vm4810, %v4766, %v4324
  %v4832 = vsel %vm4810, %v4768, %v4326
  %v4834 = vsel %vm4810, %v4770, %v4328
  %v4836 = vsel %vm4810, %v4772, %v4330
  %v4838 = vsel %vm4810, %v4774, %v4332
  %v4840 = vsel %vm4810, %v4776, %v4334
  %v4842 = vsel %vm4810, %v4778, %v4336
  %v4844 = vsel %vm4810, %v4780, %v4338
  %v4846 = vsel %vm4810, %v4782, %v4340
  %v4848 = vsel %vm4810, %v4784, %v4342
  %v4850 = vsel %vm4810, %v4786, %v4344
  %v4852 = vsel %vm4810, %v4788, %v4346
  %v4854 = vsel %vm4810, %v4790, %v4348
  %v4856 = vsel %vm4810, %v4792, %v4350
  %v4858 = vsel %vm4810, %v4794, %v4352
  %v4860 = vsel %vm4810, %v4796, %v4354
  %v4862 = vsel %vm4810, %v4798, %v4356
  %v4864 = vsel %vm4810, %v4800, %v4358
  %v4866 = vsel %vm4810, %v4802, %v4360
  %v4868 = vsel %vm4810, %v4804, %v4362
  %v4870 = vsel %vm4810, %v4806, %v4364
  %v4872 = vsel %vm4810, %v4808, %v4366
  %v4873 = vsel %vm4810, %v4809, %v4336
  %vm4874 = vcmask 523264
  %v4876 = vsel %vm4874, %v4812, %v4368
  %v4878 = vsel %vm4874, %v4814, %v4370
  %v4880 = vsel %vm4874, %v4816, %v4372
  %v4882 = vsel %vm4874, %v4818, %v4374
  %v4884 = vsel %vm4874, %v4820, %v4376
  %v4886 = vsel %vm4874, %v4822, %v4378
  %v4888 = vsel %vm4874, %v4824, %v4380
  %v4890 = vsel %vm4874, %v4826, %v4382
  %v4892 = vsel %vm4874, %v4828, %v4384
  %v4894 = vsel %vm4874, %v4830, %v4386
  %v4896 = vsel %vm4874, %v4832, %v4388
  %v4898 = vsel %vm4874, %v4834, %v4390
  %v4900 = vsel %vm4874, %v4836, %v4392
  %v4902 = vsel %vm4874, %v4838, %v4394
  %v4904 = vsel %vm4874, %v4840, %v4396
  %v4906 = vsel %vm4874, %v4842, %v4398
  %v4908 = vsel %vm4874, %v4844, %v4400
  %v4910 = vsel %vm4874, %v4846, %v4402
  %v4912 = vsel %vm4874, %v4848, %v4404
  %v4914 = vsel %vm4874, %v4850, %v4406
  %v4916 = vsel %vm4874, %v4852, %v4408
  %v4918 = vsel %vm4874, %v4854, %v4410
  %v4920 = vsel %vm4874, %v4856, %v4412
  %v4922 = vsel %vm4874, %v4858, %v4414
  %v4924 = vsel %vm4874, %v4860, %v4416
  %v4926 = vsel %vm4874, %v4862, %v4418
  %v4928 = vsel %vm4874, %v4864, %v4420
  %v4930 = vsel %vm4874, %v4866, %v4422
  %v4932 = vsel %vm4874, %v4868, %v4424
  %v4934 = vsel %vm4874, %v4870, %v4426
  %v4936 = vsel %vm4874, %v4872, %v4428
  %v4937 = vsel %vm4874, %v4873, %v4398
  %v4938 = vld [vmem:[%s4] sm:$0xf]
  %v4939 = vld [vmem:[%s4 + $0x4] sm:$0xf]
  %v4940 = vld [vmem:[%s4 + $0x8] sm:$0xf]
  %v4941 = vld [vmem:[%s4 + $0xc] sm:$0xf]
  %v4942 = vld [vmem:[%s4 + $0x10] sm:$0xf]
  %v4943 = vld [vmem:[%s4 + $0x14] sm:$0xf]
  %v4944 = vld [vmem:[%s4 + $0x18] sm:$0xf]
  %v4945 = vld [vmem:[%s4 + $0x1c] sm:$0xf]
  %v4946 = vld [vmem:[%s4 + $0x20] sm:$0xf]
  %v4956 = vunpack.c.l.b16 %v4938
  %v4957 = vunpack.c.l.b16 %v4939
  %v4958 = vunpack.c.l.b16 %v4940
  %v4959 = vunpack.c.l.b16 %v4941
  %v4960 = vunpack.c.l.b16 %v4942
  %v4961 = vunpack.c.l.b16 %v4943
  %v4962 = vunpack.c.l.b16 %v4944
  %v4963 = vunpack.c.l.b16 %v4945
  %v4964 = vunpack.c.l.b16 %v4946
  %v4965 = vpack.c.b16 %v4957, %v4956
  %v4966 = vpack.c.b16 %v4959, %v4958
  %v4967 = vpack.c.b16 %v4961, %v4960
  %v4968 = vpack.c.b16 %v4963, %v4962
  %v4969 = vpack.c.b16 %v4964, %v4964
  %vm4974 = vcmask 588800
  %v4975 = vsel %vm4974, %v4876, 0
  %v4977 = vsel %vm4974, %v4878, 0
  %v4979 = vsel %vm4974, %v4880, 0
  %v4981 = vsel %vm4974, %v4882, 0
  %v4983 = vsel %vm4974, %v4884, 0
  %v4985 = vsel %vm4974, %v4886, 0
  %v4987 = vsel %vm4974, %v4888, 0
  %v4989 = vsel %vm4974, %v4890, 0
  %v4991 = vsel %vm4974, %v4892, 0
  %v4993 = vsel %vm4974, %v4894, 0
  %v4995 = vsel %vm4974, %v4896, 0
  %v4997 = vsel %vm4974, %v4898, 0
  %v4999 = vsel %vm4974, %v4900, 0
  %v5001 = vsel %vm4974, %v4902, 0
  %v5003 = vsel %vm4974, %v4904, 0
  %v5005 = vsel %vm4974, %v4906, 0
  %v5007 = vsel %vm4974, %v4908, 0
  %v5009 = vsel %vm4974, %v4910, 0
  %v5011 = vsel %vm4974, %v4912, 0
  %v5013 = vsel %vm4974, %v4914, 0
  %v5015 = vsel %vm4974, %v4916, 0
  %v5017 = vsel %vm4974, %v4918, 0
  %v5019 = vsel %vm4974, %v4920, 0
  %v5021 = vsel %vm4974, %v4922, 0
  %v5023 = vsel %vm4974, %v4924, 0
  %v5025 = vsel %vm4974, %v4926, 0
  %v5027 = vsel %vm4974, %v4928, 0
  %v5029 = vsel %vm4974, %v4930, 0
  %v5031 = vsel %vm4974, %v4932, 0
  %v5033 = vsel %vm4974, %v4934, 0
  %v5035 = vsel %vm4974, %v4936, 0
  %v5037 = vsel %vm4974, %v4937, 0
  %vm5039 = vcmask 1043456
  %v5041 = vsel %vm5039, %v4969, 0
  %5043 = vmatprep.subr.bf16.mxu0 0
  %5044 = vmatpush1.bf16.msra.mxu0 %v4965
  %5045 = vmatprep.subr.bf16.mxu0 0
  %5046 = vmatpush1.bf16.msra.mxu0 %v4966
  %5047 = vmatprep.subr.bf16.mxu0 0
  %5048 = vmatpush1.bf16.msra.mxu0 %v4967
  %5049 = vmatprep.subr.bf16.mxu0 0
  %5050 = vmatpush1.bf16.msra.mxu0 %v4968
  %5051 = vmatprep.subr.bf16.mxu0 0
  %5052 = vmatpush1.bf16.msra.mxu0 %v5041
  %5053 = vmatprep.subr.bf16.mxu0 0
  %5054 = vmatpush1.bf16.msra.mxu0 0
  %5055 = vmatprep.subr.bf16.mxu0 0
  %5056 = vmatpush1.bf16.msra.mxu0 0
  %5057 = vmatprep.subr.bf16.mxu0 0
  %5058 = vmatpush1.bf16.msra.mxu0 0
  %5059 = vmatprep.subr.bf16.mxu0 0
  %5060 = vmatpush1.bf16.msra.mxu0 0
  %5061 = vmatprep.subr.bf16.mxu0 0
  %5062 = vmatpush1.bf16.msra.mxu0 0
  %5063 = vmatprep.subr.bf16.mxu0 0
  %5064 = vmatpush1.bf16.msra.mxu0 0
  %5065 = vmatprep.subr.bf16.mxu0 0
  %5066 = vmatpush1.bf16.msra.mxu0 0
  %5067 = vmatprep.subr.bf16.mxu0 0
  %5068 = vmatpush1.bf16.msra.mxu0 0
  %5069 = vmatprep.subr.bf16.mxu0 0
  %5070 = vmatpush1.bf16.msra.mxu0 0
  %5071 = vmatprep.subr.bf16.mxu0 0
  %5072 = vmatpush1.bf16.msra.mxu0 0
  %5073 = vmatprep.subr.bf16.mxu0 0
  %5074 = vmatpush1.bf16.msra.mxu0 0
  %5075 = vmatprep.mubr.bf16.mxu0 0
  %5076 = vmatmul.mubr.bf16.gmra.mrb[0].mxu0 %v4975
  %v5077 = vpop.f32.mrb[0].mxu0
  %v5078 = vadd.f32 0.0, %v5077
  %v5079 = vpop.f32.mrb[0].mxu0
  %v5080 = vpop.f32.mrb[0].mxu0
  %v5081 = vadd.f32 0.0, %v5080
  %v5082 = vpop.f32.mrb[0].mxu0
  %5083 = vmatprep.mubr.bf16.mxu0 0
  %5084 = vmatmul.mubr.bf16.gmra.mrb[0].mxu0 %v4977
  %v5085 = vpop.f32.mrb[0].mxu0
  %v5086 = vadd.f32 0.0, %v5085
  %v5087 = vpop.f32.mrb[0].mxu0
  %v5088 = vpop.f32.mrb[0].mxu0
  %v5089 = vadd.f32 0.0, %v5088
  %v5090 = vpop.f32.mrb[0].mxu0
  %5091 = vmatprep.mubr.bf16.mxu0 0
  %5092 = vmatmul.mubr.bf16.gmra.mrb[0].mxu0 %v4979
  %v5093 = vpop.f32.mrb[0].mxu0
  %v5094 = vadd.f32 0.0, %v5093
  %v5095 = vpop.f32.mrb[0].mxu0
  %v5096 = vpop.f32.mrb[0].mxu0
  %v5097 = vadd.f32 0.0, %v5096
  %v5098 = vpop.f32.mrb[0].mxu0
  %5099 = vmatprep.mubr.bf16.mxu0 0
  %5100 = vmatmul.mubr.bf16.gmra.mrb[0].mxu0 %v4981
  %v5101 = vpop.f32.mrb[0].mxu0
  %v5102 = vadd.f32 0.0, %v5101
  %v5103 = vpop.f32.mrb[0].mxu0
  %v5104 = vpop.f32.mrb[0].mxu0
  %v5105 = vadd.f32 0.0, %v5104
  %v5106 = vpop.f32.mrb[0].mxu0
  %5107 = vmatprep.mubr.bf16.mxu0 0
  %5108 = vmatmul.mubr.bf16.gmra.mrb[0].mxu0 %v4983
  %v5109 = vpop.f32.mrb[0].mxu0
  %v5110 = vadd.f32 0.0, %v5109
  %v5111 = vpop.f32.mrb[0].mxu0
  %v5112 = vpop.f32.mrb[0].mxu0
  %v5113 = vadd.f32 0.0, %v5112
  %v5114 = vpop.f32.mrb[0].mxu0
  %5115 = vmatprep.mubr.bf16.mxu0 0
  %5116 = vmatmul.mubr.bf16.gmra.mrb[0].mxu0 %v4985
  %v5117 = vpop.f32.mrb[0].mxu0
  %v5118 = vadd.f32 0.0, %v5117
  %v5119 = vpop.f32.mrb[0].mxu0
  %v5120 = vpop.f32.mrb[0].mxu0
  %v5121 = vadd.f32 0.0, %v5120
  %v5122 = vpop.f32.mrb[0].mxu0
  %5123 = vmatprep.mubr.bf16.mxu0 0
  %5124 = vmatmul.mubr.bf16.gmra.mrb[0].mxu0 %v4987
  %v5125 = vpop.f32.mrb[0].mxu0
  %v5126 = vadd.f32 0.0, %v5125
  %v5127 = vpop.f32.mrb[0].mxu0
  %v5128 = vpop.f32.mrb[0].mxu0
  %v5129 = vadd.f32 0.0, %v5128
  %v5130 = vpop.f32.mrb[0].mxu0
  %5131 = vmatprep.mubr.bf16.mxu0 0
  %5132 = vmatmul.mubr.bf16.gmra.mrb[0].mxu0 %v4989
  %v5133 = vpop.f32.mrb[0].mxu0
  %v5134 = vadd.f32 0.0, %v5133
  %v5135 = vpop.f32.mrb[0].mxu0
  %v5136 = vpop.f32.mrb[0].mxu0
  %v5137 = vadd.f32 0.0, %v5136
  %v5138 = vpop.f32.mrb[0].mxu0
  %5139 = vmatprep.mubr.bf16.mxu0 0
  %5140 = vmatmul.mubr.bf16.gmra.mrb[0].mxu0 %v4991
  %v5141 = vpop.f32.mrb[0].mxu0
  %v5142 = vadd.f32 0.0, %v5141
  %v5143 = vpop.f32.mrb[0].mxu0
  %v5144 = vpop.f32.mrb[0].mxu0
  %v5145 = vadd.f32 0.0, %v5144
  %v5146 = vpop.f32.mrb[0].mxu0
  %5147 = vmatprep.mubr.bf16.mxu0 0
  %5148 = vmatmul.mubr.bf16.gmra.mrb[0].mxu0 %v4993
  %v5149 = vpop.f32.mrb[0].mxu0
  %v5150 = vadd.f32 0.0, %v5149
  %v5151 = vpop.f32.mrb[0].mxu0
  %v5152 = vpop.f32.mrb[0].mxu0
  %v5153 = vadd.f32 0.0, %v5152
  %v5154 = vpop.f32.mrb[0].mxu0
  %5155 = vmatprep.mubr.bf16.mxu0 0
  %5156 = vmatmul.mubr.bf16.gmra.mrb[0].mxu0 %v4995
  %v5157 = vpop.f32.mrb[0].mxu0
  %v5158 = vadd.f32 0.0, %v5157
  %v5159 = vpop.f32.mrb[0].mxu0
  %v5160 = vpop.f32.mrb[0].mxu0
  %v5161 = vadd.f32 0.0, %v5160
  %v5162 = vpop.f32.mrb[0].mxu0
  %5163 = vmatprep.mubr.bf16.mxu0 0
  %5164 = vmatmul.mubr.bf16.gmra.mrb[0].mxu0 %v4997
  %v5165 = vpop.f32.mrb[0].mxu0
  %v5166 = vadd.f32 0.0, %v5165
  %v5167 = vpop.f32.mrb[0].mxu0
  %v5168 = vpop.f32.mrb[0].mxu0
  %v5169 = vadd.f32 0.0, %v5168
  %v5170 = vpop.f32.mrb[0].mxu0
  %5171 = vmatprep.mubr.bf16.mxu0 0
  %5172 = vmatmul.mubr.bf16.gmra.mrb[0].mxu0 %v4999
  %v5173 = vpop.f32.mrb[0].mxu0
  %v5174 = vadd.f32 0.0, %v5173
  %v5175 = vpop.f32.mrb[0].mxu0
  %v5176 = vpop.f32.mrb[0].mxu0
  %v5177 = vadd.f32 0.0, %v5176
  %v5178 = vpop.f32.mrb[0].mxu0
  %5179 = vmatprep.mubr.bf16.mxu0 0
  %5180 = vmatmul.mubr.bf16.gmra.mrb[0].mxu0 %v5001
  %v5181 = vpop.f32.mrb[0].mxu0
  %v5182 = vadd.f32 0.0, %v5181
  %v5183 = vpop.f32.mrb[0].mxu0
  %v5184 = vpop.f32.mrb[0].mxu0
  %v5185 = vadd.f32 0.0, %v5184
  %v5186 = vpop.f32.mrb[0].mxu0
  %5187 = vmatprep.mubr.bf16.mxu0 0
  %5188 = vmatmul.mubr.bf16.gmra.mrb[0].mxu0 %v5003
  %v5189 = vpop.f32.mrb[0].mxu0
  %v5190 = vadd.f32 0.0, %v5189
  %v5191 = vpop.f32.mrb[0].mxu0
  %v5192 = vpop.f32.mrb[0].mxu0
  %v5193 = vadd.f32 0.0, %v5192
  %v5194 = vpop.f32.mrb[0].mxu0
  %5195 = vmatprep.mubr.bf16.mxu0 0
  %5196 = vmatmul.mubr.bf16.gmra.mrb[0].mxu0 %v5005
  %v5197 = vpop.f32.mrb[0].mxu0
  %v5198 = vadd.f32 0.0, %v5197
  %v5199 = vpop.f32.mrb[0].mxu0
  %v5200 = vpop.f32.mrb[0].mxu0
  %v5201 = vadd.f32 0.0, %v5200
  %v5202 = vpop.f32.mrb[0].mxu0
  %5203 = vmatprep.mubr.bf16.mxu0 0
  %5204 = vmatmul.mubr.bf16.gmra.mrb[0].mxu0 %v5007
  %v5205 = vpop.f32.mrb[0].mxu0
  %v5206 = vadd.f32 0.0, %v5205
  %v5207 = vpop.f32.mrb[0].mxu0
  %v5208 = vpop.f32.mrb[0].mxu0
  %v5209 = vadd.f32 0.0, %v5208
  %v5210 = vpop.f32.mrb[0].mxu0
  %5211 = vmatprep.mubr.bf16.mxu0 0
  %5212 = vmatmul.mubr.bf16.gmra.mrb[0].mxu0 %v5009
  %v5213 = vpop.f32.mrb[0].mxu0
  %v5214 = vadd.f32 0.0, %v5213
  %v5215 = vpop.f32.mrb[0].mxu0
  %v5216 = vpop.f32.mrb[0].mxu0
  %v5217 = vadd.f32 0.0, %v5216
  %v5218 = vpop.f32.mrb[0].mxu0
  %5219 = vmatprep.mubr.bf16.mxu0 0
  %5220 = vmatmul.mubr.bf16.gmra.mrb[0].mxu0 %v5011
  %v5221 = vpop.f32.mrb[0].mxu0
  %v5222 = vadd.f32 0.0, %v5221
  %v5223 = vpop.f32.mrb[0].mxu0
  %v5224 = vpop.f32.mrb[0].mxu0
  %v5225 = vadd.f32 0.0, %v5224
  %v5226 = vpop.f32.mrb[0].mxu0
  %5227 = vmatprep.mubr.bf16.mxu0 0
  %5228 = vmatmul.mubr.bf16.gmra.mrb[0].mxu0 %v5013
  %v5229 = vpop.f32.mrb[0].mxu0
  %v5230 = vadd.f32 0.0, %v5229
  %v5231 = vpop.f32.mrb[0].mxu0
  %v5232 = vpop.f32.mrb[0].mxu0
  %v5233 = vadd.f32 0.0, %v5232
  %v5234 = vpop.f32.mrb[0].mxu0
  %5235 = vmatprep.mubr.bf16.mxu0 0
  %5236 = vmatmul.mubr.bf16.gmra.mrb[0].mxu0 %v5015
  %v5237 = vpop.f32.mrb[0].mxu0
  %v5238 = vadd.f32 0.0, %v5237
  %v5239 = vpop.f32.mrb[0].mxu0
  %v5240 = vpop.f32.mrb[0].mxu0
  %v5241 = vadd.f32 0.0, %v5240
  %v5242 = vpop.f32.mrb[0].mxu0
  %5243 = vmatprep.mubr.bf16.mxu0 0
  %5244 = vmatmul.mubr.bf16.gmra.mrb[0].mxu0 %v5017
  %v5245 = vpop.f32.mrb[0].mxu0
  %v5246 = vadd.f32 0.0, %v5245
  %v5247 = vpop.f32.mrb[0].mxu0
  %v5248 = vpop.f32.mrb[0].mxu0
  %v5249 = vadd.f32 0.0, %v5248
  %v5250 = vpop.f32.mrb[0].mxu0
  %5251 = vmatprep.mubr.bf16.mxu0 0
  %5252 = vmatmul.mubr.bf16.gmra.mrb[0].mxu0 %v5019
  %v5253 = vpop.f32.mrb[0].mxu0
  %v5254 = vadd.f32 0.0, %v5253
  %v5255 = vpop.f32.mrb[0].mxu0
  %v5256 = vpop.f32.mrb[0].mxu0
  %v5257 = vadd.f32 0.0, %v5256
  %v5258 = vpop.f32.mrb[0].mxu0
  %5259 = vmatprep.mubr.bf16.mxu0 0
  %5260 = vmatmul.mubr.bf16.gmra.mrb[0].mxu0 %v5021
  %v5261 = vpop.f32.mrb[0].mxu0
  %v5262 = vadd.f32 0.0, %v5261
  %v5263 = vpop.f32.mrb[0].mxu0
  %v5264 = vpop.f32.mrb[0].mxu0
  %v5265 = vadd.f32 0.0, %v5264
  %v5266 = vpop.f32.mrb[0].mxu0
  %5267 = vmatprep.mubr.bf16.mxu0 0
  %5268 = vmatmul.mubr.bf16.gmra.mrb[0].mxu0 %v5023
  %v5269 = vpop.f32.mrb[0].mxu0
  %v5270 = vadd.f32 0.0, %v5269
  %v5271 = vpop.f32.mrb[0].mxu0
  %v5272 = vpop.f32.mrb[0].mxu0
  %v5273 = vadd.f32 0.0, %v5272
  %v5274 = vpop.f32.mrb[0].mxu0
  %5275 = vmatprep.mubr.bf16.mxu0 0
  %5276 = vmatmul.mubr.bf16.gmra.mrb[0].mxu0 %v5025
  %v5277 = vpop.f32.mrb[0].mxu0
  %v5278 = vadd.f32 0.0, %v5277
  %v5279 = vpop.f32.mrb[0].mxu0
  %v5280 = vpop.f32.mrb[0].mxu0
  %v5281 = vadd.f32 0.0, %v5280
  %v5282 = vpop.f32.mrb[0].mxu0
  %5283 = vmatprep.mubr.bf16.mxu0 0
  %5284 = vmatmul.mubr.bf16.gmra.mrb[0].mxu0 %v5027
  %v5285 = vpop.f32.mrb[0].mxu0
  %v5286 = vadd.f32 0.0, %v5285
  %v5287 = vpop.f32.mrb[0].mxu0
  %v5288 = vpop.f32.mrb[0].mxu0
  %v5289 = vadd.f32 0.0, %v5288
  %v5290 = vpop.f32.mrb[0].mxu0
  %5291 = vmatprep.mubr.bf16.mxu0 0
  %5292 = vmatmul.mubr.bf16.gmra.mrb[0].mxu0 %v5029
  %v5293 = vpop.f32.mrb[0].mxu0
  %v5294 = vadd.f32 0.0, %v5293
  %v5295 = vpop.f32.mrb[0].mxu0
  %v5296 = vpop.f32.mrb[0].mxu0
  %v5297 = vadd.f32 0.0, %v5296
  %v5298 = vpop.f32.mrb[0].mxu0
  %5299 = vmatprep.mubr.bf16.mxu0 0
  %5300 = vmatmul.mubr.bf16.gmra.mrb[0].mxu0 %v5031
  %v5301 = vpop.f32.mrb[0].mxu0
  %v5302 = vadd.f32 0.0, %v5301
  %v5303 = vpop.f32.mrb[0].mxu0
  %v5304 = vpop.f32.mrb[0].mxu0
  %v5305 = vadd.f32 0.0, %v5304
  %v5306 = vpop.f32.mrb[0].mxu0
  %5307 = vmatprep.mubr.bf16.mxu0 0
  %5308 = vmatmul.mubr.bf16.gmra.mrb[0].mxu0 %v5033
  %v5309 = vpop.f32.mrb[0].mxu0
  %v5310 = vadd.f32 0.0, %v5309
  %v5311 = vpop.f32.mrb[0].mxu0
  %v5312 = vpop.f32.mrb[0].mxu0
  %v5313 = vadd.f32 0.0, %v5312
  %v5314 = vpop.f32.mrb[0].mxu0
  %5315 = vmatprep.mubr.bf16.mxu0 0
  %5316 = vmatmul.mubr.bf16.gmra.mrb[0].mxu0 %v5035
  %v5317 = vpop.f32.mrb[0].mxu0
  %v5318 = vadd.f32 0.0, %v5317
  %v5319 = vpop.f32.mrb[0].mxu0
  %v5320 = vpop.f32.mrb[0].mxu0
  %v5321 = vadd.f32 0.0, %v5320
  %v5322 = vpop.f32.mrb[0].mxu0
  %5323 = vmatprep.mubr.bf16.mxu0 0
  %5324 = vmatmul.mubr.bf16.gmra.mrb[0].mxu0 %v5037
  %v5325 = vpop.f32.mrb[0].mxu0
  %v5326 = vadd.f32 0.0, %v5325
  %v5327 = vpop.f32.mrb[0].mxu0
  %v5328 = vpop.f32.mrb[0].mxu0
  %v5329 = vadd.f32 0.0, %v5328
  %v5330 = vpop.f32.mrb[0].mxu0
  %5331 = vdwg.mxu0
  %v5332 = vld [vmem:[%s5] sm:$0x1]
  %v5333 = vld [vmem:[%s6] sm:$0x1]
  %v5334 = vsel %vm1626, %v5078, 0.0
  %v5335 = vsel %vm1626, %v5081, 0.0
  %v5336 = vadd.f32 %v5334, %v5335
  %v5337 = vsel %vm1626, %v5086, 0.0
  %v5338 = vadd.f32 %v5336, %v5337
  %v5339 = vsel %vm1626, %v5089, 0.0
  %v5340 = vadd.f32 %v5338, %v5339
  %v5341 = vsel %vm1626, %v5094, 0.0
  %v5342 = vadd.f32 %v5340, %v5341
  %v5343 = vsel %vm1626, %v5097, 0.0
  %v5344 = vadd.f32 %v5342, %v5343
  %v5345 = vsel %vm1626, %v5102, 0.0
  %v5346 = vadd.f32 %v5344, %v5345
  %v5347 = vsel %vm1626, %v5105, 0.0
  %v5348 = vadd.f32 %v5346, %v5347
  %v5349 = vsel %vm1626, %v5110, 0.0
  %v5350 = vadd.f32 %v5348, %v5349
  %v5351 = vsel %vm1626, %v5113, 0.0
  %v5352 = vadd.f32 %v5350, %v5351
  %v5353 = vsel %vm1626, %v5118, 0.0
  %v5354 = vadd.f32 %v5352, %v5353
  %v5355 = vsel %vm1626, %v5121, 0.0
  %v5356 = vadd.f32 %v5354, %v5355
  %v5357 = vsel %vm1626, %v5126, 0.0
  %v5358 = vadd.f32 %v5356, %v5357
  %v5359 = vsel %vm1626, %v5129, 0.0
  %v5360 = vadd.f32 %v5358, %v5359
  %v5361 = vsel %vm1626, %v5134, 0.0
  %v5362 = vadd.f32 %v5360, %v5361
  %v5363 = vsel %vm1626, %v5137, 0.0
  %v5364 = vadd.f32 %v5362, %v5363
  %v5365 = vsel %vm1626, %v5142, 0.0
  %v5366 = vadd.f32 %v5364, %v5365
  %v5367 = vsel %vm1626, %v5145, 0.0
  %v5368 = vadd.f32 %v5366, %v5367
  %v5369 = vsel %vm1626, %v5150, 0.0
  %v5370 = vadd.f32 %v5368, %v5369
  %v5371 = vsel %vm1626, %v5153, 0.0
  %v5372 = vadd.f32 %v5370, %v5371
  %v5373 = vsel %vm1626, %v5158, 0.0
  %v5374 = vadd.f32 %v5372, %v5373
  %v5375 = vsel %vm1626, %v5161, 0.0
  %v5376 = vadd.f32 %v5374, %v5375
  %v5377 = vsel %vm1626, %v5166, 0.0
  %v5378 = vadd.f32 %v5376, %v5377
  %v5379 = vsel %vm1626, %v5169, 0.0
  %v5380 = vadd.f32 %v5378, %v5379
  %v5381 = vsel %vm1626, %v5174, 0.0
  %v5382 = vadd.f32 %v5380, %v5381
  %v5383 = vsel %vm1626, %v5177, 0.0
  %v5384 = vadd.f32 %v5382, %v5383
  %v5385 = vsel %vm1626, %v5182, 0.0
  %v5386 = vadd.f32 %v5384, %v5385
  %v5387 = vsel %vm1626, %v5185, 0.0
  %v5388 = vadd.f32 %v5386, %v5387
  %v5389 = vsel %vm1626, %v5190, 0.0
  %v5390 = vadd.f32 %v5388, %v5389
  %v5391 = vsel %vm1626, %v5193, 0.0
  %v5392 = vadd.f32 %v5390, %v5391
  %v5393 = vsel %vm1626, %v5198, 0.0
  %v5394 = vadd.f32 %v5392, %v5393
  %v5395 = vsel %vm1626, %v5201, 0.0
  %v5396 = vadd.f32 %v5394, %v5395
  %v5397 = vsel %vm1626, %v5206, 0.0
  %v5398 = vadd.f32 %v5396, %v5397
  %v5399 = vsel %vm1626, %v5209, 0.0
  %v5400 = vadd.f32 %v5398, %v5399
  %v5401 = vsel %vm1626, %v5214, 0.0
  %v5402 = vadd.f32 %v5400, %v5401
  %v5403 = vsel %vm1626, %v5217, 0.0
  %v5404 = vadd.f32 %v5402, %v5403
  %v5405 = vsel %vm1626, %v5222, 0.0
  %v5406 = vadd.f32 %v5404, %v5405
  %v5407 = vsel %vm1626, %v5225, 0.0
  %v5408 = vadd.f32 %v5406, %v5407
  %v5409 = vsel %vm1626, %v5230, 0.0
  %v5410 = vadd.f32 %v5408, %v5409
  %v5411 = vsel %vm1626, %v5233, 0.0
  %v5412 = vadd.f32 %v5410, %v5411
  %v5413 = vsel %vm1626, %v5238, 0.0
  %v5414 = vadd.f32 %v5412, %v5413
  %v5415 = vsel %vm1626, %v5241, 0.0
  %v5416 = vadd.f32 %v5414, %v5415
  %v5417 = vsel %vm1626, %v5246, 0.0
  %v5418 = vadd.f32 %v5416, %v5417
  %v5419 = vsel %vm1626, %v5249, 0.0
  %v5420 = vadd.f32 %v5418, %v5419
  %v5421 = vsel %vm1626, %v5254, 0.0
  %v5422 = vadd.f32 %v5420, %v5421
  %v5423 = vsel %vm1626, %v5257, 0.0
  %v5424 = vadd.f32 %v5422, %v5423
  %v5425 = vsel %vm1626, %v5262, 0.0
  %v5426 = vadd.f32 %v5424, %v5425
  %v5427 = vsel %vm1626, %v5265, 0.0
  %v5428 = vadd.f32 %v5426, %v5427
  %v5429 = vsel %vm1626, %v5270, 0.0
  %v5430 = vadd.f32 %v5428, %v5429
  %v5431 = vsel %vm1626, %v5273, 0.0
  %v5432 = vadd.f32 %v5430, %v5431
  %v5433 = vsel %vm1626, %v5278, 0.0
  %v5434 = vadd.f32 %v5432, %v5433
  %v5435 = vsel %vm1626, %v5281, 0.0
  %v5436 = vadd.f32 %v5434, %v5435
  %v5437 = vsel %vm1626, %v5286, 0.0
  %v5438 = vadd.f32 %v5436, %v5437
  %v5439 = vsel %vm1626, %v5289, 0.0
  %v5440 = vadd.f32 %v5438, %v5439
  %v5441 = vsel %vm1626, %v5294, 0.0
  %v5442 = vadd.f32 %v5440, %v5441
  %v5443 = vsel %vm1626, %v5297, 0.0
  %v5444 = vadd.f32 %v5442, %v5443
  %v5445 = vsel %vm1626, %v5302, 0.0
  %v5446 = vadd.f32 %v5444, %v5445
  %v5447 = vsel %vm1626, %v5305, 0.0
  %v5448 = vadd.f32 %v5446, %v5447
  %v5449 = vsel %vm1626, %v5310, 0.0
  %v5450 = vadd.f32 %v5448, %v5449
  %v5451 = vsel %vm1626, %v5313, 0.0
  %v5452 = vadd.f32 %v5450, %v5451
  %v5453 = vsel %vm1626, %v5318, 0.0
  %v5454 = vadd.f32 %v5452, %v5453
  %v5455 = vsel %vm1626, %v5321, 0.0
  %v5456 = vadd.f32 %v5454, %v5455
  %v5457 = vsel %vm1626, %v5326, 0.0
  %v5458 = vadd.f32 %v5456, %v5457
  %v5459 = vsel %vm1626, %v5329, 0.0
  %v5460 = vadd.f32 %v5458, %v5459
  %v5461 = vrot.slane %v5460, 4
  %v5462 = vadd.f32 %v5460, %v5461
  %v5463 = vrot.slane %v5462, 2
  %v5464 = vadd.f32 %v5462, %v5463
  %v5465 = vrot.slane %v5464, 1
  %v5466 = vadd.f32 %v5464, %v5465
  %v5467 = vmul.f32 %v5466, 0.001953125
  %v5468 = vmul.f32 %v5078, %v5078
  %v5469 = vmul.f32 %v5081, %v5081
  %v5470 = vmul.f32 %v5086, %v5086
  %v5471 = vmul.f32 %v5089, %v5089
  %v5472 = vmul.f32 %v5094, %v5094
  %v5473 = vmul.f32 %v5097, %v5097
  %v5474 = vmul.f32 %v5102, %v5102
  %v5475 = vmul.f32 %v5105, %v5105
  %v5476 = vmul.f32 %v5110, %v5110
  %v5477 = vmul.f32 %v5113, %v5113
  %v5478 = vmul.f32 %v5118, %v5118
  %v5479 = vmul.f32 %v5121, %v5121
  %v5480 = vmul.f32 %v5126, %v5126
  %v5481 = vmul.f32 %v5129, %v5129
  %v5482 = vmul.f32 %v5134, %v5134
  %v5483 = vmul.f32 %v5137, %v5137
  %v5484 = vmul.f32 %v5142, %v5142
  %v5485 = vmul.f32 %v5145, %v5145
  %v5486 = vmul.f32 %v5150, %v5150
  %v5487 = vmul.f32 %v5153, %v5153
  %v5488 = vmul.f32 %v5158, %v5158
  %v5489 = vmul.f32 %v5161, %v5161
  %v5490 = vmul.f32 %v5166, %v5166
  %v5491 = vmul.f32 %v5169, %v5169
  %v5492 = vmul.f32 %v5174, %v5174
  %v5493 = vmul.f32 %v5177, %v5177
  %v5494 = vmul.f32 %v5182, %v5182
  %v5495 = vmul.f32 %v5185, %v5185
  %v5496 = vmul.f32 %v5190, %v5190
  %v5497 = vmul.f32 %v5193, %v5193
  %v5498 = vmul.f32 %v5198, %v5198
  %v5499 = vmul.f32 %v5201, %v5201
  %v5500 = vmul.f32 %v5206, %v5206
  %v5501 = vmul.f32 %v5209, %v5209
  %v5502 = vmul.f32 %v5214, %v5214
  %v5503 = vmul.f32 %v5217, %v5217
  %v5504 = vmul.f32 %v5222, %v5222
  %v5505 = vmul.f32 %v5225, %v5225
  %v5506 = vmul.f32 %v5230, %v5230
  %v5507 = vmul.f32 %v5233, %v5233
  %v5508 = vmul.f32 %v5238, %v5238
  %v5509 = vmul.f32 %v5241, %v5241
  %v5510 = vmul.f32 %v5246, %v5246
  %v5511 = vmul.f32 %v5249, %v5249
  %v5512 = vmul.f32 %v5254, %v5254
  %v5513 = vmul.f32 %v5257, %v5257
  %v5514 = vmul.f32 %v5262, %v5262
  %v5515 = vmul.f32 %v5265, %v5265
  %v5516 = vmul.f32 %v5270, %v5270
  %v5517 = vmul.f32 %v5273, %v5273
  %v5518 = vmul.f32 %v5278, %v5278
  %v5519 = vmul.f32 %v5281, %v5281
  %v5520 = vmul.f32 %v5286, %v5286
  %v5521 = vmul.f32 %v5289, %v5289
  %v5522 = vmul.f32 %v5294, %v5294
  %v5523 = vmul.f32 %v5297, %v5297
  %v5524 = vmul.f32 %v5302, %v5302
  %v5525 = vmul.f32 %v5305, %v5305
  %v5526 = vmul.f32 %v5310, %v5310
  %v5527 = vmul.f32 %v5313, %v5313
  %v5528 = vmul.f32 %v5318, %v5318
  %v5529 = vmul.f32 %v5321, %v5321
  %v5530 = vmul.f32 %v5326, %v5326
  %v5531 = vmul.f32 %v5329, %v5329
  %v5532 = vsel %vm1626, %v5468, 0.0
  %v5533 = vsel %vm1626, %v5469, 0.0
  %v5534 = vadd.f32 %v5532, %v5533
  %v5535 = vsel %vm1626, %v5470, 0.0
  %v5536 = vadd.f32 %v5534, %v5535
  %v5537 = vsel %vm1626, %v5471, 0.0
  %v5538 = vadd.f32 %v5536, %v5537
  %v5539 = vsel %vm1626, %v5472, 0.0
  %v5540 = vadd.f32 %v5538, %v5539
  %v5541 = vsel %vm1626, %v5473, 0.0
  %v5542 = vadd.f32 %v5540, %v5541
  %v5543 = vsel %vm1626, %v5474, 0.0
  %v5544 = vadd.f32 %v5542, %v5543
  %v5545 = vsel %vm1626, %v5475, 0.0
  %v5546 = vadd.f32 %v5544, %v5545
  %v5547 = vsel %vm1626, %v5476, 0.0
  %v5548 = vadd.f32 %v5546, %v5547
  %v5549 = vsel %vm1626, %v5477, 0.0
  %v5550 = vadd.f32 %v5548, %v5549
  %v5551 = vsel %vm1626, %v5478, 0.0
  %v5552 = vadd.f32 %v5550, %v5551
  %v5553 = vsel %vm1626, %v5479, 0.0
  %v5554 = vadd.f32 %v5552, %v5553
  %v5555 = vsel %vm1626, %v5480, 0.0
  %v5556 = vadd.f32 %v5554, %v5555
  %v5557 = vsel %vm1626, %v5481, 0.0
  %v5558 = vadd.f32 %v5556, %v5557
  %v5559 = vsel %vm1626, %v5482, 0.0
  %v5560 = vadd.f32 %v5558, %v5559
  %v5561 = vsel %vm1626, %v5483, 0.0
  %v5562 = vadd.f32 %v5560, %v5561
  %v5563 = vsel %vm1626, %v5484, 0.0
  %v5564 = vadd.f32 %v5562, %v5563
  %v5565 = vsel %vm1626, %v5485, 0.0
  %v5566 = vadd.f32 %v5564, %v5565
  %v5567 = vsel %vm1626, %v5486, 0.0
  %v5568 = vadd.f32 %v5566, %v5567
  %v5569 = vsel %vm1626, %v5487, 0.0
  %v5570 = vadd.f32 %v5568, %v5569
  %v5571 = vsel %vm1626, %v5488, 0.0
  %v5572 = vadd.f32 %v5570, %v5571
  %v5573 = vsel %vm1626, %v5489, 0.0
  %v5574 = vadd.f32 %v5572, %v5573
  %v5575 = vsel %vm1626, %v5490, 0.0
  %v5576 = vadd.f32 %v5574, %v5575
  %v5577 = vsel %vm1626, %v5491, 0.0
  %v5578 = vadd.f32 %v5576, %v5577
  %v5579 = vsel %vm1626, %v5492, 0.0
  %v5580 = vadd.f32 %v5578, %v5579
  %v5581 = vsel %vm1626, %v5493, 0.0
  %v5582 = vadd.f32 %v5580, %v5581
  %v5583 = vsel %vm1626, %v5494, 0.0
  %v5584 = vadd.f32 %v5582, %v5583
  %v5585 = vsel %vm1626, %v5495, 0.0
  %v5586 = vadd.f32 %v5584, %v5585
  %v5587 = vsel %vm1626, %v5496, 0.0
  %v5588 = vadd.f32 %v5586, %v5587
  %v5589 = vsel %vm1626, %v5497, 0.0
  %v5590 = vadd.f32 %v5588, %v5589
  %v5591 = vsel %vm1626, %v5498, 0.0
  %v5592 = vadd.f32 %v5590, %v5591
  %v5593 = vsel %vm1626, %v5499, 0.0
  %v5594 = vadd.f32 %v5592, %v5593
  %v5595 = vsel %vm1626, %v5500, 0.0
  %v5596 = vadd.f32 %v5594, %v5595
  %v5597 = vsel %vm1626, %v5501, 0.0
  %v5598 = vadd.f32 %v5596, %v5597
  %v5599 = vsel %vm1626, %v5502, 0.0
  %v5600 = vadd.f32 %v5598, %v5599
  %v5601 = vsel %vm1626, %v5503, 0.0
  %v5602 = vadd.f32 %v5600, %v5601
  %v5603 = vsel %vm1626, %v5504, 0.0
  %v5604 = vadd.f32 %v5602, %v5603
  %v5605 = vsel %vm1626, %v5505, 0.0
  %v5606 = vadd.f32 %v5604, %v5605
  %v5607 = vsel %vm1626, %v5506, 0.0
  %v5608 = vadd.f32 %v5606, %v5607
  %v5609 = vsel %vm1626, %v5507, 0.0
  %v5610 = vadd.f32 %v5608, %v5609
  %v5611 = vsel %vm1626, %v5508, 0.0
  %v5612 = vadd.f32 %v5610, %v5611
  %v5613 = vsel %vm1626, %v5509, 0.0
  %v5614 = vadd.f32 %v5612, %v5613
  %v5615 = vsel %vm1626, %v5510, 0.0
  %v5616 = vadd.f32 %v5614, %v5615
  %v5617 = vsel %vm1626, %v5511, 0.0
  %v5618 = vadd.f32 %v5616, %v5617
  %v5619 = vsel %vm1626, %v5512, 0.0
  %v5620 = vadd.f32 %v5618, %v5619
  %v5621 = vsel %vm1626, %v5513, 0.0
  %v5622 = vadd.f32 %v5620, %v5621
  %v5623 = vsel %vm1626, %v5514, 0.0
  %v5624 = vadd.f32 %v5622, %v5623
  %v5625 = vsel %vm1626, %v5515, 0.0
  %v5626 = vadd.f32 %v5624, %v5625
  %v5627 = vsel %vm1626, %v5516, 0.0
  %v5628 = vadd.f32 %v5626, %v5627
  %v5629 = vsel %vm1626, %v5517, 0.0
  %v5630 = vadd.f32 %v5628, %v5629
  %v5631 = vsel %vm1626, %v5518, 0.0
  %v5632 = vadd.f32 %v5630, %v5631
  %v5633 = vsel %vm1626, %v5519, 0.0
  %v5634 = vadd.f32 %v5632, %v5633
  %v5635 = vsel %vm1626, %v5520, 0.0
  %v5636 = vadd.f32 %v5634, %v5635
  %v5637 = vsel %vm1626, %v5521, 0.0
  %v5638 = vadd.f32 %v5636, %v5637
  %v5639 = vsel %vm1626, %v5522, 0.0
  %v5640 = vadd.f32 %v5638, %v5639
  %v5641 = vsel %vm1626, %v5523, 0.0
  %v5642 = vadd.f32 %v5640, %v5641
  %v5643 = vsel %vm1626, %v5524, 0.0
  %v5644 = vadd.f32 %v5642, %v5643
  %v5645 = vsel %vm1626, %v5525, 0.0
  %v5646 = vadd.f32 %v5644, %v5645
  %v5647 = vsel %vm1626, %v5526, 0.0
  %v5648 = vadd.f32 %v5646, %v5647
  %v5649 = vsel %vm1626, %v5527, 0.0
  %v5650 = vadd.f32 %v5648, %v5649
  %v5651 = vsel %vm1626, %v5528, 0.0
  %v5652 = vadd.f32 %v5650, %v5651
  %v5653 = vsel %vm1626, %v5529, 0.0
  %v5654 = vadd.f32 %v5652, %v5653
  %v5655 = vsel %vm1626, %v5530, 0.0
  %v5656 = vadd.f32 %v5654, %v5655
  %v5657 = vsel %vm1626, %v5531, 0.0
  %v5658 = vadd.f32 %v5656, %v5657
  %v5659 = vrot.slane %v5658, 4
  %v5660 = vadd.f32 %v5658, %v5659
  %v5661 = vrot.slane %v5660, 2
  %v5662 = vadd.f32 %v5660, %v5661
  %v5663 = vrot.slane %v5662, 1
  %v5664 = vadd.f32 %v5662, %v5663
  %v5665 = vmul.f32 %v5664, 0.001953125
  %v5666 = vmul.f32 %v5467, %v5467
  %v5667 = vsub.f32 %v5665, %v5666
  %v5668 = vadd.f32 %v5667, 1e-05
  %v5669 = vrsqrt.pop %v5668
  %v5670 = vmul.f32 %v5332, %v5669
  %v5672 = vlaneseq
  %v5673 = vshrl.u32 %v5672, 7
  %v5674 = vsub.s32 0, %v5673
  %v5675 = vrot.slane %v5670, %v5674
  %v5677 = vmul.f32 %v5078, %v5675
  %v5678 = vmul.f32 %v5081, %v5675
  %v5679 = vmul.f32 %v5086, %v5675
  %v5680 = vmul.f32 %v5089, %v5675
  %v5681 = vmul.f32 %v5094, %v5675
  %v5682 = vmul.f32 %v5097, %v5675
  %v5683 = vmul.f32 %v5102, %v5675
  %v5684 = vmul.f32 %v5105, %v5675
  %v5685 = vmul.f32 %v5110, %v5675
  %v5686 = vmul.f32 %v5113, %v5675
  %v5687 = vmul.f32 %v5118, %v5675
  %v5688 = vmul.f32 %v5121, %v5675
  %v5689 = vmul.f32 %v5126, %v5675
  %v5690 = vmul.f32 %v5129, %v5675
  %v5691 = vmul.f32 %v5134, %v5675
  %v5692 = vmul.f32 %v5137, %v5675
  %v5693 = vmul.f32 %v5142, %v5675
  %v5694 = vmul.f32 %v5145, %v5675
  %v5695 = vmul.f32 %v5150, %v5675
  %v5696 = vmul.f32 %v5153, %v5675
  %v5697 = vmul.f32 %v5158, %v5675
  %v5698 = vmul.f32 %v5161, %v5675
  %v5699 = vmul.f32 %v5166, %v5675
  %v5700 = vmul.f32 %v5169, %v5675
  %v5701 = vmul.f32 %v5174, %v5675
  %v5702 = vmul.f32 %v5177, %v5675
  %v5703 = vmul.f32 %v5182, %v5675
  %v5704 = vmul.f32 %v5185, %v5675
  %v5705 = vmul.f32 %v5190, %v5675
  %v5706 = vmul.f32 %v5193, %v5675
  %v5707 = vmul.f32 %v5198, %v5675
  %v5708 = vmul.f32 %v5201, %v5675
  %v5709 = vmul.f32 %v5206, %v5675
  %v5710 = vmul.f32 %v5209, %v5675
  %v5711 = vmul.f32 %v5214, %v5675
  %v5712 = vmul.f32 %v5217, %v5675
  %v5713 = vmul.f32 %v5222, %v5675
  %v5714 = vmul.f32 %v5225, %v5675
  %v5715 = vmul.f32 %v5230, %v5675
  %v5716 = vmul.f32 %v5233, %v5675
  %v5717 = vmul.f32 %v5238, %v5675
  %v5718 = vmul.f32 %v5241, %v5675
  %v5719 = vmul.f32 %v5246, %v5675
  %v5720 = vmul.f32 %v5249, %v5675
  %v5721 = vmul.f32 %v5254, %v5675
  %v5722 = vmul.f32 %v5257, %v5675
  %v5723 = vmul.f32 %v5262, %v5675
  %v5724 = vmul.f32 %v5265, %v5675
  %v5725 = vmul.f32 %v5270, %v5675
  %v5726 = vmul.f32 %v5273, %v5675
  %v5727 = vmul.f32 %v5278, %v5675
  %v5728 = vmul.f32 %v5281, %v5675
  %v5729 = vmul.f32 %v5286, %v5675
  %v5730 = vmul.f32 %v5289, %v5675
  %v5731 = vmul.f32 %v5294, %v5675
  %v5732 = vmul.f32 %v5297, %v5675
  %v5733 = vmul.f32 %v5302, %v5675
  %v5734 = vmul.f32 %v5305, %v5675
  %v5735 = vmul.f32 %v5310, %v5675
  %v5736 = vmul.f32 %v5313, %v5675
  %v5737 = vmul.f32 %v5318, %v5675
  %v5738 = vmul.f32 %v5321, %v5675
  %v5739 = vmul.f32 %v5326, %v5675
  %v5740 = vmul.f32 %v5329, %v5675
  %v5741 = vmul.f32 %v5467, %v5670
  %v5742 = vsub.f32 %v5333, %v5741
  %v5744 = vlaneseq
  %v5745 = vshrl.u32 %v5744, 7
  %v5746 = vsub.s32 0, %v5745
  %v5747 = vrot.slane %v5742, %v5746
  %v5749 = vadd.f32 %v5677, %v5747
  %v5750 = vadd.f32 %v5678, %v5747
  %v5751 = vadd.f32 %v5679, %v5747
  %v5752 = vadd.f32 %v5680, %v5747
  %v5753 = vadd.f32 %v5681, %v5747
  %v5754 = vadd.f32 %v5682, %v5747
  %v5755 = vadd.f32 %v5683, %v5747
  %v5756 = vadd.f32 %v5684, %v5747
  %v5757 = vadd.f32 %v5685, %v5747
  %v5758 = vadd.f32 %v5686, %v5747
  %v5759 = vadd.f32 %v5687, %v5747
  %v5760 = vadd.f32 %v5688, %v5747
  %v5761 = vadd.f32 %v5689, %v5747
  %v5762 = vadd.f32 %v5690, %v5747
  %v5763 = vadd.f32 %v5691, %v5747
  %v5764 = vadd.f32 %v5692, %v5747
  %v5765 = vadd.f32 %v5693, %v5747
  %v5766 = vadd.f32 %v5694, %v5747
  %v5767 = vadd.f32 %v5695, %v5747
  %v5768 = vadd.f32 %v5696, %v5747
  %v5769 = vadd.f32 %v5697, %v5747
  %v5770 = vadd.f32 %v5698, %v5747
  %v5771 = vadd.f32 %v5699, %v5747
  %v5772 = vadd.f32 %v5700, %v5747
  %v5773 = vadd.f32 %v5701, %v5747
  %v5774 = vadd.f32 %v5702, %v5747
  %v5775 = vadd.f32 %v5703, %v5747
  %v5776 = vadd.f32 %v5704, %v5747
  %v5777 = vadd.f32 %v5705, %v5747
  %v5778 = vadd.f32 %v5706, %v5747
  %v5779 = vadd.f32 %v5707, %v5747
  %v5780 = vadd.f32 %v5708, %v5747
  %v5781 = vadd.f32 %v5709, %v5747
  %v5782 = vadd.f32 %v5710, %v5747
  %v5783 = vadd.f32 %v5711, %v5747
  %v5784 = vadd.f32 %v5712, %v5747
  %v5785 = vadd.f32 %v5713, %v5747
  %v5786 = vadd.f32 %v5714, %v5747
  %v5787 = vadd.f32 %v5715, %v5747
  %v5788 = vadd.f32 %v5716, %v5747
  %v5789 = vadd.f32 %v5717, %v5747
  %v5790 = vadd.f32 %v5718, %v5747
  %v5791 = vadd.f32 %v5719, %v5747
  %v5792 = vadd.f32 %v5720, %v5747
  %v5793 = vadd.f32 %v5721, %v5747
  %v5794 = vadd.f32 %v5722, %v5747
  %v5795 = vadd.f32 %v5723, %v5747
  %v5796 = vadd.f32 %v5724, %v5747
  %v5797 = vadd.f32 %v5725, %v5747
  %v5798 = vadd.f32 %v5726, %v5747
  %v5799 = vadd.f32 %v5727, %v5747
  %v5800 = vadd.f32 %v5728, %v5747
  %v5801 = vadd.f32 %v5729, %v5747
  %v5802 = vadd.f32 %v5730, %v5747
  %v5803 = vadd.f32 %v5731, %v5747
  %v5804 = vadd.f32 %v5732, %v5747
  %v5805 = vadd.f32 %v5733, %v5747
  %v5806 = vadd.f32 %v5734, %v5747
  %v5807 = vadd.f32 %v5735, %v5747
  %v5808 = vadd.f32 %v5736, %v5747
  %v5809 = vadd.f32 %v5737, %v5747
  %v5810 = vadd.f32 %v5738, %v5747
  %v5811 = vadd.f32 %v5739, %v5747
  %v5812 = vadd.f32 %v5740, %v5747
  %v5813 = vld [vmem:[%s7] sm:$0x3]
  %v5814 = vsel %vm1563, %v100, 0
  %v5816 = vsel %vm1563, %v101, 0
  %v5818 = vsel %vm1563, %v102, 0
  %v5820 = vsel %vm1563, %v103, 0
  %v5822 = vsel %vm1563, %v104, 0
  %v5824 = vsel %vm1563, %v105, 0
  %v5826 = vsel %vm1563, %v106, 0
  %v5828 = vsel %vm1563, %v107, 0
  %v5830 = vsel %vm1563, %v108, 0
  %v5832 = vsel %vm1563, %v109, 0
  %v5834 = vsel %vm1563, %v110, 0
  %v5836 = vsel %vm1563, %v111, 0
  %v5838 = vsel %vm1563, %v112, 0
  %v5840 = vsel %vm1563, %v113, 0
  %v5842 = vsel %vm1563, %v114, 0
  %v5844 = vsel %vm1563, %v115, 0
  %v5846 = vsel %vm1563, %v116, 0
  %v5848 = vsel %vm1563, %v117, 0
  %v5850 = vsel %vm1563, %v118, 0
  %v5852 = vsel %vm1563, %v119, 0
  %v5854 = vsel %vm1563, %v120, 0
  %v5856 = vsel %vm1563, %v121, 0
  %v5858 = vsel %vm1563, %v122, 0
  %v5860 = vsel %vm1563, %v123, 0
  %v5862 = vsel %vm1563, %v124, 0
  %v5864 = vsel %vm1563, %v125, 0
  %v5866 = vsel %vm1563, %v126, 0
  %v5868 = vsel %vm1563, %v127, 0
  %v5870 = vsel %vm1563, %v128, 0
  %v5872 = vsel %vm1563, %v129, 0
  %v5874 = vsel %vm1563, %v130, 0
  %v5876 = vsel %vm1563, %v131, 0
  %v5879 = vsel %vm2161, %v5813, 0
  %5881 = vmatprep.subr.bf16.mxu0 0
  %5882 = vmatpush1.bf16.msra.mxu0 %v5879
  %5883 = vmatprep.subr.bf16.mxu0 0
  %5884 = vmatpush1.bf16.msra.mxu0 0
  %5885 = vmatprep.subr.bf16.mxu0 0
  %5886 = vmatpush1.bf16.msra.mxu0 0
  %5887 = vmatprep.subr.bf16.mxu0 0
  %5888 = vmatpush1.bf16.msra.mxu0 0
  %5889 = vmatprep.subr.bf16.mxu0 0
  %5890 = vmatpush1.bf16.msra.mxu0 0
  %5891 = vmatprep.subr.bf16.mxu0 0
  %5892 = vmatpush1.bf16.msra.mxu0 0
  %5893 = vmatprep.subr.bf16.mxu0 0
  %5894 = vmatpush1.bf16.msra.mxu0 0
  %5895 = vmatprep.subr.bf16.mxu0 0
  %5896 = vmatpush1.bf16.msra.mxu0 0
  %5897 = vmatprep.subr.bf16.mxu0 0
  %5898 = vmatpush1.bf16.msra.mxu0 0
  %5899 = vmatprep.subr.bf16.mxu0 0
  %5900 = vmatpush1.bf16.msra.mxu0 0
  %5901 = vmatprep.subr.bf16.mxu0 0
  %5902 = vmatpush1.bf16.msra.mxu0 0
  %5903 = vmatprep.subr.bf16.mxu0 0
  %5904 = vmatpush1.bf16.msra.mxu0 0
  %5905 = vmatprep.subr.bf16.mxu0 0
  %5906 = vmatpush1.bf16.msra.mxu0 0
  %5907 = vmatprep.subr.bf16.mxu0 0
  %5908 = vmatpush1.bf16.msra.mxu0 0
  %5909 = vmatprep.subr.bf16.mxu0 0
  %5910 = vmatpush1.bf16.msra.mxu0 0
  %5911 = vmatprep.subr.bf16.mxu0 0
  %5912 = vmatpush1.bf16.msra.mxu0 0
  %5913 = vmatprep.mubr.bf16.mxu0 0
  %5914 = vmatmul.mubr.bf16.gmra.mrb[0].mxu0 %v5814
  %v5915 = vpop.f32.mrb[0].mxu0
  %v5916 = vadd.f32 0.0, %v5915
  %v5917 = vpop.f32.mrb[0].mxu0
  %v5918 = vpop.f32.mrb[0].mxu0
  %v5919 = vadd.f32 0.0, %v5918
  %v5920 = vpop.f32.mrb[0].mxu0
  %5921 = vmatprep.mubr.bf16.mxu0 0
  %5922 = vmatmul.mubr.bf16.gmra.mrb[0].mxu0 %v5816
  %v5923 = vpop.f32.mrb[0].mxu0
  %v5924 = vadd.f32 0.0, %v5923
  %v5925 = vpop.f32.mrb[0].mxu0
  %v5926 = vpop.f32.mrb[0].mxu0
  %v5927 = vadd.f32 0.0, %v5926
  %v5928 = vpop.f32.mrb[0].mxu0
  %5929 = vmatprep.mubr.bf16.mxu0 0
  %5930 = vmatmul.mubr.bf16.gmra.mrb[0].mxu0 %v5818
  %v5931 = vpop.f32.mrb[0].mxu0
  %v5932 = vadd.f32 0.0, %v5931
  %v5933 = vpop.f32.mrb[0].mxu0
  %v5934 = vpop.f32.mrb[0].mxu0
  %v5935 = vadd.f32 0.0, %v5934
  %v5936 = vpop.f32.mrb[0].mxu0
  %5937 = vmatprep.mubr.bf16.mxu0 0
  %5938 = vmatmul.mubr.bf16.gmra.mrb[0].mxu0 %v5820
  %v5939 = vpop.f32.mrb[0].mxu0
  %v5940 = vadd.f32 0.0, %v5939
  %v5941 = vpop.f32.mrb[0].mxu0
  %v5942 = vpop.f32.mrb[0].mxu0
  %v5943 = vadd.f32 0.0, %v5942
  %v5944 = vpop.f32.mrb[0].mxu0
  %5945 = vmatprep.mubr.bf16.mxu0 0
  %5946 = vmatmul.mubr.bf16.gmra.mrb[0].mxu0 %v5822
  %v5947 = vpop.f32.mrb[0].mxu0
  %v5948 = vadd.f32 0.0, %v5947
  %v5949 = vpop.f32.mrb[0].mxu0
  %v5950 = vpop.f32.mrb[0].mxu0
  %v5951 = vadd.f32 0.0, %v5950
  %v5952 = vpop.f32.mrb[0].mxu0
  %5953 = vmatprep.mubr.bf16.mxu0 0
  %5954 = vmatmul.mubr.bf16.gmra.mrb[0].mxu0 %v5824
  %v5955 = vpop.f32.mrb[0].mxu0
  %v5956 = vadd.f32 0.0, %v5955
  %v5957 = vpop.f32.mrb[0].mxu0
  %v5958 = vpop.f32.mrb[0].mxu0
  %v5959 = vadd.f32 0.0, %v5958
  %v5960 = vpop.f32.mrb[0].mxu0
  %5961 = vmatprep.mubr.bf16.mxu0 0
  %5962 = vmatmul.mubr.bf16.gmra.mrb[0].mxu0 %v5826
  %v5963 = vpop.f32.mrb[0].mxu0
  %v5964 = vadd.f32 0.0, %v5963
  %v5965 = vpop.f32.mrb[0].mxu0
  %v5966 = vpop.f32.mrb[0].mxu0
  %v5967 = vadd.f32 0.0, %v5966
  %v5968 = vpop.f32.mrb[0].mxu0
  %5969 = vmatprep.mubr.bf16.mxu0 0
  %5970 = vmatmul.mubr.bf16.gmra.mrb[0].mxu0 %v5828
  %v5971 = vpop.f32.mrb[0].mxu0
  %v5972 = vadd.f32 0.0, %v5971
  %v5973 = vpop.f32.mrb[0].mxu0
  %v5974 = vpop.f32.mrb[0].mxu0
  %v5975 = vadd.f32 0.0, %v5974
  %v5976 = vpop.f32.mrb[0].mxu0
  %5977 = vmatprep.mubr.bf16.mxu0 0
  %5978 = vmatmul.mubr.bf16.gmra.mrb[0].mxu0 %v5830
  %v5979 = vpop.f32.mrb[0].mxu0
  %v5980 = vadd.f32 0.0, %v5979
  %v5981 = vpop.f32.mrb[0].mxu0
  %v5982 = vpop.f32.mrb[0].mxu0
  %v5983 = vadd.f32 0.0, %v5982
  %v5984 = vpop.f32.mrb[0].mxu0
  %5985 = vmatprep.mubr.bf16.mxu0 0
  %5986 = vmatmul.mubr.bf16.gmra.mrb[0].mxu0 %v5832
  %v5987 = vpop.f32.mrb[0].mxu0
  %v5988 = vadd.f32 0.0, %v5987
  %v5989 = vpop.f32.mrb[0].mxu0
  %v5990 = vpop.f32.mrb[0].mxu0
  %v5991 = vadd.f32 0.0, %v5990
  %v5992 = vpop.f32.mrb[0].mxu0
  %5993 = vmatprep.mubr.bf16.mxu0 0
  %5994 = vmatmul.mubr.bf16.gmra.mrb[0].mxu0 %v5834
  %v5995 = vpop.f32.mrb[0].mxu0
  %v5996 = vadd.f32 0.0, %v5995
  %v5997 = vpop.f32.mrb[0].mxu0
  %v5998 = vpop.f32.mrb[0].mxu0
  %v5999 = vadd.f32 0.0, %v5998
  %v6000 = vpop.f32.mrb[0].mxu0
  %6001 = vmatprep.mubr.bf16.mxu0 0
  %6002 = vmatmul.mubr.bf16.gmra.mrb[0].mxu0 %v5836
  %v6003 = vpop.f32.mrb[0].mxu0
  %v6004 = vadd.f32 0.0, %v6003
  %v6005 = vpop.f32.mrb[0].mxu0
  %v6006 = vpop.f32.mrb[0].mxu0
  %v6007 = vadd.f32 0.0, %v6006
  %v6008 = vpop.f32.mrb[0].mxu0
  %6009 = vmatprep.mubr.bf16.mxu0 0
  %6010 = vmatmul.mubr.bf16.gmra.mrb[0].mxu0 %v5838
  %v6011 = vpop.f32.mrb[0].mxu0
  %v6012 = vadd.f32 0.0, %v6011
  %v6013 = vpop.f32.mrb[0].mxu0
  %v6014 = vpop.f32.mrb[0].mxu0
  %v6015 = vadd.f32 0.0, %v6014
  %v6016 = vpop.f32.mrb[0].mxu0
  %6017 = vmatprep.mubr.bf16.mxu0 0
  %6018 = vmatmul.mubr.bf16.gmra.mrb[0].mxu0 %v5840
  %v6019 = vpop.f32.mrb[0].mxu0
  %v6020 = vadd.f32 0.0, %v6019
  %v6021 = vpop.f32.mrb[0].mxu0
  %v6022 = vpop.f32.mrb[0].mxu0
  %v6023 = vadd.f32 0.0, %v6022
  %v6024 = vpop.f32.mrb[0].mxu0
  %6025 = vmatprep.mubr.bf16.mxu0 0
  %6026 = vmatmul.mubr.bf16.gmra.mrb[0].mxu0 %v5842
  %v6027 = vpop.f32.mrb[0].mxu0
  %v6028 = vadd.f32 0.0, %v6027
  %v6029 = vpop.f32.mrb[0].mxu0
  %v6030 = vpop.f32.mrb[0].mxu0
  %v6031 = vadd.f32 0.0, %v6030
  %v6032 = vpop.f32.mrb[0].mxu0
  %6033 = vmatprep.mubr.bf16.mxu0 0
  %6034 = vmatmul.mubr.bf16.gmra.mrb[0].mxu0 %v5844
  %v6035 = vpop.f32.mrb[0].mxu0
  %v6036 = vadd.f32 0.0, %v6035
  %v6037 = vpop.f32.mrb[0].mxu0
  %v6038 = vpop.f32.mrb[0].mxu0
  %v6039 = vadd.f32 0.0, %v6038
  %v6040 = vpop.f32.mrb[0].mxu0
  %6041 = vmatprep.mubr.bf16.mxu0 0
  %6042 = vmatmul.mubr.bf16.gmra.mrb[0].mxu0 %v5846
  %v6043 = vpop.f32.mrb[0].mxu0
  %v6044 = vadd.f32 0.0, %v6043
  %v6045 = vpop.f32.mrb[0].mxu0
  %v6046 = vpop.f32.mrb[0].mxu0
  %v6047 = vadd.f32 0.0, %v6046
  %v6048 = vpop.f32.mrb[0].mxu0
  %6049 = vmatprep.mubr.bf16.mxu0 0
  %6050 = vmatmul.mubr.bf16.gmra.mrb[0].mxu0 %v5848
  %v6051 = vpop.f32.mrb[0].mxu0
  %v6052 = vadd.f32 0.0, %v6051
  %v6053 = vpop.f32.mrb[0].mxu0
  %v6054 = vpop.f32.mrb[0].mxu0
  %v6055 = vadd.f32 0.0, %v6054
  %v6056 = vpop.f32.mrb[0].mxu0
  %6057 = vmatprep.mubr.bf16.mxu0 0
  %6058 = vmatmul.mubr.bf16.gmra.mrb[0].mxu0 %v5850
  %v6059 = vpop.f32.mrb[0].mxu0
  %v6060 = vadd.f32 0.0, %v6059
  %v6061 = vpop.f32.mrb[0].mxu0
  %v6062 = vpop.f32.mrb[0].mxu0
  %v6063 = vadd.f32 0.0, %v6062
  %v6064 = vpop.f32.mrb[0].mxu0
  %6065 = vmatprep.mubr.bf16.mxu0 0
  %6066 = vmatmul.mubr.bf16.gmra.mrb[0].mxu0 %v5852
  %v6067 = vpop.f32.mrb[0].mxu0
  %v6068 = vadd.f32 0.0, %v6067
  %v6069 = vpop.f32.mrb[0].mxu0
  %v6070 = vpop.f32.mrb[0].mxu0
  %v6071 = vadd.f32 0.0, %v6070
  %v6072 = vpop.f32.mrb[0].mxu0
  %6073 = vmatprep.mubr.bf16.mxu0 0
  %6074 = vmatmul.mubr.bf16.gmra.mrb[0].mxu0 %v5854
  %v6075 = vpop.f32.mrb[0].mxu0
  %v6076 = vadd.f32 0.0, %v6075
  %v6077 = vpop.f32.mrb[0].mxu0
  %v6078 = vpop.f32.mrb[0].mxu0
  %v6079 = vadd.f32 0.0, %v6078
  %v6080 = vpop.f32.mrb[0].mxu0
  %6081 = vmatprep.mubr.bf16.mxu0 0
  %6082 = vmatmul.mubr.bf16.gmra.mrb[0].mxu0 %v5856
  %v6083 = vpop.f32.mrb[0].mxu0
  %v6084 = vadd.f32 0.0, %v6083
  %v6085 = vpop.f32.mrb[0].mxu0
  %v6086 = vpop.f32.mrb[0].mxu0
  %v6087 = vadd.f32 0.0, %v6086
  %v6088 = vpop.f32.mrb[0].mxu0
  %6089 = vmatprep.mubr.bf16.mxu0 0
  %6090 = vmatmul.mubr.bf16.gmra.mrb[0].mxu0 %v5858
  %v6091 = vpop.f32.mrb[0].mxu0
  %v6092 = vadd.f32 0.0, %v6091
  %v6093 = vpop.f32.mrb[0].mxu0
  %v6094 = vpop.f32.mrb[0].mxu0
  %v6095 = vadd.f32 0.0, %v6094
  %v6096 = vpop.f32.mrb[0].mxu0
  %6097 = vmatprep.mubr.bf16.mxu0 0
  %6098 = vmatmul.mubr.bf16.gmra.mrb[0].mxu0 %v5860
  %v6099 = vpop.f32.mrb[0].mxu0
  %v6100 = vadd.f32 0.0, %v6099
  %v6101 = vpop.f32.mrb[0].mxu0
  %v6102 = vpop.f32.mrb[0].mxu0
  %v6103 = vadd.f32 0.0, %v6102
  %v6104 = vpop.f32.mrb[0].mxu0
  %6105 = vmatprep.mubr.bf16.mxu0 0
  %6106 = vmatmul.mubr.bf16.gmra.mrb[0].mxu0 %v5862
  %v6107 = vpop.f32.mrb[0].mxu0
  %v6108 = vadd.f32 0.0, %v6107
  %v6109 = vpop.f32.mrb[0].mxu0
  %v6110 = vpop.f32.mrb[0].mxu0
  %v6111 = vadd.f32 0.0, %v6110
  %v6112 = vpop.f32.mrb[0].mxu0
  %6113 = vmatprep.mubr.bf16.mxu0 0
  %6114 = vmatmul.mubr.bf16.gmra.mrb[0].mxu0 %v5864
  %v6115 = vpop.f32.mrb[0].mxu0
  %v6116 = vadd.f32 0.0, %v6115
  %v6117 = vpop.f32.mrb[0].mxu0
  %v6118 = vpop.f32.mrb[0].mxu0
  %v6119 = vadd.f32 0.0, %v6118
  %v6120 = vpop.f32.mrb[0].mxu0
  %6121 = vmatprep.mubr.bf16.mxu0 0
  %6122 = vmatmul.mubr.bf16.gmra.mrb[0].mxu0 %v5866
  %v6123 = vpop.f32.mrb[0].mxu0
  %v6124 = vadd.f32 0.0, %v6123
  %v6125 = vpop.f32.mrb[0].mxu0
  %v6126 = vpop.f32.mrb[0].mxu0
  %v6127 = vadd.f32 0.0, %v6126
  %v6128 = vpop.f32.mrb[0].mxu0
  %6129 = vmatprep.mubr.bf16.mxu0 0
  %6130 = vmatmul.mubr.bf16.gmra.mrb[0].mxu0 %v5868
  %v6131 = vpop.f32.mrb[0].mxu0
  %v6132 = vadd.f32 0.0, %v6131
  %v6133 = vpop.f32.mrb[0].mxu0
  %v6134 = vpop.f32.mrb[0].mxu0
  %v6135 = vadd.f32 0.0, %v6134
  %v6136 = vpop.f32.mrb[0].mxu0
  %6137 = vmatprep.mubr.bf16.mxu0 0
  %6138 = vmatmul.mubr.bf16.gmra.mrb[0].mxu0 %v5870
  %v6139 = vpop.f32.mrb[0].mxu0
  %v6140 = vadd.f32 0.0, %v6139
  %v6141 = vpop.f32.mrb[0].mxu0
  %v6142 = vpop.f32.mrb[0].mxu0
  %v6143 = vadd.f32 0.0, %v6142
  %v6144 = vpop.f32.mrb[0].mxu0
  %6145 = vmatprep.mubr.bf16.mxu0 0
  %6146 = vmatmul.mubr.bf16.gmra.mrb[0].mxu0 %v5872
  %v6147 = vpop.f32.mrb[0].mxu0
  %v6148 = vadd.f32 0.0, %v6147
  %v6149 = vpop.f32.mrb[0].mxu0
  %v6150 = vpop.f32.mrb[0].mxu0
  %v6151 = vadd.f32 0.0, %v6150
  %v6152 = vpop.f32.mrb[0].mxu0
  %6153 = vmatprep.mubr.bf16.mxu0 0
  %6154 = vmatmul.mubr.bf16.gmra.mrb[0].mxu0 %v5874
  %v6155 = vpop.f32.mrb[0].mxu0
  %v6156 = vadd.f32 0.0, %v6155
  %v6157 = vpop.f32.mrb[0].mxu0
  %v6158 = vpop.f32.mrb[0].mxu0
  %v6159 = vadd.f32 0.0, %v6158
  %v6160 = vpop.f32.mrb[0].mxu0
  %6161 = vmatprep.mubr.bf16.mxu0 0
  %6162 = vmatmul.mubr.bf16.gmra.mrb[0].mxu0 %v5876
  %v6163 = vpop.f32.mrb[0].mxu0
  %v6164 = vadd.f32 0.0, %v6163
  %v6165 = vpop.f32.mrb[0].mxu0
  %v6166 = vpop.f32.mrb[0].mxu0
  %v6167 = vadd.f32 0.0, %v6166
  %v6168 = vpop.f32.mrb[0].mxu0
  %6169 = vdwg.mxu0
  %v6170 = vld [vmem:[%s8] sm:$0x1]
  %v6171 = vld [vmem:[%s9] sm:$0x1]
  %v6172 = vsel %vm1626, %v5916, 0.0
  %v6173 = vsel %vm1626, %v5919, 0.0
  %v6174 = vadd.f32 %v6172, %v6173
  %v6175 = vsel %vm1626, %v5924, 0.0
  %v6176 = vadd.f32 %v6174, %v6175
  %v6177 = vsel %vm1626, %v5927, 0.0
  %v6178 = vadd.f32 %v6176, %v6177
  %v6179 = vsel %vm1626, %v5932, 0.0
  %v6180 = vadd.f32 %v6178, %v6179
  %v6181 = vsel %vm1626, %v5935, 0.0
  %v6182 = vadd.f32 %v6180, %v6181
  %v6183 = vsel %vm1626, %v5940, 0.0
  %v6184 = vadd.f32 %v6182, %v6183
  %v6185 = vsel %vm1626, %v5943, 0.0
  %v6186 = vadd.f32 %v6184, %v6185
  %v6187 = vsel %vm1626, %v5948, 0.0
  %v6188 = vadd.f32 %v6186, %v6187
  %v6189 = vsel %vm1626, %v5951, 0.0
  %v6190 = vadd.f32 %v6188, %v6189
  %v6191 = vsel %vm1626, %v5956, 0.0
  %v6192 = vadd.f32 %v6190, %v6191
  %v6193 = vsel %vm1626, %v5959, 0.0
  %v6194 = vadd.f32 %v6192, %v6193
  %v6195 = vsel %vm1626, %v5964, 0.0
  %v6196 = vadd.f32 %v6194, %v6195
  %v6197 = vsel %vm1626, %v5967, 0.0
  %v6198 = vadd.f32 %v6196, %v6197
  %v6199 = vsel %vm1626, %v5972, 0.0
  %v6200 = vadd.f32 %v6198, %v6199
  %v6201 = vsel %vm1626, %v5975, 0.0
  %v6202 = vadd.f32 %v6200, %v6201
  %v6203 = vsel %vm1626, %v5980, 0.0
  %v6204 = vadd.f32 %v6202, %v6203
  %v6205 = vsel %vm1626, %v5983, 0.0
  %v6206 = vadd.f32 %v6204, %v6205
  %v6207 = vsel %vm1626, %v5988, 0.0
  %v6208 = vadd.f32 %v6206, %v6207
  %v6209 = vsel %vm1626, %v5991, 0.0
  %v6210 = vadd.f32 %v6208, %v6209
  %v6211 = vsel %vm1626, %v5996, 0.0
  %v6212 = vadd.f32 %v6210, %v6211
  %v6213 = vsel %vm1626, %v5999, 0.0
  %v6214 = vadd.f32 %v6212, %v6213
  %v6215 = vsel %vm1626, %v6004, 0.0
  %v6216 = vadd.f32 %v6214, %v6215
  %v6217 = vsel %vm1626, %v6007, 0.0
  %v6218 = vadd.f32 %v6216, %v6217
  %v6219 = vsel %vm1626, %v6012, 0.0
  %v6220 = vadd.f32 %v6218, %v6219
  %v6221 = vsel %vm1626, %v6015, 0.0
  %v6222 = vadd.f32 %v6220, %v6221
  %v6223 = vsel %vm1626, %v6020, 0.0
  %v6224 = vadd.f32 %v6222, %v6223
  %v6225 = vsel %vm1626, %v6023, 0.0
  %v6226 = vadd.f32 %v6224, %v6225
  %v6227 = vsel %vm1626, %v6028, 0.0
  %v6228 = vadd.f32 %v6226, %v6227
  %v6229 = vsel %vm1626, %v6031, 0.0
  %v6230 = vadd.f32 %v6228, %v6229
  %v6231 = vsel %vm1626, %v6036, 0.0
  %v6232 = vadd.f32 %v6230, %v6231
  %v6233 = vsel %vm1626, %v6039, 0.0
  %v6234 = vadd.f32 %v6232, %v6233
  %v6235 = vsel %vm1626, %v6044, 0.0
  %v6236 = vadd.f32 %v6234, %v6235
  %v6237 = vsel %vm1626, %v6047, 0.0
  %v6238 = vadd.f32 %v6236, %v6237
  %v6239 = vsel %vm1626, %v6052, 0.0
  %v6240 = vadd.f32 %v6238, %v6239
  %v6241 = vsel %vm1626, %v6055, 0.0
  %v6242 = vadd.f32 %v6240, %v6241
  %v6243 = vsel %vm1626, %v6060, 0.0
  %v6244 = vadd.f32 %v6242, %v6243
  %v6245 = vsel %vm1626, %v6063, 0.0
  %v6246 = vadd.f32 %v6244, %v6245
  %v6247 = vsel %vm1626, %v6068, 0.0
  %v6248 = vadd.f32 %v6246, %v6247
  %v6249 = vsel %vm1626, %v6071, 0.0
  %v6250 = vadd.f32 %v6248, %v6249
  %v6251 = vsel %vm1626, %v6076, 0.0
  %v6252 = vadd.f32 %v6250, %v6251
  %v6253 = vsel %vm1626, %v6079, 0.0
  %v6254 = vadd.f32 %v6252, %v6253
  %v6255 = vsel %vm1626, %v6084, 0.0
  %v6256 = vadd.f32 %v6254, %v6255
  %v6257 = vsel %vm1626, %v6087, 0.0
  %v6258 = vadd.f32 %v6256, %v6257
  %v6259 = vsel %vm1626, %v6092, 0.0
  %v6260 = vadd.f32 %v6258, %v6259
  %v6261 = vsel %vm1626, %v6095, 0.0
  %v6262 = vadd.f32 %v6260, %v6261
  %v6263 = vsel %vm1626, %v6100, 0.0
  %v6264 = vadd.f32 %v6262, %v6263
  %v6265 = vsel %vm1626, %v6103, 0.0
  %v6266 = vadd.f32 %v6264, %v6265
  %v6267 = vsel %vm1626, %v6108, 0.0
  %v6268 = vadd.f32 %v6266, %v6267
  %v6269 = vsel %vm1626, %v6111, 0.0
  %v6270 = vadd.f32 %v6268, %v6269
  %v6271 = vsel %vm1626, %v6116, 0.0
  %v6272 = vadd.f32 %v6270, %v6271
  %v6273 = vsel %vm1626, %v6119, 0.0
  %v6274 = vadd.f32 %v6272, %v6273
  %v6275 = vsel %vm1626, %v6124, 0.0
  %v6276 = vadd.f32 %v6274, %v6275
  %v6277 = vsel %vm1626, %v6127, 0.0
  %v6278 = vadd.f32 %v6276, %v6277
  %v6279 = vsel %vm1626, %v6132, 0.0
  %v6280 = vadd.f32 %v6278, %v6279
  %v6281 = vsel %vm1626, %v6135, 0.0
  %v6282 = vadd.f32 %v6280, %v6281
  %v6283 = vsel %vm1626, %v6140, 0.0
  %v6284 = vadd.f32 %v6282, %v6283
  %v6285 = vsel %vm1626, %v6143, 0.0
  %v6286 = vadd.f32 %v6284, %v6285
  %v6287 = vsel %vm1626, %v6148, 0.0
  %v6288 = vadd.f32 %v6286, %v6287
  %v6289 = vsel %vm1626, %v6151, 0.0
  %v6290 = vadd.f32 %v6288, %v6289
  %v6291 = vsel %vm1626, %v6156, 0.0
  %v6292 = vadd.f32 %v6290, %v6291
  %v6293 = vsel %vm1626, %v6159, 0.0
  %v6294 = vadd.f32 %v6292, %v6293
  %v6295 = vsel %vm1626, %v6164, 0.0
  %v6296 = vadd.f32 %v6294, %v6295
  %v6297 = vsel %vm1626, %v6167, 0.0
  %v6298 = vadd.f32 %v6296, %v6297
  %v6299 = vrot.slane %v6298, 4
  %v6300 = vadd.f32 %v6298, %v6299
  %v6301 = vrot.slane %v6300, 2
  %v6302 = vadd.f32 %v6300, %v6301
  %v6303 = vrot.slane %v6302, 1
  %v6304 = vadd.f32 %v6302, %v6303
  %v6305 = vmul.f32 %v6304, 0.001953125
  %v6306 = vmul.f32 %v5916, %v5916
  %v6307 = vmul.f32 %v5919, %v5919
  %v6308 = vmul.f32 %v5924, %v5924
  %v6309 = vmul.f32 %v5927, %v5927
  %v6310 = vmul.f32 %v5932, %v5932
  %v6311 = vmul.f32 %v5935, %v5935
  %v6312 = vmul.f32 %v5940, %v5940
  %v6313 = vmul.f32 %v5943, %v5943
  %v6314 = vmul.f32 %v5948, %v5948
  %v6315 = vmul.f32 %v5951, %v5951
  %v6316 = vmul.f32 %v5956, %v5956
  %v6317 = vmul.f32 %v5959, %v5959
  %v6318 = vmul.f32 %v5964, %v5964
  %v6319 = vmul.f32 %v5967, %v5967
  %v6320 = vmul.f32 %v5972, %v5972
  %v6321 = vmul.f32 %v5975, %v5975
  %v6322 = vmul.f32 %v5980, %v5980
  %v6323 = vmul.f32 %v5983, %v5983
  %v6324 = vmul.f32 %v5988, %v5988
  %v6325 = vmul.f32 %v5991, %v5991
  %v6326 = vmul.f32 %v5996, %v5996
  %v6327 = vmul.f32 %v5999, %v5999
  %v6328 = vmul.f32 %v6004, %v6004
  %v6329 = vmul.f32 %v6007, %v6007
  %v6330 = vmul.f32 %v6012, %v6012
  %v6331 = vmul.f32 %v6015, %v6015
  %v6332 = vmul.f32 %v6020, %v6020
  %v6333 = vmul.f32 %v6023, %v6023
  %v6334 = vmul.f32 %v6028, %v6028
  %v6335 = vmul.f32 %v6031, %v6031
  %v6336 = vmul.f32 %v6036, %v6036
  %v6337 = vmul.f32 %v6039, %v6039
  %v6338 = vmul.f32 %v6044, %v6044
  %v6339 = vmul.f32 %v6047, %v6047
  %v6340 = vmul.f32 %v6052, %v6052
  %v6341 = vmul.f32 %v6055, %v6055
  %v6342 = vmul.f32 %v6060, %v6060
  %v6343 = vmul.f32 %v6063, %v6063
  %v6344 = vmul.f32 %v6068, %v6068
  %v6345 = vmul.f32 %v6071, %v6071
  %v6346 = vmul.f32 %v6076, %v6076
  %v6347 = vmul.f32 %v6079, %v6079
  %v6348 = vmul.f32 %v6084, %v6084
  %v6349 = vmul.f32 %v6087, %v6087
  %v6350 = vmul.f32 %v6092, %v6092
  %v6351 = vmul.f32 %v6095, %v6095
  %v6352 = vmul.f32 %v6100, %v6100
  %v6353 = vmul.f32 %v6103, %v6103
  %v6354 = vmul.f32 %v6108, %v6108
  %v6355 = vmul.f32 %v6111, %v6111
  %v6356 = vmul.f32 %v6116, %v6116
  %v6357 = vmul.f32 %v6119, %v6119
  %v6358 = vmul.f32 %v6124, %v6124
  %v6359 = vmul.f32 %v6127, %v6127
  %v6360 = vmul.f32 %v6132, %v6132
  %v6361 = vmul.f32 %v6135, %v6135
  %v6362 = vmul.f32 %v6140, %v6140
  %v6363 = vmul.f32 %v6143, %v6143
  %v6364 = vmul.f32 %v6148, %v6148
  %v6365 = vmul.f32 %v6151, %v6151
  %v6366 = vmul.f32 %v6156, %v6156
  %v6367 = vmul.f32 %v6159, %v6159
  %v6368 = vmul.f32 %v6164, %v6164
  %v6369 = vmul.f32 %v6167, %v6167
  %v6370 = vsel %vm1626, %v6306, 0.0
  %v6371 = vsel %vm1626, %v6307, 0.0
  %v6372 = vadd.f32 %v6370, %v6371
  %v6373 = vsel %vm1626, %v6308, 0.0
  %v6374 = vadd.f32 %v6372, %v6373
  %v6375 = vsel %vm1626, %v6309, 0.0
  %v6376 = vadd.f32 %v6374, %v6375
  %v6377 = vsel %vm1626, %v6310, 0.0
  %v6378 = vadd.f32 %v6376, %v6377
  %v6379 = vsel %vm1626, %v6311, 0.0
  %v6380 = vadd.f32 %v6378, %v6379
  %v6381 = vsel %vm1626, %v6312, 0.0
  %v6382 = vadd.f32 %v6380, %v6381
  %v6383 = vsel %vm1626, %v6313, 0.0
  %v6384 = vadd.f32 %v6382, %v6383
  %v6385 = vsel %vm1626, %v6314, 0.0
  %v6386 = vadd.f32 %v6384, %v6385
  %v6387 = vsel %vm1626, %v6315, 0.0
  %v6388 = vadd.f32 %v6386, %v6387
  %v6389 = vsel %vm1626, %v6316, 0.0
  %v6390 = vadd.f32 %v6388, %v6389
  %v6391 = vsel %vm1626, %v6317, 0.0
  %v6392 = vadd.f32 %v6390, %v6391
  %v6393 = vsel %vm1626, %v6318, 0.0
  %v6394 = vadd.f32 %v6392, %v6393
  %v6395 = vsel %vm1626, %v6319, 0.0
  %v6396 = vadd.f32 %v6394, %v6395
  %v6397 = vsel %vm1626, %v6320, 0.0
  %v6398 = vadd.f32 %v6396, %v6397
  %v6399 = vsel %vm1626, %v6321, 0.0
  %v6400 = vadd.f32 %v6398, %v6399
  %v6401 = vsel %vm1626, %v6322, 0.0
  %v6402 = vadd.f32 %v6400, %v6401
  %v6403 = vsel %vm1626, %v6323, 0.0
  %v6404 = vadd.f32 %v6402, %v6403
  %v6405 = vsel %vm1626, %v6324, 0.0
  %v6406 = vadd.f32 %v6404, %v6405
  %v6407 = vsel %vm1626, %v6325, 0.0
  %v6408 = vadd.f32 %v6406, %v6407
  %v6409 = vsel %vm1626, %v6326, 0.0
  %v6410 = vadd.f32 %v6408, %v6409
  %v6411 = vsel %vm1626, %v6327, 0.0
  %v6412 = vadd.f32 %v6410, %v6411
  %v6413 = vsel %vm1626, %v6328, 0.0
  %v6414 = vadd.f32 %v6412, %v6413
  %v6415 = vsel %vm1626, %v6329, 0.0
  %v6416 = vadd.f32 %v6414, %v6415
  %v6417 = vsel %vm1626, %v6330, 0.0
  %v6418 = vadd.f32 %v6416, %v6417
  %v6419 = vsel %vm1626, %v6331, 0.0
  %v6420 = vadd.f32 %v6418, %v6419
  %v6421 = vsel %vm1626, %v6332, 0.0
  %v6422 = vadd.f32 %v6420, %v6421
  %v6423 = vsel %vm1626, %v6333, 0.0
  %v6424 = vadd.f32 %v6422, %v6423
  %v6425 = vsel %vm1626, %v6334, 0.0
  %v6426 = vadd.f32 %v6424, %v6425
  %v6427 = vsel %vm1626, %v6335, 0.0
  %v6428 = vadd.f32 %v6426, %v6427
  %v6429 = vsel %vm1626, %v6336, 0.0
  %v6430 = vadd.f32 %v6428, %v6429
  %v6431 = vsel %vm1626, %v6337, 0.0
  %v6432 = vadd.f32 %v6430, %v6431
  %v6433 = vsel %vm1626, %v6338, 0.0
  %v6434 = vadd.f32 %v6432, %v6433
  %v6435 = vsel %vm1626, %v6339, 0.0
  %v6436 = vadd.f32 %v6434, %v6435
  %v6437 = vsel %vm1626, %v6340, 0.0
  %v6438 = vadd.f32 %v6436, %v6437
  %v6439 = vsel %vm1626, %v6341, 0.0
  %v6440 = vadd.f32 %v6438, %v6439
  %v6441 = vsel %vm1626, %v6342, 0.0
  %v6442 = vadd.f32 %v6440, %v6441
  %v6443 = vsel %vm1626, %v6343, 0.0
  %v6444 = vadd.f32 %v6442, %v6443
  %v6445 = vsel %vm1626, %v6344, 0.0
  %v6446 = vadd.f32 %v6444, %v6445
  %v6447 = vsel %vm1626, %v6345, 0.0
  %v6448 = vadd.f32 %v6446, %v6447
  %v6449 = vsel %vm1626, %v6346, 0.0
  %v6450 = vadd.f32 %v6448, %v6449
  %v6451 = vsel %vm1626, %v6347, 0.0
  %v6452 = vadd.f32 %v6450, %v6451
  %v6453 = vsel %vm1626, %v6348, 0.0
  %v6454 = vadd.f32 %v6452, %v6453
  %v6455 = vsel %vm1626, %v6349, 0.0
  %v6456 = vadd.f32 %v6454, %v6455
  %v6457 = vsel %vm1626, %v6350, 0.0
  %v6458 = vadd.f32 %v6456, %v6457
  %v6459 = vsel %vm1626, %v6351, 0.0
  %v6460 = vadd.f32 %v6458, %v6459
  %v6461 = vsel %vm1626, %v6352, 0.0
  %v6462 = vadd.f32 %v6460, %v6461
  %v6463 = vsel %vm1626, %v6353, 0.0
  %v6464 = vadd.f32 %v6462, %v6463
  %v6465 = vsel %vm1626, %v6354, 0.0
  %v6466 = vadd.f32 %v6464, %v6465
  %v6467 = vsel %vm1626, %v6355, 0.0
  %v6468 = vadd.f32 %v6466, %v6467
  %v6469 = vsel %vm1626, %v6356, 0.0
  %v6470 = vadd.f32 %v6468, %v6469
  %v6471 = vsel %vm1626, %v6357, 0.0
  %v6472 = vadd.f32 %v6470, %v6471
  %v6473 = vsel %vm1626, %v6358, 0.0
  %v6474 = vadd.f32 %v6472, %v6473
  %v6475 = vsel %vm1626, %v6359, 0.0
  %v6476 = vadd.f32 %v6474, %v6475
  %v6477 = vsel %vm1626, %v6360, 0.0
  %v6478 = vadd.f32 %v6476, %v6477
  %v6479 = vsel %vm1626, %v6361, 0.0
  %v6480 = vadd.f32 %v6478, %v6479
  %v6481 = vsel %vm1626, %v6362, 0.0
  %v6482 = vadd.f32 %v6480, %v6481
  %v6483 = vsel %vm1626, %v6363, 0.0
  %v6484 = vadd.f32 %v6482, %v6483
  %v6485 = vsel %vm1626, %v6364, 0.0
  %v6486 = vadd.f32 %v6484, %v6485
  %v6487 = vsel %vm1626, %v6365, 0.0
  %v6488 = vadd.f32 %v6486, %v6487
  %v6489 = vsel %vm1626, %v6366, 0.0
  %v6490 = vadd.f32 %v6488, %v6489
  %v6491 = vsel %vm1626, %v6367, 0.0
  %v6492 = vadd.f32 %v6490, %v6491
  %v6493 = vsel %vm1626, %v6368, 0.0
  %v6494 = vadd.f32 %v6492, %v6493
  %v6495 = vsel %vm1626, %v6369, 0.0
  %v6496 = vadd.f32 %v6494, %v6495
  %v6497 = vrot.slane %v6496, 4
  %v6498 = vadd.f32 %v6496, %v6497
  %v6499 = vrot.slane %v6498, 2
  %v6500 = vadd.f32 %v6498, %v6499
  %v6501 = vrot.slane %v6500, 1
  %v6502 = vadd.f32 %v6500, %v6501
  %v6503 = vmul.f32 %v6502, 0.001953125
  %v6504 = vmul.f32 %v6305, %v6305
  %v6505 = vsub.f32 %v6503, %v6504
  %v6506 = vadd.f32 %v6505, 1e-05
  %v6507 = vrsqrt.pop %v6506
  %v6508 = vmul.f32 %v6170, %v6507
  %v6510 = vlaneseq
  %v6511 = vshrl.u32 %v6510, 7
  %v6512 = vsub.s32 0, %v6511
  %v6513 = vrot.slane %v6508, %v6512
  %v6515 = vmul.f32 %v5916, %v6513
  %v6516 = vmul.f32 %v5919, %v6513
  %v6517 = vmul.f32 %v5924, %v6513
  %v6518 = vmul.f32 %v5927, %v6513
  %v6519 = vmul.f32 %v5932, %v6513
  %v6520 = vmul.f32 %v5935, %v6513
  %v6521 = vmul.f32 %v5940, %v6513
  %v6522 = vmul.f32 %v5943, %v6513
  %v6523 = vmul.f32 %v5948, %v6513
  %v6524 = vmul.f32 %v5951, %v6513
  %v6525 = vmul.f32 %v5956, %v6513
  %v6526 = vmul.f32 %v5959, %v6513
  %v6527 = vmul.f32 %v5964, %v6513
  %v6528 = vmul.f32 %v5967, %v6513
  %v6529 = vmul.f32 %v5972, %v6513
  %v6530 = vmul.f32 %v5975, %v6513
  %v6531 = vmul.f32 %v5980, %v6513
  %v6532 = vmul.f32 %v5983, %v6513
  %v6533 = vmul.f32 %v5988, %v6513
  %v6534 = vmul.f32 %v5991, %v6513
  %v6535 = vmul.f32 %v5996, %v6513
  %v6536 = vmul.f32 %v5999, %v6513
  %v6537 = vmul.f32 %v6004, %v6513
  %v6538 = vmul.f32 %v6007, %v6513
  %v6539 = vmul.f32 %v6012, %v6513
  %v6540 = vmul.f32 %v6015, %v6513
  %v6541 = vmul.f32 %v6020, %v6513
  %v6542 = vmul.f32 %v6023, %v6513
  %v6543 = vmul.f32 %v6028, %v6513
  %v6544 = vmul.f32 %v6031, %v6513
  %v6545 = vmul.f32 %v6036, %v6513
  %v6546 = vmul.f32 %v6039, %v6513
  %v6547 = vmul.f32 %v6044, %v6513
  %v6548 = vmul.f32 %v6047, %v6513
  %v6549 = vmul.f32 %v6052, %v6513
  %v6550 = vmul.f32 %v6055, %v6513
  %v6551 = vmul.f32 %v6060, %v6513
  %v6552 = vmul.f32 %v6063, %v6513
  %v6553 = vmul.f32 %v6068, %v6513
  %v6554 = vmul.f32 %v6071, %v6513
  %v6555 = vmul.f32 %v6076, %v6513
  %v6556 = vmul.f32 %v6079, %v6513
  %v6557 = vmul.f32 %v6084, %v6513
  %v6558 = vmul.f32 %v6087, %v6513
  %v6559 = vmul.f32 %v6092, %v6513
  %v6560 = vmul.f32 %v6095, %v6513
  %v6561 = vmul.f32 %v6100, %v6513
  %v6562 = vmul.f32 %v6103, %v6513
  %v6563 = vmul.f32 %v6108, %v6513
  %v6564 = vmul.f32 %v6111, %v6513
  %v6565 = vmul.f32 %v6116, %v6513
  %v6566 = vmul.f32 %v6119, %v6513
  %v6567 = vmul.f32 %v6124, %v6513
  %v6568 = vmul.f32 %v6127, %v6513
  %v6569 = vmul.f32 %v6132, %v6513
  %v6570 = vmul.f32 %v6135, %v6513
  %v6571 = vmul.f32 %v6140, %v6513
  %v6572 = vmul.f32 %v6143, %v6513
  %v6573 = vmul.f32 %v6148, %v6513
  %v6574 = vmul.f32 %v6151, %v6513
  %v6575 = vmul.f32 %v6156, %v6513
  %v6576 = vmul.f32 %v6159, %v6513
  %v6577 = vmul.f32 %v6164, %v6513
  %v6578 = vmul.f32 %v6167, %v6513
  %v6579 = vmul.f32 %v6305, %v6508
  %v6580 = vsub.f32 %v6171, %v6579
  %v6582 = vlaneseq
  %v6583 = vshrl.u32 %v6582, 7
  %v6584 = vsub.s32 0, %v6583
  %v6585 = vrot.slane %v6580, %v6584
  %v6587 = vadd.f32 %v6515, %v6585
  %v6588 = vadd.f32 %v6516, %v6585
  %v6589 = vadd.f32 %v6517, %v6585
  %v6590 = vadd.f32 %v6518, %v6585
  %v6591 = vadd.f32 %v6519, %v6585
  %v6592 = vadd.f32 %v6520, %v6585
  %v6593 = vadd.f32 %v6521, %v6585
  %v6594 = vadd.f32 %v6522, %v6585
  %v6595 = vadd.f32 %v6523, %v6585
  %v6596 = vadd.f32 %v6524, %v6585
  %v6597 = vadd.f32 %v6525, %v6585
  %v6598 = vadd.f32 %v6526, %v6585
  %v6599 = vadd.f32 %v6527, %v6585
  %v6600 = vadd.f32 %v6528, %v6585
  %v6601 = vadd.f32 %v6529, %v6585
  %v6602 = vadd.f32 %v6530, %v6585
  %v6603 = vadd.f32 %v6531, %v6585
  %v6604 = vadd.f32 %v6532, %v6585
  %v6605 = vadd.f32 %v6533, %v6585
  %v6606 = vadd.f32 %v6534, %v6585
  %v6607 = vadd.f32 %v6535, %v6585
  %v6608 = vadd.f32 %v6536, %v6585
  %v6609 = vadd.f32 %v6537, %v6585
  %v6610 = vadd.f32 %v6538, %v6585
  %v6611 = vadd.f32 %v6539, %v6585
  %v6612 = vadd.f32 %v6540, %v6585
  %v6613 = vadd.f32 %v6541, %v6585
  %v6614 = vadd.f32 %v6542, %v6585
  %v6615 = vadd.f32 %v6543, %v6585
  %v6616 = vadd.f32 %v6544, %v6585
  %v6617 = vadd.f32 %v6545, %v6585
  %v6618 = vadd.f32 %v6546, %v6585
  %v6619 = vadd.f32 %v6547, %v6585
  %v6620 = vadd.f32 %v6548, %v6585
  %v6621 = vadd.f32 %v6549, %v6585
  %v6622 = vadd.f32 %v6550, %v6585
  %v6623 = vadd.f32 %v6551, %v6585
  %v6624 = vadd.f32 %v6552, %v6585
  %v6625 = vadd.f32 %v6553, %v6585
  %v6626 = vadd.f32 %v6554, %v6585
  %v6627 = vadd.f32 %v6555, %v6585
  %v6628 = vadd.f32 %v6556, %v6585
  %v6629 = vadd.f32 %v6557, %v6585
  %v6630 = vadd.f32 %v6558, %v6585
  %v6631 = vadd.f32 %v6559, %v6585
  %v6632 = vadd.f32 %v6560, %v6585
  %v6633 = vadd.f32 %v6561, %v6585
  %v6634 = vadd.f32 %v6562, %v6585
  %v6635 = vadd.f32 %v6563, %v6585
  %v6636 = vadd.f32 %v6564, %v6585
  %v6637 = vadd.f32 %v6565, %v6585
  %v6638 = vadd.f32 %v6566, %v6585
  %v6639 = vadd.f32 %v6567, %v6585
  %v6640 = vadd.f32 %v6568, %v6585
  %v6641 = vadd.f32 %v6569, %v6585
  %v6642 = vadd.f32 %v6570, %v6585
  %v6643 = vadd.f32 %v6571, %v6585
  %v6644 = vadd.f32 %v6572, %v6585
  %v6645 = vadd.f32 %v6573, %v6585
  %v6646 = vadd.f32 %v6574, %v6585
  %v6647 = vadd.f32 %v6575, %v6585
  %v6648 = vadd.f32 %v6576, %v6585
  %v6649 = vadd.f32 %v6577, %v6585
  %v6650 = vadd.f32 %v6578, %v6585
  %v6651 = vadd.f32 %v5749, %v6587
  %v6652 = vadd.f32 %v5750, %v6588
  %v6653 = vadd.f32 %v5751, %v6589
  %v6654 = vadd.f32 %v5752, %v6590
  %v6655 = vadd.f32 %v5753, %v6591
  %v6656 = vadd.f32 %v5754, %v6592
  %v6657 = vadd.f32 %v5755, %v6593
  %v6658 = vadd.f32 %v5756, %v6594
  %v6659 = vadd.f32 %v5757, %v6595
  %v6660 = vadd.f32 %v5758, %v6596
  %v6661 = vadd.f32 %v5759, %v6597
  %v6662 = vadd.f32 %v5760, %v6598
  %v6663 = vadd.f32 %v5761, %v6599
  %v6664 = vadd.f32 %v5762, %v6600
  %v6665 = vadd.f32 %v5763, %v6601
  %v6666 = vadd.f32 %v5764, %v6602
  %v6667 = vadd.f32 %v5765, %v6603
  %v6668 = vadd.f32 %v5766, %v6604
  %v6669 = vadd.f32 %v5767, %v6605
  %v6670 = vadd.f32 %v5768, %v6606
  %v6671 = vadd.f32 %v5769, %v6607
  %v6672 = vadd.f32 %v5770, %v6608
  %v6673 = vadd.f32 %v5771, %v6609
  %v6674 = vadd.f32 %v5772, %v6610
  %v6675 = vadd.f32 %v5773, %v6611
  %v6676 = vadd.f32 %v5774, %v6612
  %v6677 = vadd.f32 %v5775, %v6613
  %v6678 = vadd.f32 %v5776, %v6614
  %v6679 = vadd.f32 %v5777, %v6615
  %v6680 = vadd.f32 %v5778, %v6616
  %v6681 = vadd.f32 %v5779, %v6617
  %v6682 = vadd.f32 %v5780, %v6618
  %v6683 = vadd.f32 %v5781, %v6619
  %v6684 = vadd.f32 %v5782, %v6620
  %v6685 = vadd.f32 %v5783, %v6621
  %v6686 = vadd.f32 %v5784, %v6622
  %v6687 = vadd.f32 %v5785, %v6623
  %v6688 = vadd.f32 %v5786, %v6624
  %v6689 = vadd.f32 %v5787, %v6625
  %v6690 = vadd.f32 %v5788, %v6626
  %v6691 = vadd.f32 %v5789, %v6627
  %v6692 = vadd.f32 %v5790, %v6628
  %v6693 = vadd.f32 %v5791, %v6629
  %v6694 = vadd.f32 %v5792, %v6630
  %v6695 = vadd.f32 %v5793, %v6631
  %v6696 = vadd.f32 %v5794, %v6632
  %v6697 = vadd.f32 %v5795, %v6633
  %v6698 = vadd.f32 %v5796, %v6634
  %v6699 = vadd.f32 %v5797, %v6635
  %v6700 = vadd.f32 %v5798, %v6636
  %v6701 = vadd.f32 %v5799, %v6637
  %v6702 = vadd.f32 %v5800, %v6638
  %v6703 = vadd.f32 %v5801, %v6639
  %v6704 = vadd.f32 %v5802, %v6640
  %v6705 = vadd.f32 %v5803, %v6641
  %v6706 = vadd.f32 %v5804, %v6642
  %v6707 = vadd.f32 %v5805, %v6643
  %v6708 = vadd.f32 %v5806, %v6644
  %v6709 = vadd.f32 %v5807, %v6645
  %v6710 = vadd.f32 %v5808, %v6646
  %v6711 = vadd.f32 %v5809, %v6647
  %v6712 = vadd.f32 %v5810, %v6648
  %v6713 = vadd.f32 %v5811, %v6649
  %v6714 = vadd.f32 %v5812, %v6650
  %v6715 = vmax.f32 %v6651, 0.0
  %v6716 = vmax.f32 %v6652, 0.0
  %v6717 = vmax.f32 %v6653, 0.0
  %v6718 = vmax.f32 %v6654, 0.0
  %v6719 = vmax.f32 %v6655, 0.0
  %v6720 = vmax.f32 %v6656, 0.0
  %v6721 = vmax.f32 %v6657, 0.0
  %v6722 = vmax.f32 %v6658, 0.0
  %v6723 = vmax.f32 %v6659, 0.0
  %v6724 = vmax.f32 %v6660, 0.0
  %v6725 = vmax.f32 %v6661, 0.0
  %v6726 = vmax.f32 %v6662, 0.0
  %v6727 = vmax.f32 %v6663, 0.0
  %v6728 = vmax.f32 %v6664, 0.0
  %v6729 = vmax.f32 %v6665, 0.0
  %v6730 = vmax.f32 %v6666, 0.0
  %v6731 = vmax.f32 %v6667, 0.0
  %v6732 = vmax.f32 %v6668, 0.0
  %v6733 = vmax.f32 %v6669, 0.0
  %v6734 = vmax.f32 %v6670, 0.0
  %v6735 = vmax.f32 %v6671, 0.0
  %v6736 = vmax.f32 %v6672, 0.0
  %v6737 = vmax.f32 %v6673, 0.0
  %v6738 = vmax.f32 %v6674, 0.0
  %v6739 = vmax.f32 %v6675, 0.0
  %v6740 = vmax.f32 %v6676, 0.0
  %v6741 = vmax.f32 %v6677, 0.0
  %v6742 = vmax.f32 %v6678, 0.0
  %v6743 = vmax.f32 %v6679, 0.0
  %v6744 = vmax.f32 %v6680, 0.0
  %v6745 = vmax.f32 %v6681, 0.0
  %v6746 = vmax.f32 %v6682, 0.0
  %v6747 = vmax.f32 %v6683, 0.0
  %v6748 = vmax.f32 %v6684, 0.0
  %v6749 = vmax.f32 %v6685, 0.0
  %v6750 = vmax.f32 %v6686, 0.0
  %v6751 = vmax.f32 %v6687, 0.0
  %v6752 = vmax.f32 %v6688, 0.0
  %v6753 = vmax.f32 %v6689, 0.0
  %v6754 = vmax.f32 %v6690, 0.0
  %v6755 = vmax.f32 %v6691, 0.0
  %v6756 = vmax.f32 %v6692, 0.0
  %v6757 = vmax.f32 %v6693, 0.0
  %v6758 = vmax.f32 %v6694, 0.0
  %v6759 = vmax.f32 %v6695, 0.0
  %v6760 = vmax.f32 %v6696, 0.0
  %v6761 = vmax.f32 %v6697, 0.0
  %v6762 = vmax.f32 %v6698, 0.0
  %v6763 = vmax.f32 %v6699, 0.0
  %v6764 = vmax.f32 %v6700, 0.0
  %v6765 = vmax.f32 %v6701, 0.0
  %v6766 = vmax.f32 %v6702, 0.0
  %v6767 = vmax.f32 %v6703, 0.0
  %v6768 = vmax.f32 %v6704, 0.0
  %v6769 = vmax.f32 %v6705, 0.0
  %v6770 = vmax.f32 %v6706, 0.0
  %v6771 = vmax.f32 %v6707, 0.0
  %v6772 = vmax.f32 %v6708, 0.0
  %v6773 = vmax.f32 %v6709, 0.0
  %v6774 = vmax.f32 %v6710, 0.0
  %v6775 = vmax.f32 %v6711, 0.0
  %v6776 = vmax.f32 %v6712, 0.0
  %v6777 = vmax.f32 %v6713, 0.0
  %v6778 = vmax.f32 %v6714, 0.0
  %6779 = vst.msk [vmem:[%s10] sm:$0xff] %vm1626, %v6715
  %6780 = vst.msk [vmem:[%s10 + $0x8] sm:$0xff] %vm1626, %v6716
  %6781 = vst.msk [vmem:[%s10 + $0x10] sm:$0xff] %vm1626, %v6717
  %6782 = vst.msk [vmem:[%s10 + $0x18] sm:$0xff] %vm1626, %v6718
  %6783 = vst.msk [vmem:[%s10 + $0x20] sm:$0xff] %vm1626, %v6719
  %6784 = vst.msk [vmem:[%s10 + $0x28] sm:$0xff] %vm1626, %v6720
  %6785 = vst.msk [vmem:[%s10 + $0x30] sm:$0xff] %vm1626, %v6721
  %6786 = vst.msk [vmem:[%s10 + $0x38] sm:$0xff] %vm1626, %v6722
  %6787 = vst.msk [vmem:[%s10 + $0x40] sm:$0xff] %vm1626, %v6723
  %6788 = vst.msk [vmem:[%s10 + $0x48] sm:$0xff] %vm1626, %v6724
  %6789 = vst.msk [vmem:[%s10 + $0x50] sm:$0xff] %vm1626, %v6725
  %6790 = vst.msk [vmem:[%s10 + $0x58] sm:$0xff] %vm1626, %v6726
  %6791 = vst.msk [vmem:[%s10 + $0x60] sm:$0xff] %vm1626, %v6727
  %6792 = vst.msk [vmem:[%s10 + $0x68] sm:$0xff] %vm1626, %v6728
  %6793 = vst.msk [vmem:[%s10 + $0x70] sm:$0xff] %vm1626, %v6729
  %6794 = vst.msk [vmem:[%s10 + $0x78] sm:$0xff] %vm1626, %v6730
  %6795 = vst.msk [vmem:[%s10 + $0x80] sm:$0xff] %vm1626, %v6731
  %6796 = vst.msk [vmem:[%s10 + $0x88] sm:$0xff] %vm1626, %v6732
  %6797 = vst.msk [vmem:[%s10 + $0x90] sm:$0xff] %vm1626, %v6733
  %6798 = vst.msk [vmem:[%s10 + $0x98] sm:$0xff] %vm1626, %v6734
  %6799 = vst.msk [vmem:[%s10 + $0xa0] sm:$0xff] %vm1626, %v6735
  %6800 = vst.msk [vmem:[%s10 + $0xa8] sm:$0xff] %vm1626, %v6736
  %6801 = vst.msk [vmem:[%s10 + $0xb0] sm:$0xff] %vm1626, %v6737
  %6802 = vst.msk [vmem:[%s10 + $0xb8] sm:$0xff] %vm1626, %v6738
  %6803 = vst.msk [vmem:[%s10 + $0xc0] sm:$0xff] %vm1626, %v6739
  %6804 = vst.msk [vmem:[%s10 + $0xc8] sm:$0xff] %vm1626, %v6740
  %6805 = vst.msk [vmem:[%s10 + $0xd0] sm:$0xff] %vm1626, %v6741
  %6806 = vst.msk [vmem:[%s10 + $0xd8] sm:$0xff] %vm1626, %v6742
  %6807 = vst.msk [vmem:[%s10 + $0xe0] sm:$0xff] %vm1626, %v6743
  %6808 = vst.msk [vmem:[%s10 + $0xe8] sm:$0xff] %vm1626, %v6744
  %6809 = vst.msk [vmem:[%s10 + $0xf0] sm:$0xff] %vm1626, %v6745
  %6810 = vst.msk [vmem:[%s10 + $0xf8] sm:$0xff] %vm1626, %v6746
  %6811 = vst.msk [vmem:[%s10 + $0x100] sm:$0xff] %vm1626, %v6747
  %6812 = vst.msk [vmem:[%s10 + $0x108] sm:$0xff] %vm1626, %v6748
  %6813 = vst.msk [vmem:[%s10 + $0x110] sm:$0xff] %vm1626, %v6749
  %6814 = vst.msk [vmem:[%s10 + $0x118] sm:$0xff] %vm1626, %v6750
  %6815 = vst.msk [vmem:[%s10 + $0x120] sm:$0xff] %vm1626, %v6751
  %6816 = vst.msk [vmem:[%s10 + $0x128] sm:$0xff] %vm1626, %v6752
  %6817 = vst.msk [vmem:[%s10 + $0x130] sm:$0xff] %vm1626, %v6753
  %6818 = vst.msk [vmem:[%s10 + $0x138] sm:$0xff] %vm1626, %v6754
  %6819 = vst.msk [vmem:[%s10 + $0x140] sm:$0xff] %vm1626, %v6755
  %6820 = vst.msk [vmem:[%s10 + $0x148] sm:$0xff] %vm1626, %v6756
  %6821 = vst.msk [vmem:[%s10 + $0x150] sm:$0xff] %vm1626, %v6757
  %6822 = vst.msk [vmem:[%s10 + $0x158] sm:$0xff] %vm1626, %v6758
  %6823 = vst.msk [vmem:[%s10 + $0x160] sm:$0xff] %vm1626, %v6759
  %6824 = vst.msk [vmem:[%s10 + $0x168] sm:$0xff] %vm1626, %v6760
  %6825 = vst.msk [vmem:[%s10 + $0x170] sm:$0xff] %vm1626, %v6761
  %6826 = vst.msk [vmem:[%s10 + $0x178] sm:$0xff] %vm1626, %v6762
  %6827 = vst.msk [vmem:[%s10 + $0x180] sm:$0xff] %vm1626, %v6763
  %6828 = vst.msk [vmem:[%s10 + $0x188] sm:$0xff] %vm1626, %v6764
  %6829 = vst.msk [vmem:[%s10 + $0x190] sm:$0xff] %vm1626, %v6765
  %6830 = vst.msk [vmem:[%s10 + $0x198] sm:$0xff] %vm1626, %v6766
  %6831 = vst.msk [vmem:[%s10 + $0x1a0] sm:$0xff] %vm1626, %v6767
  %6832 = vst.msk [vmem:[%s10 + $0x1a8] sm:$0xff] %vm1626, %v6768
  %6833 = vst.msk [vmem:[%s10 + $0x1b0] sm:$0xff] %vm1626, %v6769
  %6834 = vst.msk [vmem:[%s10 + $0x1b8] sm:$0xff] %vm1626, %v6770
  %6835 = vst.msk [vmem:[%s10 + $0x1c0] sm:$0xff] %vm1626, %v6771
  %6836 = vst.msk [vmem:[%s10 + $0x1c8] sm:$0xff] %vm1626, %v6772
  %6837 = vst.msk [vmem:[%s10 + $0x1d0] sm:$0xff] %vm1626, %v6773
  %6838 = vst.msk [vmem:[%s10 + $0x1d8] sm:$0xff] %vm1626, %v6774
  %6839 = vst.msk [vmem:[%s10 + $0x1e0] sm:$0xff] %vm1626, %v6775
  %6840 = vst.msk [vmem:[%s10 + $0x1e8] sm:$0xff] %vm1626, %v6776
  %6841 = vst.msk [vmem:[%s10 + $0x1f0] sm:$0xff] %vm1626, %v6777
  %6842 = vst.msk [vmem:[%s10 + $0x1f8] sm:$0xff] %vm1626, %v6778
  // Predicated region
  $region42: #{tpu_custom_call.1} parent=0 // pred_check
    _
  $region43: #{tpu_custom_call.1} parent=0 // pred_check_branch
    %6844 = sbr.rel (0) target = $region45
  $region44: #{tpu_custom_call.1} parent=0 // pred_region
    _
  $region45: #{tpu_custom_call.1} parent=0 // pred_fallthru
    _
  // Predicated region
  $region46: #{tpu_custom_call.1} parent=0 // pred_check
    _
  $region47: #{tpu_custom_call.1} parent=0 // pred_check_branch
    %6846 = sbr.rel (0) target = $region49
  $region48: #{tpu_custom_call.1} parent=0 // pred_region
    _
  $region49: #{tpu_custom_call.1} parent=0 // pred_fallthru
    _

</llo_original>
